<compile_context>
chip_gen: v7x
topology: tpu7x:2x2x1
jax: 0.10.0
libtpu: 0.0.40
codegen_flags: <defaults>
</compile_context>

<pallas_src>
import jax
import jax.numpy as jnp
from jax import lax
from jax.experimental import pallas as pl
from jax.experimental.pallas import tpu as pltpu

HIDDEN = 768
IN_DIM = 2 * HIDDEN          # 1536, hard-coded in the PyTorch forward
NUM_CLASSES = 2
OUT_PAD = 128                # lane-dense padded output width


def _head_kernel(x_ref, w1_ref, b1_ref, w2_ref, b2_ref, o_ref):
    # x_ref:  (TM, 1536) bf16     w1_ref: (768, 1536) bf16 (PyTorch (out, in) layout)
    # b1_ref: (1, 768)   f32      w2_ref: (128, 768)  bf16 (rows 2..127 are zero)
    # b2_ref: (1, 128)   f32      o_ref:  (TM, 128)   f32
    x = x_ref[...]
    # K-last contraction on BOTH operands => x @ W1^T without any wrapper transpose.
    h = lax.dot_general(
        x, w1_ref[...],
        dimension_numbers=(((1,), (1,)), ((), ())),
        preferred_element_type=jnp.float32,
    ) + b1_ref[...]
    h = jnp.tanh(h)  # keep activation in f32 (v5e VPU/EUP have no bf16 datapath)
    # TODO(synk): dropout is a no-op in eval mode; training-mode dropout
    # (pltpu.prng_random_bits mask) is intentionally not applied.
    y = lax.dot_general(
        h.astype(w2_ref.dtype), w2_ref[...],
        dimension_numbers=(((1,), (1,)), ((), ())),
        preferred_element_type=jnp.float32,
    ) + b2_ref[...]
    o_ref[...] = y


def _round_up(a, b):
    return (a + b - 1) // b * b


def roberta_classification_head(features, w1, b1, w2, b2, *, tm=256):
    """features: any array reshapable to (-1, 2*HIDDEN), e.g. (B, 2, HIDDEN).
    w1: (HIDDEN, 2*HIDDEN)   b1: (HIDDEN,)     (PyTorch Linear layout, out x in)
    w2: (NUM_CLASSES, HIDDEN)  b2: (NUM_CLASSES,)
    returns: (B, NUM_CLASSES) float32
    """
    x = features.reshape(-1, IN_DIM).astype(jnp.float32)
    B = x.shape[0]

    # Batch tile: multiple of 8, at most `tm` (256 fills the v6e/v7x MXU; small
    # B collapses to a single small tile).
    tm_eff = min(tm, _round_up(B, 8))
    B_pad = _round_up(B, tm_eff)
    if B_pad != B:
        x = jnp.pad(x, ((0, B_pad - B), (0, 0)))

    # bf16 matmul operands; f32 biases added onto the f32 accumulator.
    x_bf = x.astype(jnp.bfloat16)
    w1_bf = jnp.asarray(w1, jnp.bfloat16)                        # (768, 1536), NOT transposed
    b1_f = jnp.asarray(b1, jnp.float32).reshape(1, HIDDEN)
    w2_pad = jnp.zeros((OUT_PAD, HIDDEN), jnp.bfloat16).at[:NUM_CLASSES, :].set(
        jnp.asarray(w2, jnp.bfloat16))                           # (128, 768), zero-padded
    b2_pad = jnp.zeros((1, OUT_PAD), jnp.float32).at[0, :NUM_CLASSES].set(
        jnp.asarray(b2, jnp.float32))

    grid = (B_pad // tm_eff,)

    flops = 2 * B_pad * IN_DIM * HIDDEN + 2 * B_pad * HIDDEN * OUT_PAD
    bytes_accessed = (x_bf.size * 2 + w1_bf.size * 2 + w2_pad.size * 2
                      + b1_f.size * 4 + b2_pad.size * 4 + B_pad * OUT_PAD * 4)

    out = pl.pallas_call(
        _head_kernel,
        out_shape=jax.ShapeDtypeStruct((B_pad, OUT_PAD), jnp.float32),
        grid=grid,
        in_specs=[
            pl.BlockSpec((tm_eff, IN_DIM), lambda i: (i, 0)),    # x: tiled over batch
            pl.BlockSpec((HIDDEN, IN_DIM), lambda i: (0, 0)),    # W1: VMEM-resident
            pl.BlockSpec((1, HIDDEN), lambda i: (0, 0)),         # b1
            pl.BlockSpec((OUT_PAD, HIDDEN), lambda i: (0, 0)),   # W2 (padded)
            pl.BlockSpec((1, OUT_PAD), lambda i: (0, 0)),        # b2 (padded)
        ],
        out_specs=pl.BlockSpec((tm_eff, OUT_PAD), lambda i: (i, 0)),
        compiler_params=pltpu.CompilerParams(
            dimension_semantics=("parallel",)),
        cost_estimate=pl.CostEstimate(
            flops=flops,
            transcendentals=B_pad * HIDDEN,
            bytes_accessed=bytes_accessed),
    )(x_bf, w1_bf, b1_f, w2_pad, b2_pad)

    return out[:B, :NUM_CLASSES]


if __name__ == "__main__":
    key = jax.random.PRNGKey(0)
    k_feat, k_w1, k_b1, k_w2, k_b2 = jax.random.split(key, 5)

    B = 2  # small batch
    # features: (B, 2, HIDDEN) -> reshape(-1, 1536) inside the wrapper
    features = jax.random.normal(k_feat, (B, 2, HIDDEN), dtype=jnp.float32)

    # Deterministic synthetic parameters (PyTorch Linear layout: (out, in)).
    w1 = jax.random.normal(k_w1, (HIDDEN, IN_DIM), dtype=jnp.float32) * 0.02
    b1 = jax.random.normal(k_b1, (HIDDEN,), dtype=jnp.float32) * 0.02
    w2 = jax.random.normal(k_w2, (NUM_CLASSES, HIDDEN), dtype=jnp.float32) * 0.02
    b2 = jax.random.normal(k_b2, (NUM_CLASSES,), dtype=jnp.float32) * 0.02

    out = roberta_classification_head(features, w1, b1, w2, b2)
    out = jax.block_until_ready(out)

    # Pure-JAX f32 reference (eval-mode dropout == identity). Tolerance is
    # loosened because the kernel's matmul operands are bf16 (f32 accumulation).
    x_ref = features.reshape(-1, IN_DIM)
    ref = jnp.tanh(x_ref @ w1.T + b1) @ w2.T + b2
    assert out.shape == (B, NUM_CLASSES)
    assert jnp.allclose(out, ref, atol=2e-2, rtol=2e-2), (
        f"max abs err {jnp.max(jnp.abs(out - ref))}")

    print("KERNEL_OK")
</pallas_src>

<mosaic_0001>
module attributes {stable_mosaic.version = 11 : i64} {
  func.func @_head_kernel(%arg0: i32, %arg1: memref<8x1536xbf16, #tpu.memory_space<vmem>>, %arg2: memref<768x1536xbf16, #tpu.memory_space<vmem>>, %arg3: memref<1x768xf32, #tpu.memory_space<vmem>>, %arg4: memref<128x768xbf16, #tpu.memory_space<vmem>>, %arg5: memref<1x128xf32, #tpu.memory_space<vmem>>, %arg6: memref<8x128xf32, #tpu.memory_space<vmem>>) attributes {dimension_semantics = [#tpu.dimension_semantics<parallel>], iteration_bounds = array<i64: 1>, scalar_prefetch = 0 : i64, scratch_operands = 0 : i64, tpu.core_type = #tpu.core_type<tc>, window_params = [{transform_indices = @transform_0, window_bounds = array<i64: 8, 1536>}, {pipeline_mode = #tpu.pipeline_mode<synchronous>, transform_indices = @transform_1, window_bounds = array<i64: 768, 1536>}, {pipeline_mode = #tpu.pipeline_mode<synchronous>, transform_indices = @transform_2, window_bounds = array<i64: 1, 768>}, {pipeline_mode = #tpu.pipeline_mode<synchronous>, transform_indices = @transform_3, window_bounds = array<i64: 128, 768>}, {pipeline_mode = #tpu.pipeline_mode<synchronous>, transform_indices = @transform_4, window_bounds = array<i64: 1, 128>}, {transform_indices = @transform_5, window_bounds = array<i64: 8, 128>}]} {
    %c0 = arith.constant 0 : index
    %c0_0 = arith.constant 0 : index
    %0 = vector.load %arg1[%c0, %c0_0] : memref<8x1536xbf16, #tpu.memory_space<vmem>>, vector<8x1536xbf16>
    %c0_1 = arith.constant 0 : index
    %c0_2 = arith.constant 0 : index
    %1 = vector.load %arg2[%c0_1, %c0_2] : memref<768x1536xbf16, #tpu.memory_space<vmem>>, vector<768x1536xbf16>
    %cst = arith.constant dense<0.000000e+00> : vector<8x768xf32>
    %2 = tpu.matmul %0, %1, %cst {dimension_numbers = #tpu.dot_dimension_numbers<[1], [1], [0], [0], [0, 0, 1, 0], [], []>} : vector<8x1536xbf16>, vector<768x1536xbf16>, vector<8x768xf32> -> vector<8x768xf32>
    %c0_3 = arith.constant 0 : index
    %c0_4 = arith.constant 0 : index
    %3 = vector.load %arg3[%c0_3, %c0_4] : memref<1x768xf32, #tpu.memory_space<vmem>>, vector<1x768xf32>
    %4 = vector.broadcast %3 : vector<1x768xf32> to vector<8x768xf32>
    %5 = arith.addf %2, %4 : vector<8x768xf32>
    %6 = math.tanh %5 : vector<8x768xf32>
    %7 = arith.truncf %6 : vector<8x768xf32> to vector<8x768xbf16>
    %c0_5 = arith.constant 0 : index
    %c0_6 = arith.constant 0 : index
    %8 = vector.load %arg4[%c0_5, %c0_6] : memref<128x768xbf16, #tpu.memory_space<vmem>>, vector<128x768xbf16>
    %cst_7 = arith.constant dense<0.000000e+00> : vector<8x128xf32>
    %9 = tpu.matmul %7, %8, %cst_7 {dimension_numbers = #tpu.dot_dimension_numbers<[1], [1], [0], [0], [0, 0, 1, 0], [], []>} : vector<8x768xbf16>, vector<128x768xbf16>, vector<8x128xf32> -> vector<8x128xf32>
    %c0_8 = arith.constant 0 : index
    %c0_9 = arith.constant 0 : index
    %10 = vector.load %arg5[%c0_8, %c0_9] : memref<1x128xf32, #tpu.memory_space<vmem>>, vector<1x128xf32>
    %11 = vector.broadcast %10 : vector<1x128xf32> to vector<8x128xf32>
    %12 = arith.addf %9, %11 : vector<8x128xf32>
    %c0_10 = arith.constant 0 : index
    %c0_11 = arith.constant 0 : index
    %13 = vector.load %arg6[%c0_10, %c0_11] : memref<8x128xf32, #tpu.memory_space<vmem>>, vector<8x128xf32>
    tpu.vector_store %arg6[%c0_10, %c0_11], %12 {strides = array<i32>} : memref<8x128xf32, #tpu.memory_space<vmem>>, vector<8x128xf32>,
    return
  }
  func.func @transform_0(%arg0: i32) -> (i32, i32) {
    %c0_i32 = arith.constant 0 : i32
    %c0_i32_0 = arith.constant 0 : i32
    return %arg0, %c0_i32 : i32, i32
  }
  func.func @transform_1(%arg0: i32) -> (i32, i32) {
    %c0_i32 = arith.constant 0 : i32
    %c0_i32_0 = arith.constant 0 : i32
    %c0_i32_1 = arith.constant 0 : i32
    return %c0_i32, %c0_i32_0 : i32, i32
  }
  func.func @transform_2(%arg0: i32) -> (i32, i32) {
    %c0_i32 = arith.constant 0 : i32
    %c0_i32_0 = arith.constant 0 : i32
    %c0_i32_1 = arith.constant 0 : i32
    return %c0_i32, %c0_i32_0 : i32, i32
  }
  func.func @transform_3(%arg0: i32) -> (i32, i32) {
    %c0_i32 = arith.constant 0 : i32
    %c0_i32_0 = arith.constant 0 : i32
    %c0_i32_1 = arith.constant 0 : i32
    return %c0_i32, %c0_i32_0 : i32, i32
  }
  func.func @transform_4(%arg0: i32) -> (i32, i32) {
    %c0_i32 = arith.constant 0 : i32
    %c0_i32_0 = arith.constant 0 : i32
    %c0_i32_1 = arith.constant 0 : i32
    return %c0_i32, %c0_i32_0 : i32, i32
  }
  func.func @transform_5(%arg0: i32) -> (i32, i32) {
    %c0_i32 = arith.constant 0 : i32
    %c0_i32_0 = arith.constant 0 : i32
    return %arg0, %c0_i32 : i32, i32
  }
}

</mosaic_0001>

<llo_original>
// kernel: tpu_custom_call.1
$region0: #{tpu_custom_call.1}
  #allocation0 [shape = 'u32[]', space=smem, size = 0x4, offset = 0x4, fixed_abs, tag = 'smem constant byte address 0x4 - core index']
  #allocation1 [shape = 'u32[144,128]{1,0:T(1,128)}', space=vmem, size = 0x12000, scoped, tag = 'internal scratch']
  %s0 = inlined_call_operand.hbm [shape: bf16[8,1536], index: 0, kind: input, shape index: {}]
  %s1 = inlined_call_operand.hbm [shape: bf16[768,1536], index: 1, kind: input, shape index: {}]
  %s2 = inlined_call_operand.hbm [shape: f32[1,768], index: 2, kind: input, shape index: {}]
  %s3 = inlined_call_operand.hbm [shape: bf16[128,768], index: 3, kind: input, shape index: {}]
  %s4 = inlined_call_operand.hbm [shape: f32[1,128], index: 4, kind: input, shape index: {}]
  %s5 = inlined_call_operand.hbm [shape: f32[8,128], index: 5, kind: output, shape index: {}]
  %s6 = sld [smem:[#allocation0]]
  $region50: #{tpu_custom_call.1} parent=0
    _
  %s8 = ssub.s32 1, %s6
  %s9 = scalar_select 0, %s8, %s6
  $region1: #{tpu_custom_call.1} parent=0
    #allocation2 [shape = 'u8[24576]{0}', space=vmem, size = 0x6000, scoped, tag = 'input window, operand 0, single buffered']
    #allocation3 [shape = 's32[1]{0}', space=sflag, size = 0x4, scoped, tag = 'scoped memory for tpu_custom_call.1']
    #allocation4 [shape = 's32[1]{0}', space=sflag, size = 0x4, scoped, tag = 'scoped memory for tpu_custom_call.1']
    #allocation5 [shape = 'u8[2359296]{0}', space=vmem, size = 0x240000, scoped, tag = 'input window, operand 1, single buffered']
    #allocation6 [shape = 's32[1]{0}', space=sflag, size = 0x4, scoped, tag = 'scoped memory for tpu_custom_call.1']
    #allocation7 [shape = 'u8[3072]{0}', space=vmem, size = 0xc00, scoped, tag = 'input window, operand 2, single buffered']
    #allocation8 [shape = 'u8[196608]{0}', space=vmem, size = 0x30000, scoped, tag = 'input window, operand 3, single buffered']
    #allocation9 [shape = 's32[1]{0}', space=sflag, size = 0x4, scoped, tag = 'scoped memory for tpu_custom_call.1']
    #allocation10 [shape = 'u8[512]{0}', space=vmem, size = 0x400, scoped, tag = 'input window, operand 4, single buffered']
    #allocation11 [shape = 'u8[4096]{0}', space=vmem, size = 0x1000, scoped, tag = 'output window, operand 0, single buffered']
    %10 = vsyncpa [#allocation3], 0
    %11 = vsyncpa [#allocation6], 0
    %12 = vsyncpa [#allocation9], 0
    %13 = vsyncpa [#allocation4], 0
    // Predicated region
    $region2: #{tpu_custom_call.1} parent=1 // pred_check
      _
    $region3: #{tpu_custom_call.1} parent=1 // pred_check_branch
      %15 = sbr.rel (0) target = $region5
    $region4: #{tpu_custom_call.1} parent=1 // pred_region
      %s17 = ssub.s32 768, 768
      %18 = vsyncadd [#allocation3], %s17
      %s20 = sshll.u32 [#allocation2], 4
      %s21 = int_to_ptr.vmem [resolvable:$true] %s20
      %23 = dma.hbm_to_vmem [thread:$0]  %s0, 768, %s21, [#allocation3]
    $region5: #{tpu_custom_call.1} parent=1 // pred_fallthru
      _
    // Predicated region
    $region6: #{tpu_custom_call.1} parent=1 // pred_check
      _
    $region7: #{tpu_custom_call.1} parent=1 // pred_check_branch
      %25 = sbr.rel (0) target = $region9
    $region8: #{tpu_custom_call.1} parent=1 // pred_region
      %s27 = ssub.s32 73728, 73728
      %28 = vsyncadd [#allocation6], %s27
      %s29 = sshll.u32 [#allocation5], 4
      %s30 = int_to_ptr.vmem [resolvable:$true] %s29
      %35 = dma.hbm_to_vmem [thread:$0]  %s1, 73728, %s30, [#allocation6], 768, 768, 48
    $region9: #{tpu_custom_call.1} parent=1 // pred_fallthru
      _
    // Predicated region
    $region10: #{tpu_custom_call.1} parent=1 // pred_check
      _
    $region11: #{tpu_custom_call.1} parent=1 // pred_check_branch
      %37 = sbr.rel (0) target = $region13
    $region12: #{tpu_custom_call.1} parent=1 // pred_region
      %s39 = ssub.s32 96, 96
      %40 = vsyncadd [#allocation6], %s39
      %s42 = sshll.u32 [#allocation7], 4
      %s43 = int_to_ptr.vmem [resolvable:$true] %s42
      %45 = dma.hbm_to_vmem [thread:$0]  %s2, 96, %s43, [#allocation6]
    $region13: #{tpu_custom_call.1} parent=1 // pred_fallthru
      _
    // Predicated region
    $region14: #{tpu_custom_call.1} parent=1 // pred_check
      _
    $region15: #{tpu_custom_call.1} parent=1 // pred_check_branch
      %47 = sbr.rel (0) target = $region17
    $region16: #{tpu_custom_call.1} parent=1 // pred_region
      %s49 = ssub.s32 6144, 6144
      %50 = vsyncadd [#allocation9], %s49
      %s51 = sshll.u32 [#allocation8], 4
      %s52 = int_to_ptr.vmem [resolvable:$true] %s51
      %57 = dma.hbm_to_vmem [thread:$0]  %s3, 6144, %s52, [#allocation9], 384, 384, 24
    $region17: #{tpu_custom_call.1} parent=1 // pred_fallthru
      _
    // Predicated region
    $region18: #{tpu_custom_call.1} parent=1 // pred_check
      _
    $region19: #{tpu_custom_call.1} parent=1 // pred_check_branch
      %59 = sbr.rel (0) target = $region21
    $region20: #{tpu_custom_call.1} parent=1 // pred_region
      %s61 = ssub.s32 16, 16
      %62 = vsyncadd [#allocation9], %s61
      %s64 = sshll.u32 [#allocation10], 4
      %s65 = int_to_ptr.vmem [resolvable:$true] %s64
      %67 = dma.hbm_to_vmem [thread:$0]  %s4, 16, %s65, [#allocation9]
    $region21: #{tpu_custom_call.1} parent=1 // pred_fallthru
      _
    // Predicated region
    $region22: #{tpu_custom_call.1} parent=1 // pred_check
      _
    $region23: #{tpu_custom_call.1} parent=1 // pred_check_branch
      %69 = sbr.rel (0) target = $region25
    $region24: #{tpu_custom_call.1} parent=1 // pred_region
      %70 = dma.done [#allocation3], 768
    $region25: #{tpu_custom_call.1} parent=1 // pred_fallthru
      _
    // Predicated region
    $region26: #{tpu_custom_call.1} parent=1 // pred_check
      _
    $region27: #{tpu_custom_call.1} parent=1 // pred_check_branch
      %72 = sbr.rel (0) target = $region29
    $region28: #{tpu_custom_call.1} parent=1 // pred_region
      %73 = dma.done [#allocation6], 73728
    $region29: #{tpu_custom_call.1} parent=1 // pred_fallthru
      _
    // Predicated region
    $region30: #{tpu_custom_call.1} parent=1 // pred_check
      _
    $region31: #{tpu_custom_call.1} parent=1 // pred_check_branch
      %75 = sbr.rel (0) target = $region33
    $region32: #{tpu_custom_call.1} parent=1 // pred_region
      %76 = dma.done [#allocation6], 96
    $region33: #{tpu_custom_call.1} parent=1 // pred_fallthru
      _
    // Predicated region
    $region34: #{tpu_custom_call.1} parent=1 // pred_check
      _
    $region35: #{tpu_custom_call.1} parent=1 // pred_check_branch
      %78 = sbr.rel (0) target = $region37
    $region36: #{tpu_custom_call.1} parent=1 // pred_region
      %79 = dma.done [#allocation9], 6144
    $region37: #{tpu_custom_call.1} parent=1 // pred_fallthru
      _
    // Predicated region
    $region38: #{tpu_custom_call.1} parent=1 // pred_check
      _
    $region39: #{tpu_custom_call.1} parent=1 // pred_check_branch
      %81 = sbr.rel (0) target = $region41
    $region40: #{tpu_custom_call.1} parent=1 // pred_region
      %82 = dma.done [#allocation9], 16
    $region41: #{tpu_custom_call.1} parent=1 // pred_fallthru
      _
    %v84 = vld [vmem:[#allocation2] sm:$0xff]
    %v85 = vld [vmem:[#allocation2 + $0x8] sm:$0xff]
    %v86 = vld [vmem:[#allocation2 + $0x10] sm:$0xff]
    %v87 = vld [vmem:[#allocation2 + $0x18] sm:$0xff]
    %v88 = vld [vmem:[#allocation2 + $0x20] sm:$0xff]
    %v89 = vld [vmem:[#allocation2 + $0x28] sm:$0xff]
    %v90 = vld [vmem:[#allocation5] sm:$0xff]
    %v91 = vld [vmem:[#allocation5 + $0x8] sm:$0xff]
    %v92 = vld [vmem:[#allocation5 + $0x10] sm:$0xff]
    %v93 = vld [vmem:[#allocation5 + $0x18] sm:$0xff]
    %v94 = vld [vmem:[#allocation5 + $0x20] sm:$0xff]
    %v95 = vld [vmem:[#allocation5 + $0x28] sm:$0xff]
    %v96 = vld [vmem:[#allocation5 + $0x30] sm:$0xff]
    %v97 = vld [vmem:[#allocation5 + $0x38] sm:$0xff]
    %v98 = vld [vmem:[#allocation5 + $0x40] sm:$0xff]
    %v99 = vld [vmem:[#allocation5 + $0x48] sm:$0xff]
    %v100 = vld [vmem:[#allocation5 + $0x50] sm:$0xff]
    %v101 = vld [vmem:[#allocation5 + $0x58] sm:$0xff]
    %v102 = vld [vmem:[#allocation5 + $0x60] sm:$0xff]
    %v103 = vld [vmem:[#allocation5 + $0x68] sm:$0xff]
    %v104 = vld [vmem:[#allocation5 + $0x70] sm:$0xff]
    %v105 = vld [vmem:[#allocation5 + $0x78] sm:$0xff]
    %v106 = vld [vmem:[#allocation5 + $0x80] sm:$0xff]
    %v107 = vld [vmem:[#allocation5 + $0x88] sm:$0xff]
    %v108 = vld [vmem:[#allocation5 + $0x90] sm:$0xff]
    %v109 = vld [vmem:[#allocation5 + $0x98] sm:$0xff]
    %v110 = vld [vmem:[#allocation5 + $0xa0] sm:$0xff]
    %v111 = vld [vmem:[#allocation5 + $0xa8] sm:$0xff]
    %v112 = vld [vmem:[#allocation5 + $0xb0] sm:$0xff]
    %v113 = vld [vmem:[#allocation5 + $0xb8] sm:$0xff]
    %v114 = vld [vmem:[#allocation5 + $0xc0] sm:$0xff]
    %v115 = vld [vmem:[#allocation5 + $0xc8] sm:$0xff]
    %v116 = vld [vmem:[#allocation5 + $0xd0] sm:$0xff]
    %v117 = vld [vmem:[#allocation5 + $0xd8] sm:$0xff]
    %v118 = vld [vmem:[#allocation5 + $0xe0] sm:$0xff]
    %v119 = vld [vmem:[#allocation5 + $0xe8] sm:$0xff]
    %v120 = vld [vmem:[#allocation5 + $0xf0] sm:$0xff]
    %v121 = vld [vmem:[#allocation5 + $0xf8] sm:$0xff]
    %v122 = vld [vmem:[#allocation5 + $0x100] sm:$0xff]
    %v123 = vld [vmem:[#allocation5 + $0x108] sm:$0xff]
    %v124 = vld [vmem:[#allocation5 + $0x110] sm:$0xff]
    %v125 = vld [vmem:[#allocation5 + $0x118] sm:$0xff]
    %v126 = vld [vmem:[#allocation5 + $0x120] sm:$0xff]
    %v127 = vld [vmem:[#allocation5 + $0x128] sm:$0xff]
    %v128 = vld [vmem:[#allocation5 + $0x130] sm:$0xff]
    %v129 = vld [vmem:[#allocation5 + $0x138] sm:$0xff]
    %v130 = vld [vmem:[#allocation5 + $0x140] sm:$0xff]
    %v131 = vld [vmem:[#allocation5 + $0x148] sm:$0xff]
    %v132 = vld [vmem:[#allocation5 + $0x150] sm:$0xff]
    %v133 = vld [vmem:[#allocation5 + $0x158] sm:$0xff]
    %v134 = vld [vmem:[#allocation5 + $0x160] sm:$0xff]
    %v135 = vld [vmem:[#allocation5 + $0x168] sm:$0xff]
    %v136 = vld [vmem:[#allocation5 + $0x170] sm:$0xff]
    %v137 = vld [vmem:[#allocation5 + $0x178] sm:$0xff]
    %v138 = vld [vmem:[#allocation5 + $0x180] sm:$0xff]
    %v139 = vld [vmem:[#allocation5 + $0x188] sm:$0xff]
    %v140 = vld [vmem:[#allocation5 + $0x190] sm:$0xff]
    %v141 = vld [vmem:[#allocation5 + $0x198] sm:$0xff]
    %v142 = vld [vmem:[#allocation5 + $0x1a0] sm:$0xff]
    %v143 = vld [vmem:[#allocation5 + $0x1a8] sm:$0xff]
    %v144 = vld [vmem:[#allocation5 + $0x1b0] sm:$0xff]
    %v145 = vld [vmem:[#allocation5 + $0x1b8] sm:$0xff]
    %v146 = vld [vmem:[#allocation5 + $0x1c0] sm:$0xff]
    %v147 = vld [vmem:[#allocation5 + $0x1c8] sm:$0xff]
    %v148 = vld [vmem:[#allocation5 + $0x1d0] sm:$0xff]
    %v149 = vld [vmem:[#allocation5 + $0x1d8] sm:$0xff]
    %v150 = vld [vmem:[#allocation5 + $0x1e0] sm:$0xff]
    %v151 = vld [vmem:[#allocation5 + $0x1e8] sm:$0xff]
    %v152 = vld [vmem:[#allocation5 + $0x1f0] sm:$0xff]
    %v153 = vld [vmem:[#allocation5 + $0x1f8] sm:$0xff]
    %v154 = vld [vmem:[#allocation5 + $0x200] sm:$0xff]
    %v155 = vld [vmem:[#allocation5 + $0x208] sm:$0xff]
    %v156 = vld [vmem:[#allocation5 + $0x210] sm:$0xff]
    %v157 = vld [vmem:[#allocation5 + $0x218] sm:$0xff]
    %v158 = vld [vmem:[#allocation5 + $0x220] sm:$0xff]
    %v159 = vld [vmem:[#allocation5 + $0x228] sm:$0xff]
    %v160 = vld [vmem:[#allocation5 + $0x230] sm:$0xff]
    %v161 = vld [vmem:[#allocation5 + $0x238] sm:$0xff]
    %v162 = vld [vmem:[#allocation5 + $0x240] sm:$0xff]
    %v163 = vld [vmem:[#allocation5 + $0x248] sm:$0xff]
    %v164 = vld [vmem:[#allocation5 + $0x250] sm:$0xff]
    %v165 = vld [vmem:[#allocation5 + $0x258] sm:$0xff]
    %v166 = vld [vmem:[#allocation5 + $0x260] sm:$0xff]
    %v167 = vld [vmem:[#allocation5 + $0x268] sm:$0xff]
    %v168 = vld [vmem:[#allocation5 + $0x270] sm:$0xff]
    %v169 = vld [vmem:[#allocation5 + $0x278] sm:$0xff]
    %v170 = vld [vmem:[#allocation5 + $0x280] sm:$0xff]
    %v171 = vld [vmem:[#allocation5 + $0x288] sm:$0xff]
    %v172 = vld [vmem:[#allocation5 + $0x290] sm:$0xff]
    %v173 = vld [vmem:[#allocation5 + $0x298] sm:$0xff]
    %v174 = vld [vmem:[#allocation5 + $0x2a0] sm:$0xff]
    %v175 = vld [vmem:[#allocation5 + $0x2a8] sm:$0xff]
    %v176 = vld [vmem:[#allocation5 + $0x2b0] sm:$0xff]
    %v177 = vld [vmem:[#allocation5 + $0x2b8] sm:$0xff]
    %v178 = vld [vmem:[#allocation5 + $0x2c0] sm:$0xff]
    %v179 = vld [vmem:[#allocation5 + $0x2c8] sm:$0xff]
    %v180 = vld [vmem:[#allocation5 + $0x2d0] sm:$0xff]
    %v181 = vld [vmem:[#allocation5 + $0x2d8] sm:$0xff]
    %v182 = vld [vmem:[#allocation5 + $0x2e0] sm:$0xff]
    %v183 = vld [vmem:[#allocation5 + $0x2e8] sm:$0xff]
    %v184 = vld [vmem:[#allocation5 + $0x2f0] sm:$0xff]
    %v185 = vld [vmem:[#allocation5 + $0x2f8] sm:$0xff]
    %v186 = vld [vmem:[#allocation5 + $0x300] sm:$0xff]
    %v187 = vld [vmem:[#allocation5 + $0x308] sm:$0xff]
    %v188 = vld [vmem:[#allocation5 + $0x310] sm:$0xff]
    %v189 = vld [vmem:[#allocation5 + $0x318] sm:$0xff]
    %v190 = vld [vmem:[#allocation5 + $0x320] sm:$0xff]
    %v191 = vld [vmem:[#allocation5 + $0x328] sm:$0xff]
    %v192 = vld [vmem:[#allocation5 + $0x330] sm:$0xff]
    %v193 = vld [vmem:[#allocation5 + $0x338] sm:$0xff]
    %v194 = vld [vmem:[#allocation5 + $0x340] sm:$0xff]
    %v195 = vld [vmem:[#allocation5 + $0x348] sm:$0xff]
    %v196 = vld [vmem:[#allocation5 + $0x350] sm:$0xff]
    %v197 = vld [vmem:[#allocation5 + $0x358] sm:$0xff]
    %v198 = vld [vmem:[#allocation5 + $0x360] sm:$0xff]
    %v199 = vld [vmem:[#allocation5 + $0x368] sm:$0xff]
    %v200 = vld [vmem:[#allocation5 + $0x370] sm:$0xff]
    %v201 = vld [vmem:[#allocation5 + $0x378] sm:$0xff]
    %v202 = vld [vmem:[#allocation5 + $0x380] sm:$0xff]
    %v203 = vld [vmem:[#allocation5 + $0x388] sm:$0xff]
    %v204 = vld [vmem:[#allocation5 + $0x390] sm:$0xff]
    %v205 = vld [vmem:[#allocation5 + $0x398] sm:$0xff]
    %v206 = vld [vmem:[#allocation5 + $0x3a0] sm:$0xff]
    %v207 = vld [vmem:[#allocation5 + $0x3a8] sm:$0xff]
    %v208 = vld [vmem:[#allocation5 + $0x3b0] sm:$0xff]
    %v209 = vld [vmem:[#allocation5 + $0x3b8] sm:$0xff]
    %v210 = vld [vmem:[#allocation5 + $0x3c0] sm:$0xff]
    %v211 = vld [vmem:[#allocation5 + $0x3c8] sm:$0xff]
    %v212 = vld [vmem:[#allocation5 + $0x3d0] sm:$0xff]
    %v213 = vld [vmem:[#allocation5 + $0x3d8] sm:$0xff]
    %v214 = vld [vmem:[#allocation5 + $0x3e0] sm:$0xff]
    %v215 = vld [vmem:[#allocation5 + $0x3e8] sm:$0xff]
    %v216 = vld [vmem:[#allocation5 + $0x3f0] sm:$0xff]
    %v217 = vld [vmem:[#allocation5 + $0x3f8] sm:$0xff]
    %v218 = vld [vmem:[#allocation5 + $0x400] sm:$0xff]
    %v219 = vld [vmem:[#allocation5 + $0x408] sm:$0xff]
    %v220 = vld [vmem:[#allocation5 + $0x410] sm:$0xff]
    %v221 = vld [vmem:[#allocation5 + $0x418] sm:$0xff]
    %v222 = vld [vmem:[#allocation5 + $0x420] sm:$0xff]
    %v223 = vld [vmem:[#allocation5 + $0x428] sm:$0xff]
    %v224 = vld [vmem:[#allocation5 + $0x430] sm:$0xff]
    %v225 = vld [vmem:[#allocation5 + $0x438] sm:$0xff]
    %v226 = vld [vmem:[#allocation5 + $0x440] sm:$0xff]
    %v227 = vld [vmem:[#allocation5 + $0x448] sm:$0xff]
    %v228 = vld [vmem:[#allocation5 + $0x450] sm:$0xff]
    %v229 = vld [vmem:[#allocation5 + $0x458] sm:$0xff]
    %v230 = vld [vmem:[#allocation5 + $0x460] sm:$0xff]
    %v231 = vld [vmem:[#allocation5 + $0x468] sm:$0xff]
    %v232 = vld [vmem:[#allocation5 + $0x470] sm:$0xff]
    %v233 = vld [vmem:[#allocation5 + $0x478] sm:$0xff]
    %v234 = vld [vmem:[#allocation5 + $0x480] sm:$0xff]
    %v235 = vld [vmem:[#allocation5 + $0x488] sm:$0xff]
    %v236 = vld [vmem:[#allocation5 + $0x490] sm:$0xff]
    %v237 = vld [vmem:[#allocation5 + $0x498] sm:$0xff]
    %v238 = vld [vmem:[#allocation5 + $0x4a0] sm:$0xff]
    %v239 = vld [vmem:[#allocation5 + $0x4a8] sm:$0xff]
    %v240 = vld [vmem:[#allocation5 + $0x4b0] sm:$0xff]
    %v241 = vld [vmem:[#allocation5 + $0x4b8] sm:$0xff]
    %v242 = vld [vmem:[#allocation5 + $0x4c0] sm:$0xff]
    %v243 = vld [vmem:[#allocation5 + $0x4c8] sm:$0xff]
    %v244 = vld [vmem:[#allocation5 + $0x4d0] sm:$0xff]
    %v245 = vld [vmem:[#allocation5 + $0x4d8] sm:$0xff]
    %v246 = vld [vmem:[#allocation5 + $0x4e0] sm:$0xff]
    %v247 = vld [vmem:[#allocation5 + $0x4e8] sm:$0xff]
    %v248 = vld [vmem:[#allocation5 + $0x4f0] sm:$0xff]
    %v249 = vld [vmem:[#allocation5 + $0x4f8] sm:$0xff]
    %v250 = vld [vmem:[#allocation5 + $0x500] sm:$0xff]
    %v251 = vld [vmem:[#allocation5 + $0x508] sm:$0xff]
    %v252 = vld [vmem:[#allocation5 + $0x510] sm:$0xff]
    %v253 = vld [vmem:[#allocation5 + $0x518] sm:$0xff]
    %v254 = vld [vmem:[#allocation5 + $0x520] sm:$0xff]
    %v255 = vld [vmem:[#allocation5 + $0x528] sm:$0xff]
    %v256 = vld [vmem:[#allocation5 + $0x530] sm:$0xff]
    %v257 = vld [vmem:[#allocation5 + $0x538] sm:$0xff]
    %v258 = vld [vmem:[#allocation5 + $0x540] sm:$0xff]
    %v259 = vld [vmem:[#allocation5 + $0x548] sm:$0xff]
    %v260 = vld [vmem:[#allocation5 + $0x550] sm:$0xff]
    %v261 = vld [vmem:[#allocation5 + $0x558] sm:$0xff]
    %v262 = vld [vmem:[#allocation5 + $0x560] sm:$0xff]
    %v263 = vld [vmem:[#allocation5 + $0x568] sm:$0xff]
    %v264 = vld [vmem:[#allocation5 + $0x570] sm:$0xff]
    %v265 = vld [vmem:[#allocation5 + $0x578] sm:$0xff]
    %v266 = vld [vmem:[#allocation5 + $0x580] sm:$0xff]
    %v267 = vld [vmem:[#allocation5 + $0x588] sm:$0xff]
    %v268 = vld [vmem:[#allocation5 + $0x590] sm:$0xff]
    %v269 = vld [vmem:[#allocation5 + $0x598] sm:$0xff]
    %v270 = vld [vmem:[#allocation5 + $0x5a0] sm:$0xff]
    %v271 = vld [vmem:[#allocation5 + $0x5a8] sm:$0xff]
    %v272 = vld [vmem:[#allocation5 + $0x5b0] sm:$0xff]
    %v273 = vld [vmem:[#allocation5 + $0x5b8] sm:$0xff]
    %v274 = vld [vmem:[#allocation5 + $0x5c0] sm:$0xff]
    %v275 = vld [vmem:[#allocation5 + $0x5c8] sm:$0xff]
    %v276 = vld [vmem:[#allocation5 + $0x5d0] sm:$0xff]
    %v277 = vld [vmem:[#allocation5 + $0x5d8] sm:$0xff]
    %v278 = vld [vmem:[#allocation5 + $0x5e0] sm:$0xff]
    %v279 = vld [vmem:[#allocation5 + $0x5e8] sm:$0xff]
    %v280 = vld [vmem:[#allocation5 + $0x5f0] sm:$0xff]
    %v281 = vld [vmem:[#allocation5 + $0x5f8] sm:$0xff]
    %v282 = vld [vmem:[#allocation5 + $0x600] sm:$0xff]
    %v283 = vld [vmem:[#allocation5 + $0x608] sm:$0xff]
    %v284 = vld [vmem:[#allocation5 + $0x610] sm:$0xff]
    %v285 = vld [vmem:[#allocation5 + $0x618] sm:$0xff]
    %v286 = vld [vmem:[#allocation5 + $0x620] sm:$0xff]
    %v287 = vld [vmem:[#allocation5 + $0x628] sm:$0xff]
    %v288 = vld [vmem:[#allocation5 + $0x630] sm:$0xff]
    %v289 = vld [vmem:[#allocation5 + $0x638] sm:$0xff]
    %v290 = vld [vmem:[#allocation5 + $0x640] sm:$0xff]
    %v291 = vld [vmem:[#allocation5 + $0x648] sm:$0xff]
    %v292 = vld [vmem:[#allocation5 + $0x650] sm:$0xff]
    %v293 = vld [vmem:[#allocation5 + $0x658] sm:$0xff]
    %v294 = vld [vmem:[#allocation5 + $0x660] sm:$0xff]
    %v295 = vld [vmem:[#allocation5 + $0x668] sm:$0xff]
    %v296 = vld [vmem:[#allocation5 + $0x670] sm:$0xff]
    %v297 = vld [vmem:[#allocation5 + $0x678] sm:$0xff]
    %v298 = vld [vmem:[#allocation5 + $0x680] sm:$0xff]
    %v299 = vld [vmem:[#allocation5 + $0x688] sm:$0xff]
    %v300 = vld [vmem:[#allocation5 + $0x690] sm:$0xff]
    %v301 = vld [vmem:[#allocation5 + $0x698] sm:$0xff]
    %v302 = vld [vmem:[#allocation5 + $0x6a0] sm:$0xff]
    %v303 = vld [vmem:[#allocation5 + $0x6a8] sm:$0xff]
    %v304 = vld [vmem:[#allocation5 + $0x6b0] sm:$0xff]
    %v305 = vld [vmem:[#allocation5 + $0x6b8] sm:$0xff]
    %v306 = vld [vmem:[#allocation5 + $0x6c0] sm:$0xff]
    %v307 = vld [vmem:[#allocation5 + $0x6c8] sm:$0xff]
    %v308 = vld [vmem:[#allocation5 + $0x6d0] sm:$0xff]
    %v309 = vld [vmem:[#allocation5 + $0x6d8] sm:$0xff]
    %v310 = vld [vmem:[#allocation5 + $0x6e0] sm:$0xff]
    %v311 = vld [vmem:[#allocation5 + $0x6e8] sm:$0xff]
    %v312 = vld [vmem:[#allocation5 + $0x6f0] sm:$0xff]
    %v313 = vld [vmem:[#allocation5 + $0x6f8] sm:$0xff]
    %v314 = vld [vmem:[#allocation5 + $0x700] sm:$0xff]
    %v315 = vld [vmem:[#allocation5 + $0x708] sm:$0xff]
    %v316 = vld [vmem:[#allocation5 + $0x710] sm:$0xff]
    %v317 = vld [vmem:[#allocation5 + $0x718] sm:$0xff]
    %v318 = vld [vmem:[#allocation5 + $0x720] sm:$0xff]
    %v319 = vld [vmem:[#allocation5 + $0x728] sm:$0xff]
    %v320 = vld [vmem:[#allocation5 + $0x730] sm:$0xff]
    %v321 = vld [vmem:[#allocation5 + $0x738] sm:$0xff]
    %v322 = vld [vmem:[#allocation5 + $0x740] sm:$0xff]
    %v323 = vld [vmem:[#allocation5 + $0x748] sm:$0xff]
    %v324 = vld [vmem:[#allocation5 + $0x750] sm:$0xff]
    %v325 = vld [vmem:[#allocation5 + $0x758] sm:$0xff]
    %v326 = vld [vmem:[#allocation5 + $0x760] sm:$0xff]
    %v327 = vld [vmem:[#allocation5 + $0x768] sm:$0xff]
    %v328 = vld [vmem:[#allocation5 + $0x770] sm:$0xff]
    %v329 = vld [vmem:[#allocation5 + $0x778] sm:$0xff]
    %v330 = vld [vmem:[#allocation5 + $0x780] sm:$0xff]
    %v331 = vld [vmem:[#allocation5 + $0x788] sm:$0xff]
    %v332 = vld [vmem:[#allocation5 + $0x790] sm:$0xff]
    %v333 = vld [vmem:[#allocation5 + $0x798] sm:$0xff]
    %v334 = vld [vmem:[#allocation5 + $0x7a0] sm:$0xff]
    %v335 = vld [vmem:[#allocation5 + $0x7a8] sm:$0xff]
    %v336 = vld [vmem:[#allocation5 + $0x7b0] sm:$0xff]
    %v337 = vld [vmem:[#allocation5 + $0x7b8] sm:$0xff]
    %v338 = vld [vmem:[#allocation5 + $0x7c0] sm:$0xff]
    %v339 = vld [vmem:[#allocation5 + $0x7c8] sm:$0xff]
    %v340 = vld [vmem:[#allocation5 + $0x7d0] sm:$0xff]
    %v341 = vld [vmem:[#allocation5 + $0x7d8] sm:$0xff]
    %v342 = vld [vmem:[#allocation5 + $0x7e0] sm:$0xff]
    %v343 = vld [vmem:[#allocation5 + $0x7e8] sm:$0xff]
    %v344 = vld [vmem:[#allocation5 + $0x7f0] sm:$0xff]
    %v345 = vld [vmem:[#allocation5 + $0x7f8] sm:$0xff]
    %v346 = vld [vmem:[#allocation5 + $0x800] sm:$0xff]
    %v347 = vld [vmem:[#allocation5 + $0x808] sm:$0xff]
    %v348 = vld [vmem:[#allocation5 + $0x810] sm:$0xff]
    %v349 = vld [vmem:[#allocation5 + $0x818] sm:$0xff]
    %v350 = vld [vmem:[#allocation5 + $0x820] sm:$0xff]
    %v351 = vld [vmem:[#allocation5 + $0x828] sm:$0xff]
    %v352 = vld [vmem:[#allocation5 + $0x830] sm:$0xff]
    %v353 = vld [vmem:[#allocation5 + $0x838] sm:$0xff]
    %v354 = vld [vmem:[#allocation5 + $0x840] sm:$0xff]
    %v355 = vld [vmem:[#allocation5 + $0x848] sm:$0xff]
    %v356 = vld [vmem:[#allocation5 + $0x850] sm:$0xff]
    %v357 = vld [vmem:[#allocation5 + $0x858] sm:$0xff]
    %v358 = vld [vmem:[#allocation5 + $0x860] sm:$0xff]
    %v359 = vld [vmem:[#allocation5 + $0x868] sm:$0xff]
    %v360 = vld [vmem:[#allocation5 + $0x870] sm:$0xff]
    %v361 = vld [vmem:[#allocation5 + $0x878] sm:$0xff]
    %v362 = vld [vmem:[#allocation5 + $0x880] sm:$0xff]
    %v363 = vld [vmem:[#allocation5 + $0x888] sm:$0xff]
    %v364 = vld [vmem:[#allocation5 + $0x890] sm:$0xff]
    %v365 = vld [vmem:[#allocation5 + $0x898] sm:$0xff]
    %v366 = vld [vmem:[#allocation5 + $0x8a0] sm:$0xff]
    %v367 = vld [vmem:[#allocation5 + $0x8a8] sm:$0xff]
    %v368 = vld [vmem:[#allocation5 + $0x8b0] sm:$0xff]
    %v369 = vld [vmem:[#allocation5 + $0x8b8] sm:$0xff]
    %v370 = vld [vmem:[#allocation5 + $0x8c0] sm:$0xff]
    %v371 = vld [vmem:[#allocation5 + $0x8c8] sm:$0xff]
    %v372 = vld [vmem:[#allocation5 + $0x8d0] sm:$0xff]
    %v373 = vld [vmem:[#allocation5 + $0x8d8] sm:$0xff]
    %v374 = vld [vmem:[#allocation5 + $0x8e0] sm:$0xff]
    %v375 = vld [vmem:[#allocation5 + $0x8e8] sm:$0xff]
    %v376 = vld [vmem:[#allocation5 + $0x8f0] sm:$0xff]
    %v377 = vld [vmem:[#allocation5 + $0x8f8] sm:$0xff]
    %v378 = vld [vmem:[#allocation5 + $0x900] sm:$0xff]
    %v379 = vld [vmem:[#allocation5 + $0x908] sm:$0xff]
    %v380 = vld [vmem:[#allocation5 + $0x910] sm:$0xff]
    %v381 = vld [vmem:[#allocation5 + $0x918] sm:$0xff]
    %v382 = vld [vmem:[#allocation5 + $0x920] sm:$0xff]
    %v383 = vld [vmem:[#allocation5 + $0x928] sm:$0xff]
    %v384 = vld [vmem:[#allocation5 + $0x930] sm:$0xff]
    %v385 = vld [vmem:[#allocation5 + $0x938] sm:$0xff]
    %v386 = vld [vmem:[#allocation5 + $0x940] sm:$0xff]
    %v387 = vld [vmem:[#allocation5 + $0x948] sm:$0xff]
    %v388 = vld [vmem:[#allocation5 + $0x950] sm:$0xff]
    %v389 = vld [vmem:[#allocation5 + $0x958] sm:$0xff]
    %v390 = vld [vmem:[#allocation5 + $0x960] sm:$0xff]
    %v391 = vld [vmem:[#allocation5 + $0x968] sm:$0xff]
    %v392 = vld [vmem:[#allocation5 + $0x970] sm:$0xff]
    %v393 = vld [vmem:[#allocation5 + $0x978] sm:$0xff]
    %v394 = vld [vmem:[#allocation5 + $0x980] sm:$0xff]
    %v395 = vld [vmem:[#allocation5 + $0x988] sm:$0xff]
    %v396 = vld [vmem:[#allocation5 + $0x990] sm:$0xff]
    %v397 = vld [vmem:[#allocation5 + $0x998] sm:$0xff]
    %v398 = vld [vmem:[#allocation5 + $0x9a0] sm:$0xff]
    %v399 = vld [vmem:[#allocation5 + $0x9a8] sm:$0xff]
    %v400 = vld [vmem:[#allocation5 + $0x9b0] sm:$0xff]
    %v401 = vld [vmem:[#allocation5 + $0x9b8] sm:$0xff]
    %v402 = vld [vmem:[#allocation5 + $0x9c0] sm:$0xff]
    %v403 = vld [vmem:[#allocation5 + $0x9c8] sm:$0xff]
    %v404 = vld [vmem:[#allocation5 + $0x9d0] sm:$0xff]
    %v405 = vld [vmem:[#allocation5 + $0x9d8] sm:$0xff]
    %v406 = vld [vmem:[#allocation5 + $0x9e0] sm:$0xff]
    %v407 = vld [vmem:[#allocation5 + $0x9e8] sm:$0xff]
    %v408 = vld [vmem:[#allocation5 + $0x9f0] sm:$0xff]
    %v409 = vld [vmem:[#allocation5 + $0x9f8] sm:$0xff]
    %v410 = vld [vmem:[#allocation5 + $0xa00] sm:$0xff]
    %v411 = vld [vmem:[#allocation5 + $0xa08] sm:$0xff]
    %v412 = vld [vmem:[#allocation5 + $0xa10] sm:$0xff]
    %v413 = vld [vmem:[#allocation5 + $0xa18] sm:$0xff]
    %v414 = vld [vmem:[#allocation5 + $0xa20] sm:$0xff]
    %v415 = vld [vmem:[#allocation5 + $0xa28] sm:$0xff]
    %v416 = vld [vmem:[#allocation5 + $0xa30] sm:$0xff]
    %v417 = vld [vmem:[#allocation5 + $0xa38] sm:$0xff]
    %v418 = vld [vmem:[#allocation5 + $0xa40] sm:$0xff]
    %v419 = vld [vmem:[#allocation5 + $0xa48] sm:$0xff]
    %v420 = vld [vmem:[#allocation5 + $0xa50] sm:$0xff]
    %v421 = vld [vmem:[#allocation5 + $0xa58] sm:$0xff]
    %v422 = vld [vmem:[#allocation5 + $0xa60] sm:$0xff]
    %v423 = vld [vmem:[#allocation5 + $0xa68] sm:$0xff]
    %v424 = vld [vmem:[#allocation5 + $0xa70] sm:$0xff]
    %v425 = vld [vmem:[#allocation5 + $0xa78] sm:$0xff]
    %v426 = vld [vmem:[#allocation5 + $0xa80] sm:$0xff]
    %v427 = vld [vmem:[#allocation5 + $0xa88] sm:$0xff]
    %v428 = vld [vmem:[#allocation5 + $0xa90] sm:$0xff]
    %v429 = vld [vmem:[#allocation5 + $0xa98] sm:$0xff]
    %v430 = vld [vmem:[#allocation5 + $0xaa0] sm:$0xff]
    %v431 = vld [vmem:[#allocation5 + $0xaa8] sm:$0xff]
    %v432 = vld [vmem:[#allocation5 + $0xab0] sm:$0xff]
    %v433 = vld [vmem:[#allocation5 + $0xab8] sm:$0xff]
    %v434 = vld [vmem:[#allocation5 + $0xac0] sm:$0xff]
    %v435 = vld [vmem:[#allocation5 + $0xac8] sm:$0xff]
    %v436 = vld [vmem:[#allocation5 + $0xad0] sm:$0xff]
    %v437 = vld [vmem:[#allocation5 + $0xad8] sm:$0xff]
    %v438 = vld [vmem:[#allocation5 + $0xae0] sm:$0xff]
    %v439 = vld [vmem:[#allocation5 + $0xae8] sm:$0xff]
    %v440 = vld [vmem:[#allocation5 + $0xaf0] sm:$0xff]
    %v441 = vld [vmem:[#allocation5 + $0xaf8] sm:$0xff]
    %v442 = vld [vmem:[#allocation5 + $0xb00] sm:$0xff]
    %v443 = vld [vmem:[#allocation5 + $0xb08] sm:$0xff]
    %v444 = vld [vmem:[#allocation5 + $0xb10] sm:$0xff]
    %v445 = vld [vmem:[#allocation5 + $0xb18] sm:$0xff]
    %v446 = vld [vmem:[#allocation5 + $0xb20] sm:$0xff]
    %v447 = vld [vmem:[#allocation5 + $0xb28] sm:$0xff]
    %v448 = vld [vmem:[#allocation5 + $0xb30] sm:$0xff]
    %v449 = vld [vmem:[#allocation5 + $0xb38] sm:$0xff]
    %v450 = vld [vmem:[#allocation5 + $0xb40] sm:$0xff]
    %v451 = vld [vmem:[#allocation5 + $0xb48] sm:$0xff]
    %v452 = vld [vmem:[#allocation5 + $0xb50] sm:$0xff]
    %v453 = vld [vmem:[#allocation5 + $0xb58] sm:$0xff]
    %v454 = vld [vmem:[#allocation5 + $0xb60] sm:$0xff]
    %v455 = vld [vmem:[#allocation5 + $0xb68] sm:$0xff]
    %v456 = vld [vmem:[#allocation5 + $0xb70] sm:$0xff]
    %v457 = vld [vmem:[#allocation5 + $0xb78] sm:$0xff]
    %v458 = vld [vmem:[#allocation5 + $0xb80] sm:$0xff]
    %v459 = vld [vmem:[#allocation5 + $0xb88] sm:$0xff]
    %v460 = vld [vmem:[#allocation5 + $0xb90] sm:$0xff]
    %v461 = vld [vmem:[#allocation5 + $0xb98] sm:$0xff]
    %v462 = vld [vmem:[#allocation5 + $0xba0] sm:$0xff]
    %v463 = vld [vmem:[#allocation5 + $0xba8] sm:$0xff]
    %v464 = vld [vmem:[#allocation5 + $0xbb0] sm:$0xff]
    %v465 = vld [vmem:[#allocation5 + $0xbb8] sm:$0xff]
    %v466 = vld [vmem:[#allocation5 + $0xbc0] sm:$0xff]
    %v467 = vld [vmem:[#allocation5 + $0xbc8] sm:$0xff]
    %v468 = vld [vmem:[#allocation5 + $0xbd0] sm:$0xff]
    %v469 = vld [vmem:[#allocation5 + $0xbd8] sm:$0xff]
    %v470 = vld [vmem:[#allocation5 + $0xbe0] sm:$0xff]
    %v471 = vld [vmem:[#allocation5 + $0xbe8] sm:$0xff]
    %v472 = vld [vmem:[#allocation5 + $0xbf0] sm:$0xff]
    %v473 = vld [vmem:[#allocation5 + $0xbf8] sm:$0xff]
    %v474 = vld [vmem:[#allocation5 + $0xc00] sm:$0xff]
    %v475 = vld [vmem:[#allocation5 + $0xc08] sm:$0xff]
    %v476 = vld [vmem:[#allocation5 + $0xc10] sm:$0xff]
    %v477 = vld [vmem:[#allocation5 + $0xc18] sm:$0xff]
    %v478 = vld [vmem:[#allocation5 + $0xc20] sm:$0xff]
    %v479 = vld [vmem:[#allocation5 + $0xc28] sm:$0xff]
    %v480 = vld [vmem:[#allocation5 + $0xc30] sm:$0xff]
    %v481 = vld [vmem:[#allocation5 + $0xc38] sm:$0xff]
    %v482 = vld [vmem:[#allocation5 + $0xc40] sm:$0xff]
    %v483 = vld [vmem:[#allocation5 + $0xc48] sm:$0xff]
    %v484 = vld [vmem:[#allocation5 + $0xc50] sm:$0xff]
    %v485 = vld [vmem:[#allocation5 + $0xc58] sm:$0xff]
    %v486 = vld [vmem:[#allocation5 + $0xc60] sm:$0xff]
    %v487 = vld [vmem:[#allocation5 + $0xc68] sm:$0xff]
    %v488 = vld [vmem:[#allocation5 + $0xc70] sm:$0xff]
    %v489 = vld [vmem:[#allocation5 + $0xc78] sm:$0xff]
    %v490 = vld [vmem:[#allocation5 + $0xc80] sm:$0xff]
    %v491 = vld [vmem:[#allocation5 + $0xc88] sm:$0xff]
    %v492 = vld [vmem:[#allocation5 + $0xc90] sm:$0xff]
    %v493 = vld [vmem:[#allocation5 + $0xc98] sm:$0xff]
    %v494 = vld [vmem:[#allocation5 + $0xca0] sm:$0xff]
    %v495 = vld [vmem:[#allocation5 + $0xca8] sm:$0xff]
    %v496 = vld [vmem:[#allocation5 + $0xcb0] sm:$0xff]
    %v497 = vld [vmem:[#allocation5 + $0xcb8] sm:$0xff]
    %v498 = vld [vmem:[#allocation5 + $0xcc0] sm:$0xff]
    %v499 = vld [vmem:[#allocation5 + $0xcc8] sm:$0xff]
    %v500 = vld [vmem:[#allocation5 + $0xcd0] sm:$0xff]
    %v501 = vld [vmem:[#allocation5 + $0xcd8] sm:$0xff]
    %v502 = vld [vmem:[#allocation5 + $0xce0] sm:$0xff]
    %v503 = vld [vmem:[#allocation5 + $0xce8] sm:$0xff]
    %v504 = vld [vmem:[#allocation5 + $0xcf0] sm:$0xff]
    %v505 = vld [vmem:[#allocation5 + $0xcf8] sm:$0xff]
    %v506 = vld [vmem:[#allocation5 + $0xd00] sm:$0xff]
    %v507 = vld [vmem:[#allocation5 + $0xd08] sm:$0xff]
    %v508 = vld [vmem:[#allocation5 + $0xd10] sm:$0xff]
    %v509 = vld [vmem:[#allocation5 + $0xd18] sm:$0xff]
    %v510 = vld [vmem:[#allocation5 + $0xd20] sm:$0xff]
    %v511 = vld [vmem:[#allocation5 + $0xd28] sm:$0xff]
    %v512 = vld [vmem:[#allocation5 + $0xd30] sm:$0xff]
    %v513 = vld [vmem:[#allocation5 + $0xd38] sm:$0xff]
    %v514 = vld [vmem:[#allocation5 + $0xd40] sm:$0xff]
    %v515 = vld [vmem:[#allocation5 + $0xd48] sm:$0xff]
    %v516 = vld [vmem:[#allocation5 + $0xd50] sm:$0xff]
    %v517 = vld [vmem:[#allocation5 + $0xd58] sm:$0xff]
    %v518 = vld [vmem:[#allocation5 + $0xd60] sm:$0xff]
    %v519 = vld [vmem:[#allocation5 + $0xd68] sm:$0xff]
    %v520 = vld [vmem:[#allocation5 + $0xd70] sm:$0xff]
    %v521 = vld [vmem:[#allocation5 + $0xd78] sm:$0xff]
    %v522 = vld [vmem:[#allocation5 + $0xd80] sm:$0xff]
    %v523 = vld [vmem:[#allocation5 + $0xd88] sm:$0xff]
    %v524 = vld [vmem:[#allocation5 + $0xd90] sm:$0xff]
    %v525 = vld [vmem:[#allocation5 + $0xd98] sm:$0xff]
    %v526 = vld [vmem:[#allocation5 + $0xda0] sm:$0xff]
    %v527 = vld [vmem:[#allocation5 + $0xda8] sm:$0xff]
    %v528 = vld [vmem:[#allocation5 + $0xdb0] sm:$0xff]
    %v529 = vld [vmem:[#allocation5 + $0xdb8] sm:$0xff]
    %v530 = vld [vmem:[#allocation5 + $0xdc0] sm:$0xff]
    %v531 = vld [vmem:[#allocation5 + $0xdc8] sm:$0xff]
    %v532 = vld [vmem:[#allocation5 + $0xdd0] sm:$0xff]
    %v533 = vld [vmem:[#allocation5 + $0xdd8] sm:$0xff]
    %v534 = vld [vmem:[#allocation5 + $0xde0] sm:$0xff]
    %v535 = vld [vmem:[#allocation5 + $0xde8] sm:$0xff]
    %v536 = vld [vmem:[#allocation5 + $0xdf0] sm:$0xff]
    %v537 = vld [vmem:[#allocation5 + $0xdf8] sm:$0xff]
    %v538 = vld [vmem:[#allocation5 + $0xe00] sm:$0xff]
    %v539 = vld [vmem:[#allocation5 + $0xe08] sm:$0xff]
    %v540 = vld [vmem:[#allocation5 + $0xe10] sm:$0xff]
    %v541 = vld [vmem:[#allocation5 + $0xe18] sm:$0xff]
    %v542 = vld [vmem:[#allocation5 + $0xe20] sm:$0xff]
    %v543 = vld [vmem:[#allocation5 + $0xe28] sm:$0xff]
    %v544 = vld [vmem:[#allocation5 + $0xe30] sm:$0xff]
    %v545 = vld [vmem:[#allocation5 + $0xe38] sm:$0xff]
    %v546 = vld [vmem:[#allocation5 + $0xe40] sm:$0xff]
    %v547 = vld [vmem:[#allocation5 + $0xe48] sm:$0xff]
    %v548 = vld [vmem:[#allocation5 + $0xe50] sm:$0xff]
    %v549 = vld [vmem:[#allocation5 + $0xe58] sm:$0xff]
    %v550 = vld [vmem:[#allocation5 + $0xe60] sm:$0xff]
    %v551 = vld [vmem:[#allocation5 + $0xe68] sm:$0xff]
    %v552 = vld [vmem:[#allocation5 + $0xe70] sm:$0xff]
    %v553 = vld [vmem:[#allocation5 + $0xe78] sm:$0xff]
    %v554 = vld [vmem:[#allocation5 + $0xe80] sm:$0xff]
    %v555 = vld [vmem:[#allocation5 + $0xe88] sm:$0xff]
    %v556 = vld [vmem:[#allocation5 + $0xe90] sm:$0xff]
    %v557 = vld [vmem:[#allocation5 + $0xe98] sm:$0xff]
    %v558 = vld [vmem:[#allocation5 + $0xea0] sm:$0xff]
    %v559 = vld [vmem:[#allocation5 + $0xea8] sm:$0xff]
    %v560 = vld [vmem:[#allocation5 + $0xeb0] sm:$0xff]
    %v561 = vld [vmem:[#allocation5 + $0xeb8] sm:$0xff]
    %v562 = vld [vmem:[#allocation5 + $0xec0] sm:$0xff]
    %v563 = vld [vmem:[#allocation5 + $0xec8] sm:$0xff]
    %v564 = vld [vmem:[#allocation5 + $0xed0] sm:$0xff]
    %v565 = vld [vmem:[#allocation5 + $0xed8] sm:$0xff]
    %v566 = vld [vmem:[#allocation5 + $0xee0] sm:$0xff]
    %v567 = vld [vmem:[#allocation5 + $0xee8] sm:$0xff]
    %v568 = vld [vmem:[#allocation5 + $0xef0] sm:$0xff]
    %v569 = vld [vmem:[#allocation5 + $0xef8] sm:$0xff]
    %v570 = vld [vmem:[#allocation5 + $0xf00] sm:$0xff]
    %v571 = vld [vmem:[#allocation5 + $0xf08] sm:$0xff]
    %v572 = vld [vmem:[#allocation5 + $0xf10] sm:$0xff]
    %v573 = vld [vmem:[#allocation5 + $0xf18] sm:$0xff]
    %v574 = vld [vmem:[#allocation5 + $0xf20] sm:$0xff]
    %v575 = vld [vmem:[#allocation5 + $0xf28] sm:$0xff]
    %v576 = vld [vmem:[#allocation5 + $0xf30] sm:$0xff]
    %v577 = vld [vmem:[#allocation5 + $0xf38] sm:$0xff]
    %v578 = vld [vmem:[#allocation5 + $0xf40] sm:$0xff]
    %v579 = vld [vmem:[#allocation5 + $0xf48] sm:$0xff]
    %v580 = vld [vmem:[#allocation5 + $0xf50] sm:$0xff]
    %v581 = vld [vmem:[#allocation5 + $0xf58] sm:$0xff]
    %v582 = vld [vmem:[#allocation5 + $0xf60] sm:$0xff]
    %v583 = vld [vmem:[#allocation5 + $0xf68] sm:$0xff]
    %v584 = vld [vmem:[#allocation5 + $0xf70] sm:$0xff]
    %v585 = vld [vmem:[#allocation5 + $0xf78] sm:$0xff]
    %v586 = vld [vmem:[#allocation5 + $0xf80] sm:$0xff]
    %v587 = vld [vmem:[#allocation5 + $0xf88] sm:$0xff]
    %v588 = vld [vmem:[#allocation5 + $0xf90] sm:$0xff]
    %v589 = vld [vmem:[#allocation5 + $0xf98] sm:$0xff]
    %v590 = vld [vmem:[#allocation5 + $0xfa0] sm:$0xff]
    %v591 = vld [vmem:[#allocation5 + $0xfa8] sm:$0xff]
    %v592 = vld [vmem:[#allocation5 + $0xfb0] sm:$0xff]
    %v593 = vld [vmem:[#allocation5 + $0xfb8] sm:$0xff]
    %v594 = vld [vmem:[#allocation5 + $0xfc0] sm:$0xff]
    %v595 = vld [vmem:[#allocation5 + $0xfc8] sm:$0xff]
    %v596 = vld [vmem:[#allocation5 + $0xfd0] sm:$0xff]
    %v597 = vld [vmem:[#allocation5 + $0xfd8] sm:$0xff]
    %v598 = vld [vmem:[#allocation5 + $0xfe0] sm:$0xff]
    %v599 = vld [vmem:[#allocation5 + $0xfe8] sm:$0xff]
    %v600 = vld [vmem:[#allocation5 + $0xff0] sm:$0xff]
    %v601 = vld [vmem:[#allocation5 + $0xff8] sm:$0xff]
    %v602 = vld [vmem:[#allocation5 + $0x1000] sm:$0xff]
    %v603 = vld [vmem:[#allocation5 + $0x1008] sm:$0xff]
    %v604 = vld [vmem:[#allocation5 + $0x1010] sm:$0xff]
    %v605 = vld [vmem:[#allocation5 + $0x1018] sm:$0xff]
    %v606 = vld [vmem:[#allocation5 + $0x1020] sm:$0xff]
    %v607 = vld [vmem:[#allocation5 + $0x1028] sm:$0xff]
    %v608 = vld [vmem:[#allocation5 + $0x1030] sm:$0xff]
    %v609 = vld [vmem:[#allocation5 + $0x1038] sm:$0xff]
    %v610 = vld [vmem:[#allocation5 + $0x1040] sm:$0xff]
    %v611 = vld [vmem:[#allocation5 + $0x1048] sm:$0xff]
    %v612 = vld [vmem:[#allocation5 + $0x1050] sm:$0xff]
    %v613 = vld [vmem:[#allocation5 + $0x1058] sm:$0xff]
    %v614 = vld [vmem:[#allocation5 + $0x1060] sm:$0xff]
    %v615 = vld [vmem:[#allocation5 + $0x1068] sm:$0xff]
    %v616 = vld [vmem:[#allocation5 + $0x1070] sm:$0xff]
    %v617 = vld [vmem:[#allocation5 + $0x1078] sm:$0xff]
    %v618 = vld [vmem:[#allocation5 + $0x1080] sm:$0xff]
    %v619 = vld [vmem:[#allocation5 + $0x1088] sm:$0xff]
    %v620 = vld [vmem:[#allocation5 + $0x1090] sm:$0xff]
    %v621 = vld [vmem:[#allocation5 + $0x1098] sm:$0xff]
    %v622 = vld [vmem:[#allocation5 + $0x10a0] sm:$0xff]
    %v623 = vld [vmem:[#allocation5 + $0x10a8] sm:$0xff]
    %v624 = vld [vmem:[#allocation5 + $0x10b0] sm:$0xff]
    %v625 = vld [vmem:[#allocation5 + $0x10b8] sm:$0xff]
    %v626 = vld [vmem:[#allocation5 + $0x10c0] sm:$0xff]
    %v627 = vld [vmem:[#allocation5 + $0x10c8] sm:$0xff]
    %v628 = vld [vmem:[#allocation5 + $0x10d0] sm:$0xff]
    %v629 = vld [vmem:[#allocation5 + $0x10d8] sm:$0xff]
    %v630 = vld [vmem:[#allocation5 + $0x10e0] sm:$0xff]
    %v631 = vld [vmem:[#allocation5 + $0x10e8] sm:$0xff]
    %v632 = vld [vmem:[#allocation5 + $0x10f0] sm:$0xff]
    %v633 = vld [vmem:[#allocation5 + $0x10f8] sm:$0xff]
    %v634 = vld [vmem:[#allocation5 + $0x1100] sm:$0xff]
    %v635 = vld [vmem:[#allocation5 + $0x1108] sm:$0xff]
    %v636 = vld [vmem:[#allocation5 + $0x1110] sm:$0xff]
    %v637 = vld [vmem:[#allocation5 + $0x1118] sm:$0xff]
    %v638 = vld [vmem:[#allocation5 + $0x1120] sm:$0xff]
    %v639 = vld [vmem:[#allocation5 + $0x1128] sm:$0xff]
    %v640 = vld [vmem:[#allocation5 + $0x1130] sm:$0xff]
    %v641 = vld [vmem:[#allocation5 + $0x1138] sm:$0xff]
    %v642 = vld [vmem:[#allocation5 + $0x1140] sm:$0xff]
    %v643 = vld [vmem:[#allocation5 + $0x1148] sm:$0xff]
    %v644 = vld [vmem:[#allocation5 + $0x1150] sm:$0xff]
    %v645 = vld [vmem:[#allocation5 + $0x1158] sm:$0xff]
    %v646 = vld [vmem:[#allocation5 + $0x1160] sm:$0xff]
    %v647 = vld [vmem:[#allocation5 + $0x1168] sm:$0xff]
    %v648 = vld [vmem:[#allocation5 + $0x1170] sm:$0xff]
    %v649 = vld [vmem:[#allocation5 + $0x1178] sm:$0xff]
    %v650 = vld [vmem:[#allocation5 + $0x1180] sm:$0xff]
    %v651 = vld [vmem:[#allocation5 + $0x1188] sm:$0xff]
    %v652 = vld [vmem:[#allocation5 + $0x1190] sm:$0xff]
    %v653 = vld [vmem:[#allocation5 + $0x1198] sm:$0xff]
    %v654 = vld [vmem:[#allocation5 + $0x11a0] sm:$0xff]
    %v655 = vld [vmem:[#allocation5 + $0x11a8] sm:$0xff]
    %v656 = vld [vmem:[#allocation5 + $0x11b0] sm:$0xff]
    %v657 = vld [vmem:[#allocation5 + $0x11b8] sm:$0xff]
    %v658 = vld [vmem:[#allocation5 + $0x11c0] sm:$0xff]
    %v659 = vld [vmem:[#allocation5 + $0x11c8] sm:$0xff]
    %v660 = vld [vmem:[#allocation5 + $0x11d0] sm:$0xff]
    %v661 = vld [vmem:[#allocation5 + $0x11d8] sm:$0xff]
    %v662 = vld [vmem:[#allocation5 + $0x11e0] sm:$0xff]
    %v663 = vld [vmem:[#allocation5 + $0x11e8] sm:$0xff]
    %v664 = vld [vmem:[#allocation5 + $0x11f0] sm:$0xff]
    %v665 = vld [vmem:[#allocation5 + $0x11f8] sm:$0xff]
    %v666 = vld [vmem:[#allocation7] sm:$0x3f]
    %v668 = vlaneseq
    %v669 = vshrl.u32 %v668, 7
    %v670 = vsub.s32 0, %v669
    %v671 = vrot.slane %v666, %v670
    %v672 = vlaneseq
    %v673 = vshrl.u32 %v672, 7
    %v674 = vsub.s32 1, %v673
    %v675 = vrot.slane %v666, %v674
    %v676 = vlaneseq
    %v677 = vshrl.u32 %v676, 7
    %v678 = vsub.s32 2, %v677
    %v679 = vrot.slane %v666, %v678
    %v680 = vlaneseq
    %v681 = vshrl.u32 %v680, 7
    %v682 = vsub.s32 3, %v681
    %v683 = vrot.slane %v666, %v682
    %v684 = vlaneseq
    %v685 = vshrl.u32 %v684, 7
    %v686 = vsub.s32 4, %v685
    %v687 = vrot.slane %v666, %v686
    %v688 = vlaneseq
    %v689 = vshrl.u32 %v688, 7
    %v690 = vsub.s32 5, %v689
    %v691 = vrot.slane %v666, %v690
    %v704 = vunpack.c.l.b16 %v84
    %v705 = vunpack.c.h.b16 %v84
    %v706 = vunpack.c.l.b16 %v85
    %v707 = vunpack.c.h.b16 %v85
    %v708 = vunpack.c.l.b16 %v86
    %v709 = vunpack.c.h.b16 %v86
    %v710 = vunpack.c.l.b16 %v87
    %v711 = vunpack.c.h.b16 %v87
    %v712 = vunpack.c.l.b16 %v88
    %v713 = vunpack.c.h.b16 %v88
    %v714 = vunpack.c.l.b16 %v89
    %v715 = vunpack.c.h.b16 %v89
    %v716 = vpack.c.b16 %v704, %v704
    %v717 = vpack.c.b16 %v705, %v705
    %v718 = vpack.c.b16 %v706, %v706
    %v719 = vpack.c.b16 %v707, %v707
    %v720 = vpack.c.b16 %v708, %v708
    %v721 = vpack.c.b16 %v709, %v709
    %v722 = vpack.c.b16 %v710, %v710
    %v723 = vpack.c.b16 %v711, %v711
    %v724 = vpack.c.b16 %v712, %v712
    %v725 = vpack.c.b16 %v713, %v713
    %v726 = vpack.c.b16 %v714, %v714
    %v727 = vpack.c.b16 %v715, %v715
    %v1316 = vunpack.c.l.b16 %v90
    %v1317 = vunpack.c.h.b16 %v90
    %v1318 = vunpack.c.l.b16 %v91
    %v1319 = vunpack.c.h.b16 %v91
    %v1320 = vunpack.c.l.b16 %v92
    %v1321 = vunpack.c.h.b16 %v92
    %v1322 = vunpack.c.l.b16 %v93
    %v1323 = vunpack.c.h.b16 %v93
    %v1324 = vunpack.c.l.b16 %v94
    %v1325 = vunpack.c.h.b16 %v94
    %v1326 = vunpack.c.l.b16 %v95
    %v1327 = vunpack.c.h.b16 %v95
    %v1328 = vunpack.c.l.b16 %v96
    %v1329 = vunpack.c.h.b16 %v96
    %v1330 = vunpack.c.l.b16 %v97
    %v1331 = vunpack.c.h.b16 %v97
    %v1332 = vunpack.c.l.b16 %v98
    %v1333 = vunpack.c.h.b16 %v98
    %v1334 = vunpack.c.l.b16 %v99
    %v1335 = vunpack.c.h.b16 %v99
    %v1336 = vunpack.c.l.b16 %v100
    %v1337 = vunpack.c.h.b16 %v100
    %v1338 = vunpack.c.l.b16 %v101
    %v1339 = vunpack.c.h.b16 %v101
    %v1340 = vunpack.c.l.b16 %v102
    %v1341 = vunpack.c.h.b16 %v102
    %v1342 = vunpack.c.l.b16 %v103
    %v1343 = vunpack.c.h.b16 %v103
    %v1344 = vunpack.c.l.b16 %v104
    %v1345 = vunpack.c.h.b16 %v104
    %v1346 = vunpack.c.l.b16 %v105
    %v1347 = vunpack.c.h.b16 %v105
    %v1348 = vunpack.c.l.b16 %v106
    %v1349 = vunpack.c.h.b16 %v106
    %v1350 = vunpack.c.l.b16 %v107
    %v1351 = vunpack.c.h.b16 %v107
    %v1352 = vunpack.c.l.b16 %v108
    %v1353 = vunpack.c.h.b16 %v108
    %v1354 = vunpack.c.l.b16 %v109
    %v1355 = vunpack.c.h.b16 %v109
    %v1356 = vunpack.c.l.b16 %v110
    %v1357 = vunpack.c.h.b16 %v110
    %v1358 = vunpack.c.l.b16 %v111
    %v1359 = vunpack.c.h.b16 %v111
    %v1360 = vunpack.c.l.b16 %v112
    %v1361 = vunpack.c.h.b16 %v112
    %v1362 = vunpack.c.l.b16 %v113
    %v1363 = vunpack.c.h.b16 %v113
    %v1364 = vunpack.c.l.b16 %v114
    %v1365 = vunpack.c.h.b16 %v114
    %v1366 = vunpack.c.l.b16 %v115
    %v1367 = vunpack.c.h.b16 %v115
    %v1368 = vunpack.c.l.b16 %v116
    %v1369 = vunpack.c.h.b16 %v116
    %v1370 = vunpack.c.l.b16 %v117
    %v1371 = vunpack.c.h.b16 %v117
    %v1372 = vunpack.c.l.b16 %v118
    %v1373 = vunpack.c.h.b16 %v118
    %v1374 = vunpack.c.l.b16 %v119
    %v1375 = vunpack.c.h.b16 %v119
    %v1376 = vunpack.c.l.b16 %v120
    %v1377 = vunpack.c.h.b16 %v120
    %v1378 = vunpack.c.l.b16 %v121
    %v1379 = vunpack.c.h.b16 %v121
    %v1380 = vunpack.c.l.b16 %v122
    %v1381 = vunpack.c.h.b16 %v122
    %v1382 = vunpack.c.l.b16 %v123
    %v1383 = vunpack.c.h.b16 %v123
    %v1384 = vunpack.c.l.b16 %v124
    %v1385 = vunpack.c.h.b16 %v124
    %v1386 = vunpack.c.l.b16 %v125
    %v1387 = vunpack.c.h.b16 %v125
    %v1388 = vunpack.c.l.b16 %v126
    %v1389 = vunpack.c.h.b16 %v126
    %v1390 = vunpack.c.l.b16 %v127
    %v1391 = vunpack.c.h.b16 %v127
    %v1392 = vunpack.c.l.b16 %v128
    %v1393 = vunpack.c.h.b16 %v128
    %v1394 = vunpack.c.l.b16 %v129
    %v1395 = vunpack.c.h.b16 %v129
    %v1396 = vunpack.c.l.b16 %v130
    %v1397 = vunpack.c.h.b16 %v130
    %v1398 = vunpack.c.l.b16 %v131
    %v1399 = vunpack.c.h.b16 %v131
    %v1400 = vunpack.c.l.b16 %v132
    %v1401 = vunpack.c.h.b16 %v132
    %v1402 = vunpack.c.l.b16 %v133
    %v1403 = vunpack.c.h.b16 %v133
    %v1404 = vunpack.c.l.b16 %v134
    %v1405 = vunpack.c.h.b16 %v134
    %v1406 = vunpack.c.l.b16 %v135
    %v1407 = vunpack.c.h.b16 %v135
    %v1408 = vunpack.c.l.b16 %v136
    %v1409 = vunpack.c.h.b16 %v136
    %v1410 = vunpack.c.l.b16 %v137
    %v1411 = vunpack.c.h.b16 %v137
    %v1412 = vunpack.c.l.b16 %v138
    %v1413 = vunpack.c.h.b16 %v138
    %v1414 = vunpack.c.l.b16 %v139
    %v1415 = vunpack.c.h.b16 %v139
    %v1416 = vunpack.c.l.b16 %v140
    %v1417 = vunpack.c.h.b16 %v140
    %v1418 = vunpack.c.l.b16 %v141
    %v1419 = vunpack.c.h.b16 %v141
    %v1420 = vunpack.c.l.b16 %v142
    %v1421 = vunpack.c.h.b16 %v142
    %v1422 = vunpack.c.l.b16 %v143
    %v1423 = vunpack.c.h.b16 %v143
    %v1424 = vunpack.c.l.b16 %v144
    %v1425 = vunpack.c.h.b16 %v144
    %v1426 = vunpack.c.l.b16 %v145
    %v1427 = vunpack.c.h.b16 %v145
    %v1428 = vunpack.c.l.b16 %v146
    %v1429 = vunpack.c.h.b16 %v146
    %v1430 = vunpack.c.l.b16 %v147
    %v1431 = vunpack.c.h.b16 %v147
    %v1432 = vunpack.c.l.b16 %v148
    %v1433 = vunpack.c.h.b16 %v148
    %v1434 = vunpack.c.l.b16 %v149
    %v1435 = vunpack.c.h.b16 %v149
    %v1436 = vunpack.c.l.b16 %v150
    %v1437 = vunpack.c.h.b16 %v150
    %v1438 = vunpack.c.l.b16 %v151
    %v1439 = vunpack.c.h.b16 %v151
    %v1440 = vunpack.c.l.b16 %v152
    %v1441 = vunpack.c.h.b16 %v152
    %v1442 = vunpack.c.l.b16 %v153
    %v1443 = vunpack.c.h.b16 %v153
    %v1444 = vunpack.c.l.b16 %v154
    %v1445 = vunpack.c.h.b16 %v154
    %v1446 = vunpack.c.l.b16 %v155
    %v1447 = vunpack.c.h.b16 %v155
    %v1448 = vunpack.c.l.b16 %v156
    %v1449 = vunpack.c.h.b16 %v156
    %v1450 = vunpack.c.l.b16 %v157
    %v1451 = vunpack.c.h.b16 %v157
    %v1452 = vunpack.c.l.b16 %v158
    %v1453 = vunpack.c.h.b16 %v158
    %v1454 = vunpack.c.l.b16 %v159
    %v1455 = vunpack.c.h.b16 %v159
    %v1456 = vunpack.c.l.b16 %v160
    %v1457 = vunpack.c.h.b16 %v160
    %v1458 = vunpack.c.l.b16 %v161
    %v1459 = vunpack.c.h.b16 %v161
    %v1460 = vunpack.c.l.b16 %v162
    %v1461 = vunpack.c.h.b16 %v162
    %v1462 = vunpack.c.l.b16 %v163
    %v1463 = vunpack.c.h.b16 %v163
    %v1464 = vunpack.c.l.b16 %v164
    %v1465 = vunpack.c.h.b16 %v164
    %v1466 = vunpack.c.l.b16 %v165
    %v1467 = vunpack.c.h.b16 %v165
    %v1468 = vunpack.c.l.b16 %v166
    %v1469 = vunpack.c.h.b16 %v166
    %v1470 = vunpack.c.l.b16 %v167
    %v1471 = vunpack.c.h.b16 %v167
    %v1472 = vunpack.c.l.b16 %v168
    %v1473 = vunpack.c.h.b16 %v168
    %v1474 = vunpack.c.l.b16 %v169
    %v1475 = vunpack.c.h.b16 %v169
    %v1476 = vunpack.c.l.b16 %v170
    %v1477 = vunpack.c.h.b16 %v170
    %v1478 = vunpack.c.l.b16 %v171
    %v1479 = vunpack.c.h.b16 %v171
    %v1480 = vunpack.c.l.b16 %v172
    %v1481 = vunpack.c.h.b16 %v172
    %v1482 = vunpack.c.l.b16 %v173
    %v1483 = vunpack.c.h.b16 %v173
    %v1484 = vunpack.c.l.b16 %v174
    %v1485 = vunpack.c.h.b16 %v174
    %v1486 = vunpack.c.l.b16 %v175
    %v1487 = vunpack.c.h.b16 %v175
    %v1488 = vunpack.c.l.b16 %v176
    %v1489 = vunpack.c.h.b16 %v176
    %v1490 = vunpack.c.l.b16 %v177
    %v1491 = vunpack.c.h.b16 %v177
    %v1492 = vunpack.c.l.b16 %v178
    %v1493 = vunpack.c.h.b16 %v178
    %v1494 = vunpack.c.l.b16 %v179
    %v1495 = vunpack.c.h.b16 %v179
    %v1496 = vunpack.c.l.b16 %v180
    %v1497 = vunpack.c.h.b16 %v180
    %v1498 = vunpack.c.l.b16 %v181
    %v1499 = vunpack.c.h.b16 %v181
    %v1500 = vunpack.c.l.b16 %v182
    %v1501 = vunpack.c.h.b16 %v182
    %v1502 = vunpack.c.l.b16 %v183
    %v1503 = vunpack.c.h.b16 %v183
    %v1504 = vunpack.c.l.b16 %v184
    %v1505 = vunpack.c.h.b16 %v184
    %v1506 = vunpack.c.l.b16 %v185
    %v1507 = vunpack.c.h.b16 %v185
    %v1508 = vunpack.c.l.b16 %v186
    %v1509 = vunpack.c.h.b16 %v186
    %v1510 = vunpack.c.l.b16 %v187
    %v1511 = vunpack.c.h.b16 %v187
    %v1512 = vunpack.c.l.b16 %v188
    %v1513 = vunpack.c.h.b16 %v188
    %v1514 = vunpack.c.l.b16 %v189
    %v1515 = vunpack.c.h.b16 %v189
    %v1516 = vunpack.c.l.b16 %v190
    %v1517 = vunpack.c.h.b16 %v190
    %v1518 = vunpack.c.l.b16 %v191
    %v1519 = vunpack.c.h.b16 %v191
    %v1520 = vunpack.c.l.b16 %v192
    %v1521 = vunpack.c.h.b16 %v192
    %v1522 = vunpack.c.l.b16 %v193
    %v1523 = vunpack.c.h.b16 %v193
    %v1524 = vunpack.c.l.b16 %v194
    %v1525 = vunpack.c.h.b16 %v194
    %v1526 = vunpack.c.l.b16 %v195
    %v1527 = vunpack.c.h.b16 %v195
    %v1528 = vunpack.c.l.b16 %v196
    %v1529 = vunpack.c.h.b16 %v196
    %v1530 = vunpack.c.l.b16 %v197
    %v1531 = vunpack.c.h.b16 %v197
    %v1532 = vunpack.c.l.b16 %v198
    %v1533 = vunpack.c.h.b16 %v198
    %v1534 = vunpack.c.l.b16 %v199
    %v1535 = vunpack.c.h.b16 %v199
    %v1536 = vunpack.c.l.b16 %v200
    %v1537 = vunpack.c.h.b16 %v200
    %v1538 = vunpack.c.l.b16 %v201
    %v1539 = vunpack.c.h.b16 %v201
    %v1540 = vunpack.c.l.b16 %v202
    %v1541 = vunpack.c.h.b16 %v202
    %v1542 = vunpack.c.l.b16 %v203
    %v1543 = vunpack.c.h.b16 %v203
    %v1544 = vunpack.c.l.b16 %v204
    %v1545 = vunpack.c.h.b16 %v204
    %v1546 = vunpack.c.l.b16 %v205
    %v1547 = vunpack.c.h.b16 %v205
    %v1548 = vunpack.c.l.b16 %v206
    %v1549 = vunpack.c.h.b16 %v206
    %v1550 = vunpack.c.l.b16 %v207
    %v1551 = vunpack.c.h.b16 %v207
    %v1552 = vunpack.c.l.b16 %v208
    %v1553 = vunpack.c.h.b16 %v208
    %v1554 = vunpack.c.l.b16 %v209
    %v1555 = vunpack.c.h.b16 %v209
    %v1556 = vunpack.c.l.b16 %v210
    %v1557 = vunpack.c.h.b16 %v210
    %v1558 = vunpack.c.l.b16 %v211
    %v1559 = vunpack.c.h.b16 %v211
    %v1560 = vunpack.c.l.b16 %v212
    %v1561 = vunpack.c.h.b16 %v212
    %v1562 = vunpack.c.l.b16 %v213
    %v1563 = vunpack.c.h.b16 %v213
    %v1564 = vunpack.c.l.b16 %v214
    %v1565 = vunpack.c.h.b16 %v214
    %v1566 = vunpack.c.l.b16 %v215
    %v1567 = vunpack.c.h.b16 %v215
    %v1568 = vunpack.c.l.b16 %v216
    %v1569 = vunpack.c.h.b16 %v216
    %v1570 = vunpack.c.l.b16 %v217
    %v1571 = vunpack.c.h.b16 %v217
    %v1572 = vunpack.c.l.b16 %v218
    %v1573 = vunpack.c.h.b16 %v218
    %v1574 = vunpack.c.l.b16 %v219
    %v1575 = vunpack.c.h.b16 %v219
    %v1576 = vunpack.c.l.b16 %v220
    %v1577 = vunpack.c.h.b16 %v220
    %v1578 = vunpack.c.l.b16 %v221
    %v1579 = vunpack.c.h.b16 %v221
    %v1580 = vunpack.c.l.b16 %v222
    %v1581 = vunpack.c.h.b16 %v222
    %v1582 = vunpack.c.l.b16 %v223
    %v1583 = vunpack.c.h.b16 %v223
    %v1584 = vunpack.c.l.b16 %v224
    %v1585 = vunpack.c.h.b16 %v224
    %v1586 = vunpack.c.l.b16 %v225
    %v1587 = vunpack.c.h.b16 %v225
    %v1588 = vunpack.c.l.b16 %v226
    %v1589 = vunpack.c.h.b16 %v226
    %v1590 = vunpack.c.l.b16 %v227
    %v1591 = vunpack.c.h.b16 %v227
    %v1592 = vunpack.c.l.b16 %v228
    %v1593 = vunpack.c.h.b16 %v228
    %v1594 = vunpack.c.l.b16 %v229
    %v1595 = vunpack.c.h.b16 %v229
    %v1596 = vunpack.c.l.b16 %v230
    %v1597 = vunpack.c.h.b16 %v230
    %v1598 = vunpack.c.l.b16 %v231
    %v1599 = vunpack.c.h.b16 %v231
    %v1600 = vunpack.c.l.b16 %v232
    %v1601 = vunpack.c.h.b16 %v232
    %v1602 = vunpack.c.l.b16 %v233
    %v1603 = vunpack.c.h.b16 %v233
    %v1604 = vunpack.c.l.b16 %v234
    %v1605 = vunpack.c.h.b16 %v234
    %v1606 = vunpack.c.l.b16 %v235
    %v1607 = vunpack.c.h.b16 %v235
    %v1608 = vunpack.c.l.b16 %v236
    %v1609 = vunpack.c.h.b16 %v236
    %v1610 = vunpack.c.l.b16 %v237
    %v1611 = vunpack.c.h.b16 %v237
    %v1612 = vunpack.c.l.b16 %v238
    %v1613 = vunpack.c.h.b16 %v238
    %v1614 = vunpack.c.l.b16 %v239
    %v1615 = vunpack.c.h.b16 %v239
    %v1616 = vunpack.c.l.b16 %v240
    %v1617 = vunpack.c.h.b16 %v240
    %v1618 = vunpack.c.l.b16 %v241
    %v1619 = vunpack.c.h.b16 %v241
    %v1620 = vunpack.c.l.b16 %v242
    %v1621 = vunpack.c.h.b16 %v242
    %v1622 = vunpack.c.l.b16 %v243
    %v1623 = vunpack.c.h.b16 %v243
    %v1624 = vunpack.c.l.b16 %v244
    %v1625 = vunpack.c.h.b16 %v244
    %v1626 = vunpack.c.l.b16 %v245
    %v1627 = vunpack.c.h.b16 %v245
    %v1628 = vunpack.c.l.b16 %v246
    %v1629 = vunpack.c.h.b16 %v246
    %v1630 = vunpack.c.l.b16 %v247
    %v1631 = vunpack.c.h.b16 %v247
    %v1632 = vunpack.c.l.b16 %v248
    %v1633 = vunpack.c.h.b16 %v248
    %v1634 = vunpack.c.l.b16 %v249
    %v1635 = vunpack.c.h.b16 %v249
    %v1636 = vunpack.c.l.b16 %v250
    %v1637 = vunpack.c.h.b16 %v250
    %v1638 = vunpack.c.l.b16 %v251
    %v1639 = vunpack.c.h.b16 %v251
    %v1640 = vunpack.c.l.b16 %v252
    %v1641 = vunpack.c.h.b16 %v252
    %v1642 = vunpack.c.l.b16 %v253
    %v1643 = vunpack.c.h.b16 %v253
    %v1644 = vunpack.c.l.b16 %v254
    %v1645 = vunpack.c.h.b16 %v254
    %v1646 = vunpack.c.l.b16 %v255
    %v1647 = vunpack.c.h.b16 %v255
    %v1648 = vunpack.c.l.b16 %v256
    %v1649 = vunpack.c.h.b16 %v256
    %v1650 = vunpack.c.l.b16 %v257
    %v1651 = vunpack.c.h.b16 %v257
    %v1652 = vunpack.c.l.b16 %v258
    %v1653 = vunpack.c.h.b16 %v258
    %v1654 = vunpack.c.l.b16 %v259
    %v1655 = vunpack.c.h.b16 %v259
    %v1656 = vunpack.c.l.b16 %v260
    %v1657 = vunpack.c.h.b16 %v260
    %v1658 = vunpack.c.l.b16 %v261
    %v1659 = vunpack.c.h.b16 %v261
    %v1660 = vunpack.c.l.b16 %v262
    %v1661 = vunpack.c.h.b16 %v262
    %v1662 = vunpack.c.l.b16 %v263
    %v1663 = vunpack.c.h.b16 %v263
    %v1664 = vunpack.c.l.b16 %v264
    %v1665 = vunpack.c.h.b16 %v264
    %v1666 = vunpack.c.l.b16 %v265
    %v1667 = vunpack.c.h.b16 %v265
    %v1668 = vunpack.c.l.b16 %v266
    %v1669 = vunpack.c.h.b16 %v266
    %v1670 = vunpack.c.l.b16 %v267
    %v1671 = vunpack.c.h.b16 %v267
    %v1672 = vunpack.c.l.b16 %v268
    %v1673 = vunpack.c.h.b16 %v268
    %v1674 = vunpack.c.l.b16 %v269
    %v1675 = vunpack.c.h.b16 %v269
    %v1676 = vunpack.c.l.b16 %v270
    %v1677 = vunpack.c.h.b16 %v270
    %v1678 = vunpack.c.l.b16 %v271
    %v1679 = vunpack.c.h.b16 %v271
    %v1680 = vunpack.c.l.b16 %v272
    %v1681 = vunpack.c.h.b16 %v272
    %v1682 = vunpack.c.l.b16 %v273
    %v1683 = vunpack.c.h.b16 %v273
    %v1684 = vunpack.c.l.b16 %v274
    %v1685 = vunpack.c.h.b16 %v274
    %v1686 = vunpack.c.l.b16 %v275
    %v1687 = vunpack.c.h.b16 %v275
    %v1688 = vunpack.c.l.b16 %v276
    %v1689 = vunpack.c.h.b16 %v276
    %v1690 = vunpack.c.l.b16 %v277
    %v1691 = vunpack.c.h.b16 %v277
    %v1692 = vunpack.c.l.b16 %v278
    %v1693 = vunpack.c.h.b16 %v278
    %v1694 = vunpack.c.l.b16 %v279
    %v1695 = vunpack.c.h.b16 %v279
    %v1696 = vunpack.c.l.b16 %v280
    %v1697 = vunpack.c.h.b16 %v280
    %v1698 = vunpack.c.l.b16 %v281
    %v1699 = vunpack.c.h.b16 %v281
    %v1700 = vunpack.c.l.b16 %v282
    %v1701 = vunpack.c.h.b16 %v282
    %v1702 = vunpack.c.l.b16 %v283
    %v1703 = vunpack.c.h.b16 %v283
    %v1704 = vunpack.c.l.b16 %v284
    %v1705 = vunpack.c.h.b16 %v284
    %v1706 = vunpack.c.l.b16 %v285
    %v1707 = vunpack.c.h.b16 %v285
    %v1708 = vunpack.c.l.b16 %v286
    %v1709 = vunpack.c.h.b16 %v286
    %v1710 = vunpack.c.l.b16 %v287
    %v1711 = vunpack.c.h.b16 %v287
    %v1712 = vunpack.c.l.b16 %v288
    %v1713 = vunpack.c.h.b16 %v288
    %v1714 = vunpack.c.l.b16 %v289
    %v1715 = vunpack.c.h.b16 %v289
    %v1716 = vunpack.c.l.b16 %v290
    %v1717 = vunpack.c.h.b16 %v290
    %v1718 = vunpack.c.l.b16 %v291
    %v1719 = vunpack.c.h.b16 %v291
    %v1720 = vunpack.c.l.b16 %v292
    %v1721 = vunpack.c.h.b16 %v292
    %v1722 = vunpack.c.l.b16 %v293
    %v1723 = vunpack.c.h.b16 %v293
    %v1724 = vunpack.c.l.b16 %v294
    %v1725 = vunpack.c.h.b16 %v294
    %v1726 = vunpack.c.l.b16 %v295
    %v1727 = vunpack.c.h.b16 %v295
    %v1728 = vunpack.c.l.b16 %v296
    %v1729 = vunpack.c.h.b16 %v296
    %v1730 = vunpack.c.l.b16 %v297
    %v1731 = vunpack.c.h.b16 %v297
    %v1732 = vunpack.c.l.b16 %v298
    %v1733 = vunpack.c.h.b16 %v298
    %v1734 = vunpack.c.l.b16 %v299
    %v1735 = vunpack.c.h.b16 %v299
    %v1736 = vunpack.c.l.b16 %v300
    %v1737 = vunpack.c.h.b16 %v300
    %v1738 = vunpack.c.l.b16 %v301
    %v1739 = vunpack.c.h.b16 %v301
    %v1740 = vunpack.c.l.b16 %v302
    %v1741 = vunpack.c.h.b16 %v302
    %v1742 = vunpack.c.l.b16 %v303
    %v1743 = vunpack.c.h.b16 %v303
    %v1744 = vunpack.c.l.b16 %v304
    %v1745 = vunpack.c.h.b16 %v304
    %v1746 = vunpack.c.l.b16 %v305
    %v1747 = vunpack.c.h.b16 %v305
    %v1748 = vunpack.c.l.b16 %v306
    %v1749 = vunpack.c.h.b16 %v306
    %v1750 = vunpack.c.l.b16 %v307
    %v1751 = vunpack.c.h.b16 %v307
    %v1752 = vunpack.c.l.b16 %v308
    %v1753 = vunpack.c.h.b16 %v308
    %v1754 = vunpack.c.l.b16 %v309
    %v1755 = vunpack.c.h.b16 %v309
    %v1756 = vunpack.c.l.b16 %v310
    %v1757 = vunpack.c.h.b16 %v310
    %v1758 = vunpack.c.l.b16 %v311
    %v1759 = vunpack.c.h.b16 %v311
    %v1760 = vunpack.c.l.b16 %v312
    %v1761 = vunpack.c.h.b16 %v312
    %v1762 = vunpack.c.l.b16 %v313
    %v1763 = vunpack.c.h.b16 %v313
    %v1764 = vunpack.c.l.b16 %v314
    %v1765 = vunpack.c.h.b16 %v314
    %v1766 = vunpack.c.l.b16 %v315
    %v1767 = vunpack.c.h.b16 %v315
    %v1768 = vunpack.c.l.b16 %v316
    %v1769 = vunpack.c.h.b16 %v316
    %v1770 = vunpack.c.l.b16 %v317
    %v1771 = vunpack.c.h.b16 %v317
    %v1772 = vunpack.c.l.b16 %v318
    %v1773 = vunpack.c.h.b16 %v318
    %v1774 = vunpack.c.l.b16 %v319
    %v1775 = vunpack.c.h.b16 %v319
    %v1776 = vunpack.c.l.b16 %v320
    %v1777 = vunpack.c.h.b16 %v320
    %v1778 = vunpack.c.l.b16 %v321
    %v1779 = vunpack.c.h.b16 %v321
    %v1780 = vunpack.c.l.b16 %v322
    %v1781 = vunpack.c.h.b16 %v322
    %v1782 = vunpack.c.l.b16 %v323
    %v1783 = vunpack.c.h.b16 %v323
    %v1784 = vunpack.c.l.b16 %v324
    %v1785 = vunpack.c.h.b16 %v324
    %v1786 = vunpack.c.l.b16 %v325
    %v1787 = vunpack.c.h.b16 %v325
    %v1788 = vunpack.c.l.b16 %v326
    %v1789 = vunpack.c.h.b16 %v326
    %v1790 = vunpack.c.l.b16 %v327
    %v1791 = vunpack.c.h.b16 %v327
    %v1792 = vunpack.c.l.b16 %v328
    %v1793 = vunpack.c.h.b16 %v328
    %v1794 = vunpack.c.l.b16 %v329
    %v1795 = vunpack.c.h.b16 %v329
    %v1796 = vunpack.c.l.b16 %v330
    %v1797 = vunpack.c.h.b16 %v330
    %v1798 = vunpack.c.l.b16 %v331
    %v1799 = vunpack.c.h.b16 %v331
    %v1800 = vunpack.c.l.b16 %v332
    %v1801 = vunpack.c.h.b16 %v332
    %v1802 = vunpack.c.l.b16 %v333
    %v1803 = vunpack.c.h.b16 %v333
    %v1804 = vunpack.c.l.b16 %v334
    %v1805 = vunpack.c.h.b16 %v334
    %v1806 = vunpack.c.l.b16 %v335
    %v1807 = vunpack.c.h.b16 %v335
    %v1808 = vunpack.c.l.b16 %v336
    %v1809 = vunpack.c.h.b16 %v336
    %v1810 = vunpack.c.l.b16 %v337
    %v1811 = vunpack.c.h.b16 %v337
    %v1812 = vunpack.c.l.b16 %v338
    %v1813 = vunpack.c.h.b16 %v338
    %v1814 = vunpack.c.l.b16 %v339
    %v1815 = vunpack.c.h.b16 %v339
    %v1816 = vunpack.c.l.b16 %v340
    %v1817 = vunpack.c.h.b16 %v340
    %v1818 = vunpack.c.l.b16 %v341
    %v1819 = vunpack.c.h.b16 %v341
    %v1820 = vunpack.c.l.b16 %v342
    %v1821 = vunpack.c.h.b16 %v342
    %v1822 = vunpack.c.l.b16 %v343
    %v1823 = vunpack.c.h.b16 %v343
    %v1824 = vunpack.c.l.b16 %v344
    %v1825 = vunpack.c.h.b16 %v344
    %v1826 = vunpack.c.l.b16 %v345
    %v1827 = vunpack.c.h.b16 %v345
    %v1828 = vunpack.c.l.b16 %v346
    %v1829 = vunpack.c.h.b16 %v346
    %v1830 = vunpack.c.l.b16 %v347
    %v1831 = vunpack.c.h.b16 %v347
    %v1832 = vunpack.c.l.b16 %v348
    %v1833 = vunpack.c.h.b16 %v348
    %v1834 = vunpack.c.l.b16 %v349
    %v1835 = vunpack.c.h.b16 %v349
    %v1836 = vunpack.c.l.b16 %v350
    %v1837 = vunpack.c.h.b16 %v350
    %v1838 = vunpack.c.l.b16 %v351
    %v1839 = vunpack.c.h.b16 %v351
    %v1840 = vunpack.c.l.b16 %v352
    %v1841 = vunpack.c.h.b16 %v352
    %v1842 = vunpack.c.l.b16 %v353
    %v1843 = vunpack.c.h.b16 %v353
    %v1844 = vunpack.c.l.b16 %v354
    %v1845 = vunpack.c.h.b16 %v354
    %v1846 = vunpack.c.l.b16 %v355
    %v1847 = vunpack.c.h.b16 %v355
    %v1848 = vunpack.c.l.b16 %v356
    %v1849 = vunpack.c.h.b16 %v356
    %v1850 = vunpack.c.l.b16 %v357
    %v1851 = vunpack.c.h.b16 %v357
    %v1852 = vunpack.c.l.b16 %v358
    %v1853 = vunpack.c.h.b16 %v358
    %v1854 = vunpack.c.l.b16 %v359
    %v1855 = vunpack.c.h.b16 %v359
    %v1856 = vunpack.c.l.b16 %v360
    %v1857 = vunpack.c.h.b16 %v360
    %v1858 = vunpack.c.l.b16 %v361
    %v1859 = vunpack.c.h.b16 %v361
    %v1860 = vunpack.c.l.b16 %v362
    %v1861 = vunpack.c.h.b16 %v362
    %v1862 = vunpack.c.l.b16 %v363
    %v1863 = vunpack.c.h.b16 %v363
    %v1864 = vunpack.c.l.b16 %v364
    %v1865 = vunpack.c.h.b16 %v364
    %v1866 = vunpack.c.l.b16 %v365
    %v1867 = vunpack.c.h.b16 %v365
    %v1868 = vunpack.c.l.b16 %v366
    %v1869 = vunpack.c.h.b16 %v366
    %v1870 = vunpack.c.l.b16 %v367
    %v1871 = vunpack.c.h.b16 %v367
    %v1872 = vunpack.c.l.b16 %v368
    %v1873 = vunpack.c.h.b16 %v368
    %v1874 = vunpack.c.l.b16 %v369
    %v1875 = vunpack.c.h.b16 %v369
    %v1876 = vunpack.c.l.b16 %v370
    %v1877 = vunpack.c.h.b16 %v370
    %v1878 = vunpack.c.l.b16 %v371
    %v1879 = vunpack.c.h.b16 %v371
    %v1880 = vunpack.c.l.b16 %v372
    %v1881 = vunpack.c.h.b16 %v372
    %v1882 = vunpack.c.l.b16 %v373
    %v1883 = vunpack.c.h.b16 %v373
    %v1884 = vunpack.c.l.b16 %v374
    %v1885 = vunpack.c.h.b16 %v374
    %v1886 = vunpack.c.l.b16 %v375
    %v1887 = vunpack.c.h.b16 %v375
    %v1888 = vunpack.c.l.b16 %v376
    %v1889 = vunpack.c.h.b16 %v376
    %v1890 = vunpack.c.l.b16 %v377
    %v1891 = vunpack.c.h.b16 %v377
    %v1892 = vunpack.c.l.b16 %v378
    %v1893 = vunpack.c.h.b16 %v378
    %v1894 = vunpack.c.l.b16 %v379
    %v1895 = vunpack.c.h.b16 %v379
    %v1896 = vunpack.c.l.b16 %v380
    %v1897 = vunpack.c.h.b16 %v380
    %v1898 = vunpack.c.l.b16 %v381
    %v1899 = vunpack.c.h.b16 %v381
    %v1900 = vunpack.c.l.b16 %v382
    %v1901 = vunpack.c.h.b16 %v382
    %v1902 = vunpack.c.l.b16 %v383
    %v1903 = vunpack.c.h.b16 %v383
    %v1904 = vunpack.c.l.b16 %v384
    %v1905 = vunpack.c.h.b16 %v384
    %v1906 = vunpack.c.l.b16 %v385
    %v1907 = vunpack.c.h.b16 %v385
    %v1908 = vunpack.c.l.b16 %v386
    %v1909 = vunpack.c.h.b16 %v386
    %v1910 = vunpack.c.l.b16 %v387
    %v1911 = vunpack.c.h.b16 %v387
    %v1912 = vunpack.c.l.b16 %v388
    %v1913 = vunpack.c.h.b16 %v388
    %v1914 = vunpack.c.l.b16 %v389
    %v1915 = vunpack.c.h.b16 %v389
    %v1916 = vunpack.c.l.b16 %v390
    %v1917 = vunpack.c.h.b16 %v390
    %v1918 = vunpack.c.l.b16 %v391
    %v1919 = vunpack.c.h.b16 %v391
    %v1920 = vunpack.c.l.b16 %v392
    %v1921 = vunpack.c.h.b16 %v392
    %v1922 = vunpack.c.l.b16 %v393
    %v1923 = vunpack.c.h.b16 %v393
    %v1924 = vunpack.c.l.b16 %v394
    %v1925 = vunpack.c.h.b16 %v394
    %v1926 = vunpack.c.l.b16 %v395
    %v1927 = vunpack.c.h.b16 %v395
    %v1928 = vunpack.c.l.b16 %v396
    %v1929 = vunpack.c.h.b16 %v396
    %v1930 = vunpack.c.l.b16 %v397
    %v1931 = vunpack.c.h.b16 %v397
    %v1932 = vunpack.c.l.b16 %v398
    %v1933 = vunpack.c.h.b16 %v398
    %v1934 = vunpack.c.l.b16 %v399
    %v1935 = vunpack.c.h.b16 %v399
    %v1936 = vunpack.c.l.b16 %v400
    %v1937 = vunpack.c.h.b16 %v400
    %v1938 = vunpack.c.l.b16 %v401
    %v1939 = vunpack.c.h.b16 %v401
    %v1940 = vunpack.c.l.b16 %v402
    %v1941 = vunpack.c.h.b16 %v402
    %v1942 = vunpack.c.l.b16 %v403
    %v1943 = vunpack.c.h.b16 %v403
    %v1944 = vunpack.c.l.b16 %v404
    %v1945 = vunpack.c.h.b16 %v404
    %v1946 = vunpack.c.l.b16 %v405
    %v1947 = vunpack.c.h.b16 %v405
    %v1948 = vunpack.c.l.b16 %v406
    %v1949 = vunpack.c.h.b16 %v406
    %v1950 = vunpack.c.l.b16 %v407
    %v1951 = vunpack.c.h.b16 %v407
    %v1952 = vunpack.c.l.b16 %v408
    %v1953 = vunpack.c.h.b16 %v408
    %v1954 = vunpack.c.l.b16 %v409
    %v1955 = vunpack.c.h.b16 %v409
    %v1956 = vunpack.c.l.b16 %v410
    %v1957 = vunpack.c.h.b16 %v410
    %v1958 = vunpack.c.l.b16 %v411
    %v1959 = vunpack.c.h.b16 %v411
    %v1960 = vunpack.c.l.b16 %v412
    %v1961 = vunpack.c.h.b16 %v412
    %v1962 = vunpack.c.l.b16 %v413
    %v1963 = vunpack.c.h.b16 %v413
    %v1964 = vunpack.c.l.b16 %v414
    %v1965 = vunpack.c.h.b16 %v414
    %v1966 = vunpack.c.l.b16 %v415
    %v1967 = vunpack.c.h.b16 %v415
    %v1968 = vunpack.c.l.b16 %v416
    %v1969 = vunpack.c.h.b16 %v416
    %v1970 = vunpack.c.l.b16 %v417
    %v1971 = vunpack.c.h.b16 %v417
    %v1972 = vunpack.c.l.b16 %v418
    %v1973 = vunpack.c.h.b16 %v418
    %v1974 = vunpack.c.l.b16 %v419
    %v1975 = vunpack.c.h.b16 %v419
    %v1976 = vunpack.c.l.b16 %v420
    %v1977 = vunpack.c.h.b16 %v420
    %v1978 = vunpack.c.l.b16 %v421
    %v1979 = vunpack.c.h.b16 %v421
    %v1980 = vunpack.c.l.b16 %v422
    %v1981 = vunpack.c.h.b16 %v422
    %v1982 = vunpack.c.l.b16 %v423
    %v1983 = vunpack.c.h.b16 %v423
    %v1984 = vunpack.c.l.b16 %v424
    %v1985 = vunpack.c.h.b16 %v424
    %v1986 = vunpack.c.l.b16 %v425
    %v1987 = vunpack.c.h.b16 %v425
    %v1988 = vunpack.c.l.b16 %v426
    %v1989 = vunpack.c.h.b16 %v426
    %v1990 = vunpack.c.l.b16 %v427
    %v1991 = vunpack.c.h.b16 %v427
    %v1992 = vunpack.c.l.b16 %v428
    %v1993 = vunpack.c.h.b16 %v428
    %v1994 = vunpack.c.l.b16 %v429
    %v1995 = vunpack.c.h.b16 %v429
    %v1996 = vunpack.c.l.b16 %v430
    %v1997 = vunpack.c.h.b16 %v430
    %v1998 = vunpack.c.l.b16 %v431
    %v1999 = vunpack.c.h.b16 %v431
    %v2000 = vunpack.c.l.b16 %v432
    %v2001 = vunpack.c.h.b16 %v432
    %v2002 = vunpack.c.l.b16 %v433
    %v2003 = vunpack.c.h.b16 %v433
    %v2004 = vunpack.c.l.b16 %v434
    %v2005 = vunpack.c.h.b16 %v434
    %v2006 = vunpack.c.l.b16 %v435
    %v2007 = vunpack.c.h.b16 %v435
    %v2008 = vunpack.c.l.b16 %v436
    %v2009 = vunpack.c.h.b16 %v436
    %v2010 = vunpack.c.l.b16 %v437
    %v2011 = vunpack.c.h.b16 %v437
    %v2012 = vunpack.c.l.b16 %v438
    %v2013 = vunpack.c.h.b16 %v438
    %v2014 = vunpack.c.l.b16 %v439
    %v2015 = vunpack.c.h.b16 %v439
    %v2016 = vunpack.c.l.b16 %v440
    %v2017 = vunpack.c.h.b16 %v440
    %v2018 = vunpack.c.l.b16 %v441
    %v2019 = vunpack.c.h.b16 %v441
    %v2020 = vunpack.c.l.b16 %v442
    %v2021 = vunpack.c.h.b16 %v442
    %v2022 = vunpack.c.l.b16 %v443
    %v2023 = vunpack.c.h.b16 %v443
    %v2024 = vunpack.c.l.b16 %v444
    %v2025 = vunpack.c.h.b16 %v444
    %v2026 = vunpack.c.l.b16 %v445
    %v2027 = vunpack.c.h.b16 %v445
    %v2028 = vunpack.c.l.b16 %v446
    %v2029 = vunpack.c.h.b16 %v446
    %v2030 = vunpack.c.l.b16 %v447
    %v2031 = vunpack.c.h.b16 %v447
    %v2032 = vunpack.c.l.b16 %v448
    %v2033 = vunpack.c.h.b16 %v448
    %v2034 = vunpack.c.l.b16 %v449
    %v2035 = vunpack.c.h.b16 %v449
    %v2036 = vunpack.c.l.b16 %v450
    %v2037 = vunpack.c.h.b16 %v450
    %v2038 = vunpack.c.l.b16 %v451
    %v2039 = vunpack.c.h.b16 %v451
    %v2040 = vunpack.c.l.b16 %v452
    %v2041 = vunpack.c.h.b16 %v452
    %v2042 = vunpack.c.l.b16 %v453
    %v2043 = vunpack.c.h.b16 %v453
    %v2044 = vunpack.c.l.b16 %v454
    %v2045 = vunpack.c.h.b16 %v454
    %v2046 = vunpack.c.l.b16 %v455
    %v2047 = vunpack.c.h.b16 %v455
    %v2048 = vunpack.c.l.b16 %v456
    %v2049 = vunpack.c.h.b16 %v456
    %v2050 = vunpack.c.l.b16 %v457
    %v2051 = vunpack.c.h.b16 %v457
    %v2052 = vunpack.c.l.b16 %v458
    %v2053 = vunpack.c.h.b16 %v458
    %v2054 = vunpack.c.l.b16 %v459
    %v2055 = vunpack.c.h.b16 %v459
    %v2056 = vunpack.c.l.b16 %v460
    %v2057 = vunpack.c.h.b16 %v460
    %v2058 = vunpack.c.l.b16 %v461
    %v2059 = vunpack.c.h.b16 %v461
    %v2060 = vunpack.c.l.b16 %v462
    %v2061 = vunpack.c.h.b16 %v462
    %v2062 = vunpack.c.l.b16 %v463
    %v2063 = vunpack.c.h.b16 %v463
    %v2064 = vunpack.c.l.b16 %v464
    %v2065 = vunpack.c.h.b16 %v464
    %v2066 = vunpack.c.l.b16 %v465
    %v2067 = vunpack.c.h.b16 %v465
    %v2068 = vunpack.c.l.b16 %v466
    %v2069 = vunpack.c.h.b16 %v466
    %v2070 = vunpack.c.l.b16 %v467
    %v2071 = vunpack.c.h.b16 %v467
    %v2072 = vunpack.c.l.b16 %v468
    %v2073 = vunpack.c.h.b16 %v468
    %v2074 = vunpack.c.l.b16 %v469
    %v2075 = vunpack.c.h.b16 %v469
    %v2076 = vunpack.c.l.b16 %v470
    %v2077 = vunpack.c.h.b16 %v470
    %v2078 = vunpack.c.l.b16 %v471
    %v2079 = vunpack.c.h.b16 %v471
    %v2080 = vunpack.c.l.b16 %v472
    %v2081 = vunpack.c.h.b16 %v472
    %v2082 = vunpack.c.l.b16 %v473
    %v2083 = vunpack.c.h.b16 %v473
    %v2084 = vunpack.c.l.b16 %v474
    %v2085 = vunpack.c.h.b16 %v474
    %v2086 = vunpack.c.l.b16 %v475
    %v2087 = vunpack.c.h.b16 %v475
    %v2088 = vunpack.c.l.b16 %v476
    %v2089 = vunpack.c.h.b16 %v476
    %v2090 = vunpack.c.l.b16 %v477
    %v2091 = vunpack.c.h.b16 %v477
    %v2092 = vunpack.c.l.b16 %v478
    %v2093 = vunpack.c.h.b16 %v478
    %v2094 = vunpack.c.l.b16 %v479
    %v2095 = vunpack.c.h.b16 %v479
    %v2096 = vunpack.c.l.b16 %v480
    %v2097 = vunpack.c.h.b16 %v480
    %v2098 = vunpack.c.l.b16 %v481
    %v2099 = vunpack.c.h.b16 %v481
    %v2100 = vunpack.c.l.b16 %v482
    %v2101 = vunpack.c.h.b16 %v482
    %v2102 = vunpack.c.l.b16 %v483
    %v2103 = vunpack.c.h.b16 %v483
    %v2104 = vunpack.c.l.b16 %v484
    %v2105 = vunpack.c.h.b16 %v484
    %v2106 = vunpack.c.l.b16 %v485
    %v2107 = vunpack.c.h.b16 %v485
    %v2108 = vunpack.c.l.b16 %v486
    %v2109 = vunpack.c.h.b16 %v486
    %v2110 = vunpack.c.l.b16 %v487
    %v2111 = vunpack.c.h.b16 %v487
    %v2112 = vunpack.c.l.b16 %v488
    %v2113 = vunpack.c.h.b16 %v488
    %v2114 = vunpack.c.l.b16 %v489
    %v2115 = vunpack.c.h.b16 %v489
    %v2116 = vunpack.c.l.b16 %v490
    %v2117 = vunpack.c.h.b16 %v490
    %v2118 = vunpack.c.l.b16 %v491
    %v2119 = vunpack.c.h.b16 %v491
    %v2120 = vunpack.c.l.b16 %v492
    %v2121 = vunpack.c.h.b16 %v492
    %v2122 = vunpack.c.l.b16 %v493
    %v2123 = vunpack.c.h.b16 %v493
    %v2124 = vunpack.c.l.b16 %v494
    %v2125 = vunpack.c.h.b16 %v494
    %v2126 = vunpack.c.l.b16 %v495
    %v2127 = vunpack.c.h.b16 %v495
    %v2128 = vunpack.c.l.b16 %v496
    %v2129 = vunpack.c.h.b16 %v496
    %v2130 = vunpack.c.l.b16 %v497
    %v2131 = vunpack.c.h.b16 %v497
    %v2132 = vunpack.c.l.b16 %v498
    %v2133 = vunpack.c.h.b16 %v498
    %v2134 = vunpack.c.l.b16 %v499
    %v2135 = vunpack.c.h.b16 %v499
    %v2136 = vunpack.c.l.b16 %v500
    %v2137 = vunpack.c.h.b16 %v500
    %v2138 = vunpack.c.l.b16 %v501
    %v2139 = vunpack.c.h.b16 %v501
    %v2140 = vunpack.c.l.b16 %v502
    %v2141 = vunpack.c.h.b16 %v502
    %v2142 = vunpack.c.l.b16 %v503
    %v2143 = vunpack.c.h.b16 %v503
    %v2144 = vunpack.c.l.b16 %v504
    %v2145 = vunpack.c.h.b16 %v504
    %v2146 = vunpack.c.l.b16 %v505
    %v2147 = vunpack.c.h.b16 %v505
    %v2148 = vunpack.c.l.b16 %v506
    %v2149 = vunpack.c.h.b16 %v506
    %v2150 = vunpack.c.l.b16 %v507
    %v2151 = vunpack.c.h.b16 %v507
    %v2152 = vunpack.c.l.b16 %v508
    %v2153 = vunpack.c.h.b16 %v508
    %v2154 = vunpack.c.l.b16 %v509
    %v2155 = vunpack.c.h.b16 %v509
    %v2156 = vunpack.c.l.b16 %v510
    %v2157 = vunpack.c.h.b16 %v510
    %v2158 = vunpack.c.l.b16 %v511
    %v2159 = vunpack.c.h.b16 %v511
    %v2160 = vunpack.c.l.b16 %v512
    %v2161 = vunpack.c.h.b16 %v512
    %v2162 = vunpack.c.l.b16 %v513
    %v2163 = vunpack.c.h.b16 %v513
    %v2164 = vunpack.c.l.b16 %v514
    %v2165 = vunpack.c.h.b16 %v514
    %v2166 = vunpack.c.l.b16 %v515
    %v2167 = vunpack.c.h.b16 %v515
    %v2168 = vunpack.c.l.b16 %v516
    %v2169 = vunpack.c.h.b16 %v516
    %v2170 = vunpack.c.l.b16 %v517
    %v2171 = vunpack.c.h.b16 %v517
    %v2172 = vunpack.c.l.b16 %v518
    %v2173 = vunpack.c.h.b16 %v518
    %v2174 = vunpack.c.l.b16 %v519
    %v2175 = vunpack.c.h.b16 %v519
    %v2176 = vunpack.c.l.b16 %v520
    %v2177 = vunpack.c.h.b16 %v520
    %v2178 = vunpack.c.l.b16 %v521
    %v2179 = vunpack.c.h.b16 %v521
    %v2180 = vunpack.c.l.b16 %v522
    %v2181 = vunpack.c.h.b16 %v522
    %v2182 = vunpack.c.l.b16 %v523
    %v2183 = vunpack.c.h.b16 %v523
    %v2184 = vunpack.c.l.b16 %v524
    %v2185 = vunpack.c.h.b16 %v524
    %v2186 = vunpack.c.l.b16 %v525
    %v2187 = vunpack.c.h.b16 %v525
    %v2188 = vunpack.c.l.b16 %v526
    %v2189 = vunpack.c.h.b16 %v526
    %v2190 = vunpack.c.l.b16 %v527
    %v2191 = vunpack.c.h.b16 %v527
    %v2192 = vunpack.c.l.b16 %v528
    %v2193 = vunpack.c.h.b16 %v528
    %v2194 = vunpack.c.l.b16 %v529
    %v2195 = vunpack.c.h.b16 %v529
    %v2196 = vunpack.c.l.b16 %v530
    %v2197 = vunpack.c.h.b16 %v530
    %v2198 = vunpack.c.l.b16 %v531
    %v2199 = vunpack.c.h.b16 %v531
    %v2200 = vunpack.c.l.b16 %v532
    %v2201 = vunpack.c.h.b16 %v532
    %v2202 = vunpack.c.l.b16 %v533
    %v2203 = vunpack.c.h.b16 %v533
    %v2204 = vunpack.c.l.b16 %v534
    %v2205 = vunpack.c.h.b16 %v534
    %v2206 = vunpack.c.l.b16 %v535
    %v2207 = vunpack.c.h.b16 %v535
    %v2208 = vunpack.c.l.b16 %v536
    %v2209 = vunpack.c.h.b16 %v536
    %v2210 = vunpack.c.l.b16 %v537
    %v2211 = vunpack.c.h.b16 %v537
    %v2212 = vunpack.c.l.b16 %v538
    %v2213 = vunpack.c.h.b16 %v538
    %v2214 = vunpack.c.l.b16 %v539
    %v2215 = vunpack.c.h.b16 %v539
    %v2216 = vunpack.c.l.b16 %v540
    %v2217 = vunpack.c.h.b16 %v540
    %v2218 = vunpack.c.l.b16 %v541
    %v2219 = vunpack.c.h.b16 %v541
    %v2220 = vunpack.c.l.b16 %v542
    %v2221 = vunpack.c.h.b16 %v542
    %v2222 = vunpack.c.l.b16 %v543
    %v2223 = vunpack.c.h.b16 %v543
    %v2224 = vunpack.c.l.b16 %v544
    %v2225 = vunpack.c.h.b16 %v544
    %v2226 = vunpack.c.l.b16 %v545
    %v2227 = vunpack.c.h.b16 %v545
    %v2228 = vunpack.c.l.b16 %v546
    %v2229 = vunpack.c.h.b16 %v546
    %v2230 = vunpack.c.l.b16 %v547
    %v2231 = vunpack.c.h.b16 %v547
    %v2232 = vunpack.c.l.b16 %v548
    %v2233 = vunpack.c.h.b16 %v548
    %v2234 = vunpack.c.l.b16 %v549
    %v2235 = vunpack.c.h.b16 %v549
    %v2236 = vunpack.c.l.b16 %v550
    %v2237 = vunpack.c.h.b16 %v550
    %v2238 = vunpack.c.l.b16 %v551
    %v2239 = vunpack.c.h.b16 %v551
    %v2240 = vunpack.c.l.b16 %v552
    %v2241 = vunpack.c.h.b16 %v552
    %v2242 = vunpack.c.l.b16 %v553
    %v2243 = vunpack.c.h.b16 %v553
    %v2244 = vunpack.c.l.b16 %v554
    %v2245 = vunpack.c.h.b16 %v554
    %v2246 = vunpack.c.l.b16 %v555
    %v2247 = vunpack.c.h.b16 %v555
    %v2248 = vunpack.c.l.b16 %v556
    %v2249 = vunpack.c.h.b16 %v556
    %v2250 = vunpack.c.l.b16 %v557
    %v2251 = vunpack.c.h.b16 %v557
    %v2252 = vunpack.c.l.b16 %v558
    %v2253 = vunpack.c.h.b16 %v558
    %v2254 = vunpack.c.l.b16 %v559
    %v2255 = vunpack.c.h.b16 %v559
    %v2256 = vunpack.c.l.b16 %v560
    %v2257 = vunpack.c.h.b16 %v560
    %v2258 = vunpack.c.l.b16 %v561
    %v2259 = vunpack.c.h.b16 %v561
    %v2260 = vunpack.c.l.b16 %v562
    %v2261 = vunpack.c.h.b16 %v562
    %v2262 = vunpack.c.l.b16 %v563
    %v2263 = vunpack.c.h.b16 %v563
    %v2264 = vunpack.c.l.b16 %v564
    %v2265 = vunpack.c.h.b16 %v564
    %v2266 = vunpack.c.l.b16 %v565
    %v2267 = vunpack.c.h.b16 %v565
    %v2268 = vunpack.c.l.b16 %v566
    %v2269 = vunpack.c.h.b16 %v566
    %v2270 = vunpack.c.l.b16 %v567
    %v2271 = vunpack.c.h.b16 %v567
    %v2272 = vunpack.c.l.b16 %v568
    %v2273 = vunpack.c.h.b16 %v568
    %v2274 = vunpack.c.l.b16 %v569
    %v2275 = vunpack.c.h.b16 %v569
    %v2276 = vunpack.c.l.b16 %v570
    %v2277 = vunpack.c.h.b16 %v570
    %v2278 = vunpack.c.l.b16 %v571
    %v2279 = vunpack.c.h.b16 %v571
    %v2280 = vunpack.c.l.b16 %v572
    %v2281 = vunpack.c.h.b16 %v572
    %v2282 = vunpack.c.l.b16 %v573
    %v2283 = vunpack.c.h.b16 %v573
    %v2284 = vunpack.c.l.b16 %v574
    %v2285 = vunpack.c.h.b16 %v574
    %v2286 = vunpack.c.l.b16 %v575
    %v2287 = vunpack.c.h.b16 %v575
    %v2288 = vunpack.c.l.b16 %v576
    %v2289 = vunpack.c.h.b16 %v576
    %v2290 = vunpack.c.l.b16 %v577
    %v2291 = vunpack.c.h.b16 %v577
    %v2292 = vunpack.c.l.b16 %v578
    %v2293 = vunpack.c.h.b16 %v578
    %v2294 = vunpack.c.l.b16 %v579
    %v2295 = vunpack.c.h.b16 %v579
    %v2296 = vunpack.c.l.b16 %v580
    %v2297 = vunpack.c.h.b16 %v580
    %v2298 = vunpack.c.l.b16 %v581
    %v2299 = vunpack.c.h.b16 %v581
    %v2300 = vunpack.c.l.b16 %v582
    %v2301 = vunpack.c.h.b16 %v582
    %v2302 = vunpack.c.l.b16 %v583
    %v2303 = vunpack.c.h.b16 %v583
    %v2304 = vunpack.c.l.b16 %v584
    %v2305 = vunpack.c.h.b16 %v584
    %v2306 = vunpack.c.l.b16 %v585
    %v2307 = vunpack.c.h.b16 %v585
    %v2308 = vunpack.c.l.b16 %v586
    %v2309 = vunpack.c.h.b16 %v586
    %v2310 = vunpack.c.l.b16 %v587
    %v2311 = vunpack.c.h.b16 %v587
    %v2312 = vunpack.c.l.b16 %v588
    %v2313 = vunpack.c.h.b16 %v588
    %v2314 = vunpack.c.l.b16 %v589
    %v2315 = vunpack.c.h.b16 %v589
    %v2316 = vunpack.c.l.b16 %v590
    %v2317 = vunpack.c.h.b16 %v590
    %v2318 = vunpack.c.l.b16 %v591
    %v2319 = vunpack.c.h.b16 %v591
    %v2320 = vunpack.c.l.b16 %v592
    %v2321 = vunpack.c.h.b16 %v592
    %v2322 = vunpack.c.l.b16 %v593
    %v2323 = vunpack.c.h.b16 %v593
    %v2324 = vunpack.c.l.b16 %v594
    %v2325 = vunpack.c.h.b16 %v594
    %v2326 = vunpack.c.l.b16 %v595
    %v2327 = vunpack.c.h.b16 %v595
    %v2328 = vunpack.c.l.b16 %v596
    %v2329 = vunpack.c.h.b16 %v596
    %v2330 = vunpack.c.l.b16 %v597
    %v2331 = vunpack.c.h.b16 %v597
    %v2332 = vunpack.c.l.b16 %v598
    %v2333 = vunpack.c.h.b16 %v598
    %v2334 = vunpack.c.l.b16 %v599
    %v2335 = vunpack.c.h.b16 %v599
    %v2336 = vunpack.c.l.b16 %v600
    %v2337 = vunpack.c.h.b16 %v600
    %v2338 = vunpack.c.l.b16 %v601
    %v2339 = vunpack.c.h.b16 %v601
    %v2340 = vunpack.c.l.b16 %v602
    %v2341 = vunpack.c.h.b16 %v602
    %v2342 = vunpack.c.l.b16 %v603
    %v2343 = vunpack.c.h.b16 %v603
    %v2344 = vunpack.c.l.b16 %v604
    %v2345 = vunpack.c.h.b16 %v604
    %v2346 = vunpack.c.l.b16 %v605
    %v2347 = vunpack.c.h.b16 %v605
    %v2348 = vunpack.c.l.b16 %v606
    %v2349 = vunpack.c.h.b16 %v606
    %v2350 = vunpack.c.l.b16 %v607
    %v2351 = vunpack.c.h.b16 %v607
    %v2352 = vunpack.c.l.b16 %v608
    %v2353 = vunpack.c.h.b16 %v608
    %v2354 = vunpack.c.l.b16 %v609
    %v2355 = vunpack.c.h.b16 %v609
    %v2356 = vunpack.c.l.b16 %v610
    %v2357 = vunpack.c.h.b16 %v610
    %v2358 = vunpack.c.l.b16 %v611
    %v2359 = vunpack.c.h.b16 %v611
    %v2360 = vunpack.c.l.b16 %v612
    %v2361 = vunpack.c.h.b16 %v612
    %v2362 = vunpack.c.l.b16 %v613
    %v2363 = vunpack.c.h.b16 %v613
    %v2364 = vunpack.c.l.b16 %v614
    %v2365 = vunpack.c.h.b16 %v614
    %v2366 = vunpack.c.l.b16 %v615
    %v2367 = vunpack.c.h.b16 %v615
    %v2368 = vunpack.c.l.b16 %v616
    %v2369 = vunpack.c.h.b16 %v616
    %v2370 = vunpack.c.l.b16 %v617
    %v2371 = vunpack.c.h.b16 %v617
    %v2372 = vunpack.c.l.b16 %v618
    %v2373 = vunpack.c.h.b16 %v618
    %v2374 = vunpack.c.l.b16 %v619
    %v2375 = vunpack.c.h.b16 %v619
    %v2376 = vunpack.c.l.b16 %v620
    %v2377 = vunpack.c.h.b16 %v620
    %v2378 = vunpack.c.l.b16 %v621
    %v2379 = vunpack.c.h.b16 %v621
    %v2380 = vunpack.c.l.b16 %v622
    %v2381 = vunpack.c.h.b16 %v622
    %v2382 = vunpack.c.l.b16 %v623
    %v2383 = vunpack.c.h.b16 %v623
    %v2384 = vunpack.c.l.b16 %v624
    %v2385 = vunpack.c.h.b16 %v624
    %v2386 = vunpack.c.l.b16 %v625
    %v2387 = vunpack.c.h.b16 %v625
    %v2388 = vunpack.c.l.b16 %v626
    %v2389 = vunpack.c.h.b16 %v626
    %v2390 = vunpack.c.l.b16 %v627
    %v2391 = vunpack.c.h.b16 %v627
    %v2392 = vunpack.c.l.b16 %v628
    %v2393 = vunpack.c.h.b16 %v628
    %v2394 = vunpack.c.l.b16 %v629
    %v2395 = vunpack.c.h.b16 %v629
    %v2396 = vunpack.c.l.b16 %v630
    %v2397 = vunpack.c.h.b16 %v630
    %v2398 = vunpack.c.l.b16 %v631
    %v2399 = vunpack.c.h.b16 %v631
    %v2400 = vunpack.c.l.b16 %v632
    %v2401 = vunpack.c.h.b16 %v632
    %v2402 = vunpack.c.l.b16 %v633
    %v2403 = vunpack.c.h.b16 %v633
    %v2404 = vunpack.c.l.b16 %v634
    %v2405 = vunpack.c.h.b16 %v634
    %v2406 = vunpack.c.l.b16 %v635
    %v2407 = vunpack.c.h.b16 %v635
    %v2408 = vunpack.c.l.b16 %v636
    %v2409 = vunpack.c.h.b16 %v636
    %v2410 = vunpack.c.l.b16 %v637
    %v2411 = vunpack.c.h.b16 %v637
    %v2412 = vunpack.c.l.b16 %v638
    %v2413 = vunpack.c.h.b16 %v638
    %v2414 = vunpack.c.l.b16 %v639
    %v2415 = vunpack.c.h.b16 %v639
    %v2416 = vunpack.c.l.b16 %v640
    %v2417 = vunpack.c.h.b16 %v640
    %v2418 = vunpack.c.l.b16 %v641
    %v2419 = vunpack.c.h.b16 %v641
    %v2420 = vunpack.c.l.b16 %v642
    %v2421 = vunpack.c.h.b16 %v642
    %v2422 = vunpack.c.l.b16 %v643
    %v2423 = vunpack.c.h.b16 %v643
    %v2424 = vunpack.c.l.b16 %v644
    %v2425 = vunpack.c.h.b16 %v644
    %v2426 = vunpack.c.l.b16 %v645
    %v2427 = vunpack.c.h.b16 %v645
    %v2428 = vunpack.c.l.b16 %v646
    %v2429 = vunpack.c.h.b16 %v646
    %v2430 = vunpack.c.l.b16 %v647
    %v2431 = vunpack.c.h.b16 %v647
    %v2432 = vunpack.c.l.b16 %v648
    %v2433 = vunpack.c.h.b16 %v648
    %v2434 = vunpack.c.l.b16 %v649
    %v2435 = vunpack.c.h.b16 %v649
    %v2436 = vunpack.c.l.b16 %v650
    %v2437 = vunpack.c.h.b16 %v650
    %v2438 = vunpack.c.l.b16 %v651
    %v2439 = vunpack.c.h.b16 %v651
    %v2440 = vunpack.c.l.b16 %v652
    %v2441 = vunpack.c.h.b16 %v652
    %v2442 = vunpack.c.l.b16 %v653
    %v2443 = vunpack.c.h.b16 %v653
    %v2444 = vunpack.c.l.b16 %v654
    %v2445 = vunpack.c.h.b16 %v654
    %v2446 = vunpack.c.l.b16 %v655
    %v2447 = vunpack.c.h.b16 %v655
    %v2448 = vunpack.c.l.b16 %v656
    %v2449 = vunpack.c.h.b16 %v656
    %v2450 = vunpack.c.l.b16 %v657
    %v2451 = vunpack.c.h.b16 %v657
    %v2452 = vunpack.c.l.b16 %v658
    %v2453 = vunpack.c.h.b16 %v658
    %v2454 = vunpack.c.l.b16 %v659
    %v2455 = vunpack.c.h.b16 %v659
    %v2456 = vunpack.c.l.b16 %v660
    %v2457 = vunpack.c.h.b16 %v660
    %v2458 = vunpack.c.l.b16 %v661
    %v2459 = vunpack.c.h.b16 %v661
    %v2460 = vunpack.c.l.b16 %v662
    %v2461 = vunpack.c.h.b16 %v662
    %v2462 = vunpack.c.l.b16 %v663
    %v2463 = vunpack.c.h.b16 %v663
    %v2464 = vunpack.c.l.b16 %v664
    %v2465 = vunpack.c.h.b16 %v664
    %v2466 = vunpack.c.l.b16 %v665
    %v2467 = vunpack.c.h.b16 %v665
    %v2468 = vpack.c.b16 %v1328, %v1316
    %v2469 = vpack.c.b16 %v1329, %v1317
    %v2470 = vpack.c.b16 %v1330, %v1318
    %v2471 = vpack.c.b16 %v1331, %v1319
    %v2472 = vpack.c.b16 %v1332, %v1320
    %v2473 = vpack.c.b16 %v1333, %v1321
    %v2474 = vpack.c.b16 %v1334, %v1322
    %v2475 = vpack.c.b16 %v1335, %v1323
    %v2476 = vpack.c.b16 %v1336, %v1324
    %v2477 = vpack.c.b16 %v1337, %v1325
    %v2478 = vpack.c.b16 %v1338, %v1326
    %v2479 = vpack.c.b16 %v1339, %v1327
    %v2480 = vpack.c.b16 %v1352, %v1340
    %v2481 = vpack.c.b16 %v1353, %v1341
    %v2482 = vpack.c.b16 %v1354, %v1342
    %v2483 = vpack.c.b16 %v1355, %v1343
    %v2484 = vpack.c.b16 %v1356, %v1344
    %v2485 = vpack.c.b16 %v1357, %v1345
    %v2486 = vpack.c.b16 %v1358, %v1346
    %v2487 = vpack.c.b16 %v1359, %v1347
    %v2488 = vpack.c.b16 %v1360, %v1348
    %v2489 = vpack.c.b16 %v1361, %v1349
    %v2490 = vpack.c.b16 %v1362, %v1350
    %v2491 = vpack.c.b16 %v1363, %v1351
    %v2492 = vpack.c.b16 %v1376, %v1364
    %v2493 = vpack.c.b16 %v1377, %v1365
    %v2494 = vpack.c.b16 %v1378, %v1366
    %v2495 = vpack.c.b16 %v1379, %v1367
    %v2496 = vpack.c.b16 %v1380, %v1368
    %v2497 = vpack.c.b16 %v1381, %v1369
    %v2498 = vpack.c.b16 %v1382, %v1370
    %v2499 = vpack.c.b16 %v1383, %v1371
    %v2500 = vpack.c.b16 %v1384, %v1372
    %v2501 = vpack.c.b16 %v1385, %v1373
    %v2502 = vpack.c.b16 %v1386, %v1374
    %v2503 = vpack.c.b16 %v1387, %v1375
    %v2504 = vpack.c.b16 %v1400, %v1388
    %v2505 = vpack.c.b16 %v1401, %v1389
    %v2506 = vpack.c.b16 %v1402, %v1390
    %v2507 = vpack.c.b16 %v1403, %v1391
    %v2508 = vpack.c.b16 %v1404, %v1392
    %v2509 = vpack.c.b16 %v1405, %v1393
    %v2510 = vpack.c.b16 %v1406, %v1394
    %v2511 = vpack.c.b16 %v1407, %v1395
    %v2512 = vpack.c.b16 %v1408, %v1396
    %v2513 = vpack.c.b16 %v1409, %v1397
    %v2514 = vpack.c.b16 %v1410, %v1398
    %v2515 = vpack.c.b16 %v1411, %v1399
    %v2516 = vpack.c.b16 %v1424, %v1412
    %v2517 = vpack.c.b16 %v1425, %v1413
    %v2518 = vpack.c.b16 %v1426, %v1414
    %v2519 = vpack.c.b16 %v1427, %v1415
    %v2520 = vpack.c.b16 %v1428, %v1416
    %v2521 = vpack.c.b16 %v1429, %v1417
    %v2522 = vpack.c.b16 %v1430, %v1418
    %v2523 = vpack.c.b16 %v1431, %v1419
    %v2524 = vpack.c.b16 %v1432, %v1420
    %v2525 = vpack.c.b16 %v1433, %v1421
    %v2526 = vpack.c.b16 %v1434, %v1422
    %v2527 = vpack.c.b16 %v1435, %v1423
    %v2528 = vpack.c.b16 %v1448, %v1436
    %v2529 = vpack.c.b16 %v1449, %v1437
    %v2530 = vpack.c.b16 %v1450, %v1438
    %v2531 = vpack.c.b16 %v1451, %v1439
    %v2532 = vpack.c.b16 %v1452, %v1440
    %v2533 = vpack.c.b16 %v1453, %v1441
    %v2534 = vpack.c.b16 %v1454, %v1442
    %v2535 = vpack.c.b16 %v1455, %v1443
    %v2536 = vpack.c.b16 %v1456, %v1444
    %v2537 = vpack.c.b16 %v1457, %v1445
    %v2538 = vpack.c.b16 %v1458, %v1446
    %v2539 = vpack.c.b16 %v1459, %v1447
    %v2540 = vpack.c.b16 %v1472, %v1460
    %v2541 = vpack.c.b16 %v1473, %v1461
    %v2542 = vpack.c.b16 %v1474, %v1462
    %v2543 = vpack.c.b16 %v1475, %v1463
    %v2544 = vpack.c.b16 %v1476, %v1464
    %v2545 = vpack.c.b16 %v1477, %v1465
    %v2546 = vpack.c.b16 %v1478, %v1466
    %v2547 = vpack.c.b16 %v1479, %v1467
    %v2548 = vpack.c.b16 %v1480, %v1468
    %v2549 = vpack.c.b16 %v1481, %v1469
    %v2550 = vpack.c.b16 %v1482, %v1470
    %v2551 = vpack.c.b16 %v1483, %v1471
    %v2552 = vpack.c.b16 %v1496, %v1484
    %v2553 = vpack.c.b16 %v1497, %v1485
    %v2554 = vpack.c.b16 %v1498, %v1486
    %v2555 = vpack.c.b16 %v1499, %v1487
    %v2556 = vpack.c.b16 %v1500, %v1488
    %v2557 = vpack.c.b16 %v1501, %v1489
    %v2558 = vpack.c.b16 %v1502, %v1490
    %v2559 = vpack.c.b16 %v1503, %v1491
    %v2560 = vpack.c.b16 %v1504, %v1492
    %v2561 = vpack.c.b16 %v1505, %v1493
    %v2562 = vpack.c.b16 %v1506, %v1494
    %v2563 = vpack.c.b16 %v1507, %v1495
    %v2564 = vpack.c.b16 %v1520, %v1508
    %v2565 = vpack.c.b16 %v1521, %v1509
    %v2566 = vpack.c.b16 %v1522, %v1510
    %v2567 = vpack.c.b16 %v1523, %v1511
    %v2568 = vpack.c.b16 %v1524, %v1512
    %v2569 = vpack.c.b16 %v1525, %v1513
    %v2570 = vpack.c.b16 %v1526, %v1514
    %v2571 = vpack.c.b16 %v1527, %v1515
    %v2572 = vpack.c.b16 %v1528, %v1516
    %v2573 = vpack.c.b16 %v1529, %v1517
    %v2574 = vpack.c.b16 %v1530, %v1518
    %v2575 = vpack.c.b16 %v1531, %v1519
    %v2576 = vpack.c.b16 %v1544, %v1532
    %v2577 = vpack.c.b16 %v1545, %v1533
    %v2578 = vpack.c.b16 %v1546, %v1534
    %v2579 = vpack.c.b16 %v1547, %v1535
    %v2580 = vpack.c.b16 %v1548, %v1536
    %v2581 = vpack.c.b16 %v1549, %v1537
    %v2582 = vpack.c.b16 %v1550, %v1538
    %v2583 = vpack.c.b16 %v1551, %v1539
    %v2584 = vpack.c.b16 %v1552, %v1540
    %v2585 = vpack.c.b16 %v1553, %v1541
    %v2586 = vpack.c.b16 %v1554, %v1542
    %v2587 = vpack.c.b16 %v1555, %v1543
    %v2588 = vpack.c.b16 %v1568, %v1556
    %v2589 = vpack.c.b16 %v1569, %v1557
    %v2590 = vpack.c.b16 %v1570, %v1558
    %v2591 = vpack.c.b16 %v1571, %v1559
    %v2592 = vpack.c.b16 %v1572, %v1560
    %v2593 = vpack.c.b16 %v1573, %v1561
    %v2594 = vpack.c.b16 %v1574, %v1562
    %v2595 = vpack.c.b16 %v1575, %v1563
    %v2596 = vpack.c.b16 %v1576, %v1564
    %v2597 = vpack.c.b16 %v1577, %v1565
    %v2598 = vpack.c.b16 %v1578, %v1566
    %v2599 = vpack.c.b16 %v1579, %v1567
    %v2600 = vpack.c.b16 %v1592, %v1580
    %v2601 = vpack.c.b16 %v1593, %v1581
    %v2602 = vpack.c.b16 %v1594, %v1582
    %v2603 = vpack.c.b16 %v1595, %v1583
    %v2604 = vpack.c.b16 %v1596, %v1584
    %v2605 = vpack.c.b16 %v1597, %v1585
    %v2606 = vpack.c.b16 %v1598, %v1586
    %v2607 = vpack.c.b16 %v1599, %v1587
    %v2608 = vpack.c.b16 %v1600, %v1588
    %v2609 = vpack.c.b16 %v1601, %v1589
    %v2610 = vpack.c.b16 %v1602, %v1590
    %v2611 = vpack.c.b16 %v1603, %v1591
    %v2612 = vpack.c.b16 %v1616, %v1604
    %v2613 = vpack.c.b16 %v1617, %v1605
    %v2614 = vpack.c.b16 %v1618, %v1606
    %v2615 = vpack.c.b16 %v1619, %v1607
    %v2616 = vpack.c.b16 %v1620, %v1608
    %v2617 = vpack.c.b16 %v1621, %v1609
    %v2618 = vpack.c.b16 %v1622, %v1610
    %v2619 = vpack.c.b16 %v1623, %v1611
    %v2620 = vpack.c.b16 %v1624, %v1612
    %v2621 = vpack.c.b16 %v1625, %v1613
    %v2622 = vpack.c.b16 %v1626, %v1614
    %v2623 = vpack.c.b16 %v1627, %v1615
    %v2624 = vpack.c.b16 %v1640, %v1628
    %v2625 = vpack.c.b16 %v1641, %v1629
    %v2626 = vpack.c.b16 %v1642, %v1630
    %v2627 = vpack.c.b16 %v1643, %v1631
    %v2628 = vpack.c.b16 %v1644, %v1632
    %v2629 = vpack.c.b16 %v1645, %v1633
    %v2630 = vpack.c.b16 %v1646, %v1634
    %v2631 = vpack.c.b16 %v1647, %v1635
    %v2632 = vpack.c.b16 %v1648, %v1636
    %v2633 = vpack.c.b16 %v1649, %v1637
    %v2634 = vpack.c.b16 %v1650, %v1638
    %v2635 = vpack.c.b16 %v1651, %v1639
    %v2636 = vpack.c.b16 %v1664, %v1652
    %v2637 = vpack.c.b16 %v1665, %v1653
    %v2638 = vpack.c.b16 %v1666, %v1654
    %v2639 = vpack.c.b16 %v1667, %v1655
    %v2640 = vpack.c.b16 %v1668, %v1656
    %v2641 = vpack.c.b16 %v1669, %v1657
    %v2642 = vpack.c.b16 %v1670, %v1658
    %v2643 = vpack.c.b16 %v1671, %v1659
    %v2644 = vpack.c.b16 %v1672, %v1660
    %v2645 = vpack.c.b16 %v1673, %v1661
    %v2646 = vpack.c.b16 %v1674, %v1662
    %v2647 = vpack.c.b16 %v1675, %v1663
    %v2648 = vpack.c.b16 %v1688, %v1676
    %v2649 = vpack.c.b16 %v1689, %v1677
    %v2650 = vpack.c.b16 %v1690, %v1678
    %v2651 = vpack.c.b16 %v1691, %v1679
    %v2652 = vpack.c.b16 %v1692, %v1680
    %v2653 = vpack.c.b16 %v1693, %v1681
    %v2654 = vpack.c.b16 %v1694, %v1682
    %v2655 = vpack.c.b16 %v1695, %v1683
    %v2656 = vpack.c.b16 %v1696, %v1684
    %v2657 = vpack.c.b16 %v1697, %v1685
    %v2658 = vpack.c.b16 %v1698, %v1686
    %v2659 = vpack.c.b16 %v1699, %v1687
    %v2660 = vpack.c.b16 %v1712, %v1700
    %v2661 = vpack.c.b16 %v1713, %v1701
    %v2662 = vpack.c.b16 %v1714, %v1702
    %v2663 = vpack.c.b16 %v1715, %v1703
    %v2664 = vpack.c.b16 %v1716, %v1704
    %v2665 = vpack.c.b16 %v1717, %v1705
    %v2666 = vpack.c.b16 %v1718, %v1706
    %v2667 = vpack.c.b16 %v1719, %v1707
    %v2668 = vpack.c.b16 %v1720, %v1708
    %v2669 = vpack.c.b16 %v1721, %v1709
    %v2670 = vpack.c.b16 %v1722, %v1710
    %v2671 = vpack.c.b16 %v1723, %v1711
    %v2672 = vpack.c.b16 %v1736, %v1724
    %v2673 = vpack.c.b16 %v1737, %v1725
    %v2674 = vpack.c.b16 %v1738, %v1726
    %v2675 = vpack.c.b16 %v1739, %v1727
    %v2676 = vpack.c.b16 %v1740, %v1728
    %v2677 = vpack.c.b16 %v1741, %v1729
    %v2678 = vpack.c.b16 %v1742, %v1730
    %v2679 = vpack.c.b16 %v1743, %v1731
    %v2680 = vpack.c.b16 %v1744, %v1732
    %v2681 = vpack.c.b16 %v1745, %v1733
    %v2682 = vpack.c.b16 %v1746, %v1734
    %v2683 = vpack.c.b16 %v1747, %v1735
    %v2684 = vpack.c.b16 %v1760, %v1748
    %v2685 = vpack.c.b16 %v1761, %v1749
    %v2686 = vpack.c.b16 %v1762, %v1750
    %v2687 = vpack.c.b16 %v1763, %v1751
    %v2688 = vpack.c.b16 %v1764, %v1752
    %v2689 = vpack.c.b16 %v1765, %v1753
    %v2690 = vpack.c.b16 %v1766, %v1754
    %v2691 = vpack.c.b16 %v1767, %v1755
    %v2692 = vpack.c.b16 %v1768, %v1756
    %v2693 = vpack.c.b16 %v1769, %v1757
    %v2694 = vpack.c.b16 %v1770, %v1758
    %v2695 = vpack.c.b16 %v1771, %v1759
    %v2696 = vpack.c.b16 %v1784, %v1772
    %v2697 = vpack.c.b16 %v1785, %v1773
    %v2698 = vpack.c.b16 %v1786, %v1774
    %v2699 = vpack.c.b16 %v1787, %v1775
    %v2700 = vpack.c.b16 %v1788, %v1776
    %v2701 = vpack.c.b16 %v1789, %v1777
    %v2702 = vpack.c.b16 %v1790, %v1778
    %v2703 = vpack.c.b16 %v1791, %v1779
    %v2704 = vpack.c.b16 %v1792, %v1780
    %v2705 = vpack.c.b16 %v1793, %v1781
    %v2706 = vpack.c.b16 %v1794, %v1782
    %v2707 = vpack.c.b16 %v1795, %v1783
    %v2708 = vpack.c.b16 %v1808, %v1796
    %v2709 = vpack.c.b16 %v1809, %v1797
    %v2710 = vpack.c.b16 %v1810, %v1798
    %v2711 = vpack.c.b16 %v1811, %v1799
    %v2712 = vpack.c.b16 %v1812, %v1800
    %v2713 = vpack.c.b16 %v1813, %v1801
    %v2714 = vpack.c.b16 %v1814, %v1802
    %v2715 = vpack.c.b16 %v1815, %v1803
    %v2716 = vpack.c.b16 %v1816, %v1804
    %v2717 = vpack.c.b16 %v1817, %v1805
    %v2718 = vpack.c.b16 %v1818, %v1806
    %v2719 = vpack.c.b16 %v1819, %v1807
    %v2720 = vpack.c.b16 %v1832, %v1820
    %v2721 = vpack.c.b16 %v1833, %v1821
    %v2722 = vpack.c.b16 %v1834, %v1822
    %v2723 = vpack.c.b16 %v1835, %v1823
    %v2724 = vpack.c.b16 %v1836, %v1824
    %v2725 = vpack.c.b16 %v1837, %v1825
    %v2726 = vpack.c.b16 %v1838, %v1826
    %v2727 = vpack.c.b16 %v1839, %v1827
    %v2728 = vpack.c.b16 %v1840, %v1828
    %v2729 = vpack.c.b16 %v1841, %v1829
    %v2730 = vpack.c.b16 %v1842, %v1830
    %v2731 = vpack.c.b16 %v1843, %v1831
    %v2732 = vpack.c.b16 %v1856, %v1844
    %v2733 = vpack.c.b16 %v1857, %v1845
    %v2734 = vpack.c.b16 %v1858, %v1846
    %v2735 = vpack.c.b16 %v1859, %v1847
    %v2736 = vpack.c.b16 %v1860, %v1848
    %v2737 = vpack.c.b16 %v1861, %v1849
    %v2738 = vpack.c.b16 %v1862, %v1850
    %v2739 = vpack.c.b16 %v1863, %v1851
    %v2740 = vpack.c.b16 %v1864, %v1852
    %v2741 = vpack.c.b16 %v1865, %v1853
    %v2742 = vpack.c.b16 %v1866, %v1854
    %v2743 = vpack.c.b16 %v1867, %v1855
    %v2744 = vpack.c.b16 %v1880, %v1868
    %v2745 = vpack.c.b16 %v1881, %v1869
    %v2746 = vpack.c.b16 %v1882, %v1870
    %v2747 = vpack.c.b16 %v1883, %v1871
    %v2748 = vpack.c.b16 %v1884, %v1872
    %v2749 = vpack.c.b16 %v1885, %v1873
    %v2750 = vpack.c.b16 %v1886, %v1874
    %v2751 = vpack.c.b16 %v1887, %v1875
    %v2752 = vpack.c.b16 %v1888, %v1876
    %v2753 = vpack.c.b16 %v1889, %v1877
    %v2754 = vpack.c.b16 %v1890, %v1878
    %v2755 = vpack.c.b16 %v1891, %v1879
    %v2756 = vpack.c.b16 %v1904, %v1892
    %v2757 = vpack.c.b16 %v1905, %v1893
    %v2758 = vpack.c.b16 %v1906, %v1894
    %v2759 = vpack.c.b16 %v1907, %v1895
    %v2760 = vpack.c.b16 %v1908, %v1896
    %v2761 = vpack.c.b16 %v1909, %v1897
    %v2762 = vpack.c.b16 %v1910, %v1898
    %v2763 = vpack.c.b16 %v1911, %v1899
    %v2764 = vpack.c.b16 %v1912, %v1900
    %v2765 = vpack.c.b16 %v1913, %v1901
    %v2766 = vpack.c.b16 %v1914, %v1902
    %v2767 = vpack.c.b16 %v1915, %v1903
    %v2768 = vpack.c.b16 %v1928, %v1916
    %v2769 = vpack.c.b16 %v1929, %v1917
    %v2770 = vpack.c.b16 %v1930, %v1918
    %v2771 = vpack.c.b16 %v1931, %v1919
    %v2772 = vpack.c.b16 %v1932, %v1920
    %v2773 = vpack.c.b16 %v1933, %v1921
    %v2774 = vpack.c.b16 %v1934, %v1922
    %v2775 = vpack.c.b16 %v1935, %v1923
    %v2776 = vpack.c.b16 %v1936, %v1924
    %v2777 = vpack.c.b16 %v1937, %v1925
    %v2778 = vpack.c.b16 %v1938, %v1926
    %v2779 = vpack.c.b16 %v1939, %v1927
    %v2780 = vpack.c.b16 %v1952, %v1940
    %v2781 = vpack.c.b16 %v1953, %v1941
    %v2782 = vpack.c.b16 %v1954, %v1942
    %v2783 = vpack.c.b16 %v1955, %v1943
    %v2784 = vpack.c.b16 %v1956, %v1944
    %v2785 = vpack.c.b16 %v1957, %v1945
    %v2786 = vpack.c.b16 %v1958, %v1946
    %v2787 = vpack.c.b16 %v1959, %v1947
    %v2788 = vpack.c.b16 %v1960, %v1948
    %v2789 = vpack.c.b16 %v1961, %v1949
    %v2790 = vpack.c.b16 %v1962, %v1950
    %v2791 = vpack.c.b16 %v1963, %v1951
    %v2792 = vpack.c.b16 %v1976, %v1964
    %v2793 = vpack.c.b16 %v1977, %v1965
    %v2794 = vpack.c.b16 %v1978, %v1966
    %v2795 = vpack.c.b16 %v1979, %v1967
    %v2796 = vpack.c.b16 %v1980, %v1968
    %v2797 = vpack.c.b16 %v1981, %v1969
    %v2798 = vpack.c.b16 %v1982, %v1970
    %v2799 = vpack.c.b16 %v1983, %v1971
    %v2800 = vpack.c.b16 %v1984, %v1972
    %v2801 = vpack.c.b16 %v1985, %v1973
    %v2802 = vpack.c.b16 %v1986, %v1974
    %v2803 = vpack.c.b16 %v1987, %v1975
    %v2804 = vpack.c.b16 %v2000, %v1988
    %v2805 = vpack.c.b16 %v2001, %v1989
    %v2806 = vpack.c.b16 %v2002, %v1990
    %v2807 = vpack.c.b16 %v2003, %v1991
    %v2808 = vpack.c.b16 %v2004, %v1992
    %v2809 = vpack.c.b16 %v2005, %v1993
    %v2810 = vpack.c.b16 %v2006, %v1994
    %v2811 = vpack.c.b16 %v2007, %v1995
    %v2812 = vpack.c.b16 %v2008, %v1996
    %v2813 = vpack.c.b16 %v2009, %v1997
    %v2814 = vpack.c.b16 %v2010, %v1998
    %v2815 = vpack.c.b16 %v2011, %v1999
    %v2816 = vpack.c.b16 %v2024, %v2012
    %v2817 = vpack.c.b16 %v2025, %v2013
    %v2818 = vpack.c.b16 %v2026, %v2014
    %v2819 = vpack.c.b16 %v2027, %v2015
    %v2820 = vpack.c.b16 %v2028, %v2016
    %v2821 = vpack.c.b16 %v2029, %v2017
    %v2822 = vpack.c.b16 %v2030, %v2018
    %v2823 = vpack.c.b16 %v2031, %v2019
    %v2824 = vpack.c.b16 %v2032, %v2020
    %v2825 = vpack.c.b16 %v2033, %v2021
    %v2826 = vpack.c.b16 %v2034, %v2022
    %v2827 = vpack.c.b16 %v2035, %v2023
    %v2828 = vpack.c.b16 %v2048, %v2036
    %v2829 = vpack.c.b16 %v2049, %v2037
    %v2830 = vpack.c.b16 %v2050, %v2038
    %v2831 = vpack.c.b16 %v2051, %v2039
    %v2832 = vpack.c.b16 %v2052, %v2040
    %v2833 = vpack.c.b16 %v2053, %v2041
    %v2834 = vpack.c.b16 %v2054, %v2042
    %v2835 = vpack.c.b16 %v2055, %v2043
    %v2836 = vpack.c.b16 %v2056, %v2044
    %v2837 = vpack.c.b16 %v2057, %v2045
    %v2838 = vpack.c.b16 %v2058, %v2046
    %v2839 = vpack.c.b16 %v2059, %v2047
    %v2840 = vpack.c.b16 %v2072, %v2060
    %v2841 = vpack.c.b16 %v2073, %v2061
    %v2842 = vpack.c.b16 %v2074, %v2062
    %v2843 = vpack.c.b16 %v2075, %v2063
    %v2844 = vpack.c.b16 %v2076, %v2064
    %v2845 = vpack.c.b16 %v2077, %v2065
    %v2846 = vpack.c.b16 %v2078, %v2066
    %v2847 = vpack.c.b16 %v2079, %v2067
    %v2848 = vpack.c.b16 %v2080, %v2068
    %v2849 = vpack.c.b16 %v2081, %v2069
    %v2850 = vpack.c.b16 %v2082, %v2070
    %v2851 = vpack.c.b16 %v2083, %v2071
    %v2852 = vpack.c.b16 %v2096, %v2084
    %v2853 = vpack.c.b16 %v2097, %v2085
    %v2854 = vpack.c.b16 %v2098, %v2086
    %v2855 = vpack.c.b16 %v2099, %v2087
    %v2856 = vpack.c.b16 %v2100, %v2088
    %v2857 = vpack.c.b16 %v2101, %v2089
    %v2858 = vpack.c.b16 %v2102, %v2090
    %v2859 = vpack.c.b16 %v2103, %v2091
    %v2860 = vpack.c.b16 %v2104, %v2092
    %v2861 = vpack.c.b16 %v2105, %v2093
    %v2862 = vpack.c.b16 %v2106, %v2094
    %v2863 = vpack.c.b16 %v2107, %v2095
    %v2864 = vpack.c.b16 %v2120, %v2108
    %v2865 = vpack.c.b16 %v2121, %v2109
    %v2866 = vpack.c.b16 %v2122, %v2110
    %v2867 = vpack.c.b16 %v2123, %v2111
    %v2868 = vpack.c.b16 %v2124, %v2112
    %v2869 = vpack.c.b16 %v2125, %v2113
    %v2870 = vpack.c.b16 %v2126, %v2114
    %v2871 = vpack.c.b16 %v2127, %v2115
    %v2872 = vpack.c.b16 %v2128, %v2116
    %v2873 = vpack.c.b16 %v2129, %v2117
    %v2874 = vpack.c.b16 %v2130, %v2118
    %v2875 = vpack.c.b16 %v2131, %v2119
    %v2876 = vpack.c.b16 %v2144, %v2132
    %v2877 = vpack.c.b16 %v2145, %v2133
    %v2878 = vpack.c.b16 %v2146, %v2134
    %v2879 = vpack.c.b16 %v2147, %v2135
    %v2880 = vpack.c.b16 %v2148, %v2136
    %v2881 = vpack.c.b16 %v2149, %v2137
    %v2882 = vpack.c.b16 %v2150, %v2138
    %v2883 = vpack.c.b16 %v2151, %v2139
    %v2884 = vpack.c.b16 %v2152, %v2140
    %v2885 = vpack.c.b16 %v2153, %v2141
    %v2886 = vpack.c.b16 %v2154, %v2142
    %v2887 = vpack.c.b16 %v2155, %v2143
    %v2888 = vpack.c.b16 %v2168, %v2156
    %v2889 = vpack.c.b16 %v2169, %v2157
    %v2890 = vpack.c.b16 %v2170, %v2158
    %v2891 = vpack.c.b16 %v2171, %v2159
    %v2892 = vpack.c.b16 %v2172, %v2160
    %v2893 = vpack.c.b16 %v2173, %v2161
    %v2894 = vpack.c.b16 %v2174, %v2162
    %v2895 = vpack.c.b16 %v2175, %v2163
    %v2896 = vpack.c.b16 %v2176, %v2164
    %v2897 = vpack.c.b16 %v2177, %v2165
    %v2898 = vpack.c.b16 %v2178, %v2166
    %v2899 = vpack.c.b16 %v2179, %v2167
    %v2900 = vpack.c.b16 %v2192, %v2180
    %v2901 = vpack.c.b16 %v2193, %v2181
    %v2902 = vpack.c.b16 %v2194, %v2182
    %v2903 = vpack.c.b16 %v2195, %v2183
    %v2904 = vpack.c.b16 %v2196, %v2184
    %v2905 = vpack.c.b16 %v2197, %v2185
    %v2906 = vpack.c.b16 %v2198, %v2186
    %v2907 = vpack.c.b16 %v2199, %v2187
    %v2908 = vpack.c.b16 %v2200, %v2188
    %v2909 = vpack.c.b16 %v2201, %v2189
    %v2910 = vpack.c.b16 %v2202, %v2190
    %v2911 = vpack.c.b16 %v2203, %v2191
    %v2912 = vpack.c.b16 %v2216, %v2204
    %v2913 = vpack.c.b16 %v2217, %v2205
    %v2914 = vpack.c.b16 %v2218, %v2206
    %v2915 = vpack.c.b16 %v2219, %v2207
    %v2916 = vpack.c.b16 %v2220, %v2208
    %v2917 = vpack.c.b16 %v2221, %v2209
    %v2918 = vpack.c.b16 %v2222, %v2210
    %v2919 = vpack.c.b16 %v2223, %v2211
    %v2920 = vpack.c.b16 %v2224, %v2212
    %v2921 = vpack.c.b16 %v2225, %v2213
    %v2922 = vpack.c.b16 %v2226, %v2214
    %v2923 = vpack.c.b16 %v2227, %v2215
    %v2924 = vpack.c.b16 %v2240, %v2228
    %v2925 = vpack.c.b16 %v2241, %v2229
    %v2926 = vpack.c.b16 %v2242, %v2230
    %v2927 = vpack.c.b16 %v2243, %v2231
    %v2928 = vpack.c.b16 %v2244, %v2232
    %v2929 = vpack.c.b16 %v2245, %v2233
    %v2930 = vpack.c.b16 %v2246, %v2234
    %v2931 = vpack.c.b16 %v2247, %v2235
    %v2932 = vpack.c.b16 %v2248, %v2236
    %v2933 = vpack.c.b16 %v2249, %v2237
    %v2934 = vpack.c.b16 %v2250, %v2238
    %v2935 = vpack.c.b16 %v2251, %v2239
    %v2936 = vpack.c.b16 %v2264, %v2252
    %v2937 = vpack.c.b16 %v2265, %v2253
    %v2938 = vpack.c.b16 %v2266, %v2254
    %v2939 = vpack.c.b16 %v2267, %v2255
    %v2940 = vpack.c.b16 %v2268, %v2256
    %v2941 = vpack.c.b16 %v2269, %v2257
    %v2942 = vpack.c.b16 %v2270, %v2258
    %v2943 = vpack.c.b16 %v2271, %v2259
    %v2944 = vpack.c.b16 %v2272, %v2260
    %v2945 = vpack.c.b16 %v2273, %v2261
    %v2946 = vpack.c.b16 %v2274, %v2262
    %v2947 = vpack.c.b16 %v2275, %v2263
    %v2948 = vpack.c.b16 %v2288, %v2276
    %v2949 = vpack.c.b16 %v2289, %v2277
    %v2950 = vpack.c.b16 %v2290, %v2278
    %v2951 = vpack.c.b16 %v2291, %v2279
    %v2952 = vpack.c.b16 %v2292, %v2280
    %v2953 = vpack.c.b16 %v2293, %v2281
    %v2954 = vpack.c.b16 %v2294, %v2282
    %v2955 = vpack.c.b16 %v2295, %v2283
    %v2956 = vpack.c.b16 %v2296, %v2284
    %v2957 = vpack.c.b16 %v2297, %v2285
    %v2958 = vpack.c.b16 %v2298, %v2286
    %v2959 = vpack.c.b16 %v2299, %v2287
    %v2960 = vpack.c.b16 %v2312, %v2300
    %v2961 = vpack.c.b16 %v2313, %v2301
    %v2962 = vpack.c.b16 %v2314, %v2302
    %v2963 = vpack.c.b16 %v2315, %v2303
    %v2964 = vpack.c.b16 %v2316, %v2304
    %v2965 = vpack.c.b16 %v2317, %v2305
    %v2966 = vpack.c.b16 %v2318, %v2306
    %v2967 = vpack.c.b16 %v2319, %v2307
    %v2968 = vpack.c.b16 %v2320, %v2308
    %v2969 = vpack.c.b16 %v2321, %v2309
    %v2970 = vpack.c.b16 %v2322, %v2310
    %v2971 = vpack.c.b16 %v2323, %v2311
    %v2972 = vpack.c.b16 %v2336, %v2324
    %v2973 = vpack.c.b16 %v2337, %v2325
    %v2974 = vpack.c.b16 %v2338, %v2326
    %v2975 = vpack.c.b16 %v2339, %v2327
    %v2976 = vpack.c.b16 %v2340, %v2328
    %v2977 = vpack.c.b16 %v2341, %v2329
    %v2978 = vpack.c.b16 %v2342, %v2330
    %v2979 = vpack.c.b16 %v2343, %v2331
    %v2980 = vpack.c.b16 %v2344, %v2332
    %v2981 = vpack.c.b16 %v2345, %v2333
    %v2982 = vpack.c.b16 %v2346, %v2334
    %v2983 = vpack.c.b16 %v2347, %v2335
    %v2984 = vpack.c.b16 %v2360, %v2348
    %v2985 = vpack.c.b16 %v2361, %v2349
    %v2986 = vpack.c.b16 %v2362, %v2350
    %v2987 = vpack.c.b16 %v2363, %v2351
    %v2988 = vpack.c.b16 %v2364, %v2352
    %v2989 = vpack.c.b16 %v2365, %v2353
    %v2990 = vpack.c.b16 %v2366, %v2354
    %v2991 = vpack.c.b16 %v2367, %v2355
    %v2992 = vpack.c.b16 %v2368, %v2356
    %v2993 = vpack.c.b16 %v2369, %v2357
    %v2994 = vpack.c.b16 %v2370, %v2358
    %v2995 = vpack.c.b16 %v2371, %v2359
    %v2996 = vpack.c.b16 %v2384, %v2372
    %v2997 = vpack.c.b16 %v2385, %v2373
    %v2998 = vpack.c.b16 %v2386, %v2374
    %v2999 = vpack.c.b16 %v2387, %v2375
    %v3000 = vpack.c.b16 %v2388, %v2376
    %v3001 = vpack.c.b16 %v2389, %v2377
    %v3002 = vpack.c.b16 %v2390, %v2378
    %v3003 = vpack.c.b16 %v2391, %v2379
    %v3004 = vpack.c.b16 %v2392, %v2380
    %v3005 = vpack.c.b16 %v2393, %v2381
    %v3006 = vpack.c.b16 %v2394, %v2382
    %v3007 = vpack.c.b16 %v2395, %v2383
    %v3008 = vpack.c.b16 %v2408, %v2396
    %v3009 = vpack.c.b16 %v2409, %v2397
    %v3010 = vpack.c.b16 %v2410, %v2398
    %v3011 = vpack.c.b16 %v2411, %v2399
    %v3012 = vpack.c.b16 %v2412, %v2400
    %v3013 = vpack.c.b16 %v2413, %v2401
    %v3014 = vpack.c.b16 %v2414, %v2402
    %v3015 = vpack.c.b16 %v2415, %v2403
    %v3016 = vpack.c.b16 %v2416, %v2404
    %v3017 = vpack.c.b16 %v2417, %v2405
    %v3018 = vpack.c.b16 %v2418, %v2406
    %v3019 = vpack.c.b16 %v2419, %v2407
    %v3020 = vpack.c.b16 %v2432, %v2420
    %v3021 = vpack.c.b16 %v2433, %v2421
    %v3022 = vpack.c.b16 %v2434, %v2422
    %v3023 = vpack.c.b16 %v2435, %v2423
    %v3024 = vpack.c.b16 %v2436, %v2424
    %v3025 = vpack.c.b16 %v2437, %v2425
    %v3026 = vpack.c.b16 %v2438, %v2426
    %v3027 = vpack.c.b16 %v2439, %v2427
    %v3028 = vpack.c.b16 %v2440, %v2428
    %v3029 = vpack.c.b16 %v2441, %v2429
    %v3030 = vpack.c.b16 %v2442, %v2430
    %v3031 = vpack.c.b16 %v2443, %v2431
    %v3032 = vpack.c.b16 %v2456, %v2444
    %v3033 = vpack.c.b16 %v2457, %v2445
    %v3034 = vpack.c.b16 %v2458, %v2446
    %v3035 = vpack.c.b16 %v2459, %v2447
    %v3036 = vpack.c.b16 %v2460, %v2448
    %v3037 = vpack.c.b16 %v2461, %v2449
    %v3038 = vpack.c.b16 %v2462, %v2450
    %v3039 = vpack.c.b16 %v2463, %v2451
    %v3040 = vpack.c.b16 %v2464, %v2452
    %v3041 = vpack.c.b16 %v2465, %v2453
    %v3042 = vpack.c.b16 %v2466, %v2454
    %v3043 = vpack.c.b16 %v2467, %v2455
    %3620 = vmatprep.subr.bf16.mxu0 %v2469
    %3621 = vmatpush1.bf16.xpose.msra.mxu0 %v2468
    %3622 = vmatprep.subr.bf16.mxu0 %v2481
    %3623 = vmatpush1.bf16.xpose.msra.mxu0 %v2480
    %3624 = vmatprep.subr.bf16.mxu0 %v2493
    %3625 = vmatpush1.bf16.xpose.msra.mxu0 %v2492
    %3626 = vmatprep.subr.bf16.mxu0 %v2505
    %3627 = vmatpush1.bf16.xpose.msra.mxu0 %v2504
    %3628 = vmatprep.subr.bf16.mxu0 %v2517
    %3629 = vmatpush1.bf16.xpose.msra.mxu0 %v2516
    %3630 = vmatprep.subr.bf16.mxu0 %v2529
    %3631 = vmatpush1.bf16.xpose.msra.mxu0 %v2528
    %3632 = vmatprep.subr.bf16.mxu0 %v2541
    %3633 = vmatpush1.bf16.xpose.msra.mxu0 %v2540
    %3634 = vmatprep.subr.bf16.mxu0 %v2553
    %3635 = vmatpush1.bf16.xpose.msra.mxu0 %v2552
    %3636 = vmatprep.subr.bf16.mxu0 %v2565
    %3637 = vmatpush1.bf16.xpose.msra.mxu0 %v2564
    %3638 = vmatprep.subr.bf16.mxu0 %v2577
    %3639 = vmatpush1.bf16.xpose.msra.mxu0 %v2576
    %3640 = vmatprep.subr.bf16.mxu0 %v2589
    %3641 = vmatpush1.bf16.xpose.msra.mxu0 %v2588
    %3642 = vmatprep.subr.bf16.mxu0 %v2601
    %3643 = vmatpush1.bf16.xpose.msra.mxu0 %v2600
    %3644 = vmatprep.subr.bf16.mxu0 %v2613
    %3645 = vmatpush1.bf16.xpose.msra.mxu0 %v2612
    %3646 = vmatprep.subr.bf16.mxu0 %v2625
    %3647 = vmatpush1.bf16.xpose.msra.mxu0 %v2624
    %3648 = vmatprep.subr.bf16.mxu0 %v2637
    %3649 = vmatpush1.bf16.xpose.msra.mxu0 %v2636
    %3650 = vmatprep.subr.bf16.mxu0 %v2649
    %3651 = vmatpush1.bf16.xpose.msra.mxu0 %v2648
    %3652 = vmatprep.mubr.bf16.mxu0 %v717
    %3653 = vmatmul.mubr.bf16.gmra.mrb[0].mxu0 %v716
    %v3654 = vpop.f32.mrb[0].mxu0
    %v3655 = vadd.f32 %v671, %v3654
    %v3656 = vpop.f32.mrb[0].mxu0
    %v3657 = vadd.f32 %v675, %v3656
    %v3658 = vpop.f32.mrb[0].mxu0
    %v3659 = vpop.f32.mrb[0].mxu0
    %3660 = vdwg.mxu0
    %3661 = vmatprep.subr.bf16.mxu0 %v2471
    %3662 = vmatpush1.bf16.xpose.msra.mxu0 %v2470
    %3663 = vmatprep.subr.bf16.mxu0 %v2483
    %3664 = vmatpush1.bf16.xpose.msra.mxu0 %v2482
    %3665 = vmatprep.subr.bf16.mxu0 %v2495
    %3666 = vmatpush1.bf16.xpose.msra.mxu0 %v2494
    %3667 = vmatprep.subr.bf16.mxu0 %v2507
    %3668 = vmatpush1.bf16.xpose.msra.mxu0 %v2506
    %3669 = vmatprep.subr.bf16.mxu0 %v2519
    %3670 = vmatpush1.bf16.xpose.msra.mxu0 %v2518
    %3671 = vmatprep.subr.bf16.mxu0 %v2531
    %3672 = vmatpush1.bf16.xpose.msra.mxu0 %v2530
    %3673 = vmatprep.subr.bf16.mxu0 %v2543
    %3674 = vmatpush1.bf16.xpose.msra.mxu0 %v2542
    %3675 = vmatprep.subr.bf16.mxu0 %v2555
    %3676 = vmatpush1.bf16.xpose.msra.mxu0 %v2554
    %3677 = vmatprep.subr.bf16.mxu0 %v2567
    %3678 = vmatpush1.bf16.xpose.msra.mxu0 %v2566
    %3679 = vmatprep.subr.bf16.mxu0 %v2579
    %3680 = vmatpush1.bf16.xpose.msra.mxu0 %v2578
    %3681 = vmatprep.subr.bf16.mxu0 %v2591
    %3682 = vmatpush1.bf16.xpose.msra.mxu0 %v2590
    %3683 = vmatprep.subr.bf16.mxu0 %v2603
    %3684 = vmatpush1.bf16.xpose.msra.mxu0 %v2602
    %3685 = vmatprep.subr.bf16.mxu0 %v2615
    %3686 = vmatpush1.bf16.xpose.msra.mxu0 %v2614
    %3687 = vmatprep.subr.bf16.mxu0 %v2627
    %3688 = vmatpush1.bf16.xpose.msra.mxu0 %v2626
    %3689 = vmatprep.subr.bf16.mxu0 %v2639
    %3690 = vmatpush1.bf16.xpose.msra.mxu0 %v2638
    %3691 = vmatprep.subr.bf16.mxu0 %v2651
    %3692 = vmatpush1.bf16.xpose.msra.mxu0 %v2650
    %3693 = vmatprep.mubr.bf16.mxu0 %v719
    %3694 = vmatmul.mubr.bf16.gmra.mrb[0].mxu0 %v718
    %v3695 = vpop.f32.mrb[0].mxu0
    %v3696 = vadd.f32 %v3655, %v3695
    %v3697 = vpop.f32.mrb[0].mxu0
    %v3698 = vadd.f32 %v3657, %v3697
    %v3699 = vpop.f32.mrb[0].mxu0
    %v3700 = vpop.f32.mrb[0].mxu0
    %3701 = vdwg.mxu0
    %3702 = vmatprep.subr.bf16.mxu0 %v2473
    %3703 = vmatpush1.bf16.xpose.msra.mxu0 %v2472
    %3704 = vmatprep.subr.bf16.mxu0 %v2485
    %3705 = vmatpush1.bf16.xpose.msra.mxu0 %v2484
    %3706 = vmatprep.subr.bf16.mxu0 %v2497
    %3707 = vmatpush1.bf16.xpose.msra.mxu0 %v2496
    %3708 = vmatprep.subr.bf16.mxu0 %v2509
    %3709 = vmatpush1.bf16.xpose.msra.mxu0 %v2508
    %3710 = vmatprep.subr.bf16.mxu0 %v2521
    %3711 = vmatpush1.bf16.xpose.msra.mxu0 %v2520
    %3712 = vmatprep.subr.bf16.mxu0 %v2533
    %3713 = vmatpush1.bf16.xpose.msra.mxu0 %v2532
    %3714 = vmatprep.subr.bf16.mxu0 %v2545
    %3715 = vmatpush1.bf16.xpose.msra.mxu0 %v2544
    %3716 = vmatprep.subr.bf16.mxu0 %v2557
    %3717 = vmatpush1.bf16.xpose.msra.mxu0 %v2556
    %3718 = vmatprep.subr.bf16.mxu0 %v2569
    %3719 = vmatpush1.bf16.xpose.msra.mxu0 %v2568
    %3720 = vmatprep.subr.bf16.mxu0 %v2581
    %3721 = vmatpush1.bf16.xpose.msra.mxu0 %v2580
    %3722 = vmatprep.subr.bf16.mxu0 %v2593
    %3723 = vmatpush1.bf16.xpose.msra.mxu0 %v2592
    %3724 = vmatprep.subr.bf16.mxu0 %v2605
    %3725 = vmatpush1.bf16.xpose.msra.mxu0 %v2604
    %3726 = vmatprep.subr.bf16.mxu0 %v2617
    %3727 = vmatpush1.bf16.xpose.msra.mxu0 %v2616
    %3728 = vmatprep.subr.bf16.mxu0 %v2629
    %3729 = vmatpush1.bf16.xpose.msra.mxu0 %v2628
    %3730 = vmatprep.subr.bf16.mxu0 %v2641
    %3731 = vmatpush1.bf16.xpose.msra.mxu0 %v2640
    %3732 = vmatprep.subr.bf16.mxu0 %v2653
    %3733 = vmatpush1.bf16.xpose.msra.mxu0 %v2652
    %3734 = vmatprep.mubr.bf16.mxu0 %v721
    %3735 = vmatmul.mubr.bf16.gmra.mrb[0].mxu0 %v720
    %v3736 = vpop.f32.mrb[0].mxu0
    %v3737 = vadd.f32 %v3696, %v3736
    %v3738 = vpop.f32.mrb[0].mxu0
    %v3739 = vadd.f32 %v3698, %v3738
    %v3740 = vpop.f32.mrb[0].mxu0
    %v3741 = vpop.f32.mrb[0].mxu0
    %3742 = vdwg.mxu0
    %3743 = vmatprep.subr.bf16.mxu0 %v2475
    %3744 = vmatpush1.bf16.xpose.msra.mxu0 %v2474
    %3745 = vmatprep.subr.bf16.mxu0 %v2487
    %3746 = vmatpush1.bf16.xpose.msra.mxu0 %v2486
    %3747 = vmatprep.subr.bf16.mxu0 %v2499
    %3748 = vmatpush1.bf16.xpose.msra.mxu0 %v2498
    %3749 = vmatprep.subr.bf16.mxu0 %v2511
    %3750 = vmatpush1.bf16.xpose.msra.mxu0 %v2510
    %3751 = vmatprep.subr.bf16.mxu0 %v2523
    %3752 = vmatpush1.bf16.xpose.msra.mxu0 %v2522
    %3753 = vmatprep.subr.bf16.mxu0 %v2535
    %3754 = vmatpush1.bf16.xpose.msra.mxu0 %v2534
    %3755 = vmatprep.subr.bf16.mxu0 %v2547
    %3756 = vmatpush1.bf16.xpose.msra.mxu0 %v2546
    %3757 = vmatprep.subr.bf16.mxu0 %v2559
    %3758 = vmatpush1.bf16.xpose.msra.mxu0 %v2558
    %3759 = vmatprep.subr.bf16.mxu0 %v2571
    %3760 = vmatpush1.bf16.xpose.msra.mxu0 %v2570
    %3761 = vmatprep.subr.bf16.mxu0 %v2583
    %3762 = vmatpush1.bf16.xpose.msra.mxu0 %v2582
    %3763 = vmatprep.subr.bf16.mxu0 %v2595
    %3764 = vmatpush1.bf16.xpose.msra.mxu0 %v2594
    %3765 = vmatprep.subr.bf16.mxu0 %v2607
    %3766 = vmatpush1.bf16.xpose.msra.mxu0 %v2606
    %3767 = vmatprep.subr.bf16.mxu0 %v2619
    %3768 = vmatpush1.bf16.xpose.msra.mxu0 %v2618
    %3769 = vmatprep.subr.bf16.mxu0 %v2631
    %3770 = vmatpush1.bf16.xpose.msra.mxu0 %v2630
    %3771 = vmatprep.subr.bf16.mxu0 %v2643
    %3772 = vmatpush1.bf16.xpose.msra.mxu0 %v2642
    %3773 = vmatprep.subr.bf16.mxu0 %v2655
    %3774 = vmatpush1.bf16.xpose.msra.mxu0 %v2654
    %3775 = vmatprep.mubr.bf16.mxu0 %v723
    %3776 = vmatmul.mubr.bf16.gmra.mrb[0].mxu0 %v722
    %v3777 = vpop.f32.mrb[0].mxu0
    %v3778 = vadd.f32 %v3737, %v3777
    %v3779 = vpop.f32.mrb[0].mxu0
    %v3780 = vadd.f32 %v3739, %v3779
    %v3781 = vpop.f32.mrb[0].mxu0
    %v3782 = vpop.f32.mrb[0].mxu0
    %3783 = vdwg.mxu0
    %3784 = vmatprep.subr.bf16.mxu0 %v2477
    %3785 = vmatpush1.bf16.xpose.msra.mxu0 %v2476
    %3786 = vmatprep.subr.bf16.mxu0 %v2489
    %3787 = vmatpush1.bf16.xpose.msra.mxu0 %v2488
    %3788 = vmatprep.subr.bf16.mxu0 %v2501
    %3789 = vmatpush1.bf16.xpose.msra.mxu0 %v2500
    %3790 = vmatprep.subr.bf16.mxu0 %v2513
    %3791 = vmatpush1.bf16.xpose.msra.mxu0 %v2512
    %3792 = vmatprep.subr.bf16.mxu0 %v2525
    %3793 = vmatpush1.bf16.xpose.msra.mxu0 %v2524
    %3794 = vmatprep.subr.bf16.mxu0 %v2537
    %3795 = vmatpush1.bf16.xpose.msra.mxu0 %v2536
    %3796 = vmatprep.subr.bf16.mxu0 %v2549
    %3797 = vmatpush1.bf16.xpose.msra.mxu0 %v2548
    %3798 = vmatprep.subr.bf16.mxu0 %v2561
    %3799 = vmatpush1.bf16.xpose.msra.mxu0 %v2560
    %3800 = vmatprep.subr.bf16.mxu0 %v2573
    %3801 = vmatpush1.bf16.xpose.msra.mxu0 %v2572
    %3802 = vmatprep.subr.bf16.mxu0 %v2585
    %3803 = vmatpush1.bf16.xpose.msra.mxu0 %v2584
    %3804 = vmatprep.subr.bf16.mxu0 %v2597
    %3805 = vmatpush1.bf16.xpose.msra.mxu0 %v2596
    %3806 = vmatprep.subr.bf16.mxu0 %v2609
    %3807 = vmatpush1.bf16.xpose.msra.mxu0 %v2608
    %3808 = vmatprep.subr.bf16.mxu0 %v2621
    %3809 = vmatpush1.bf16.xpose.msra.mxu0 %v2620
    %3810 = vmatprep.subr.bf16.mxu0 %v2633
    %3811 = vmatpush1.bf16.xpose.msra.mxu0 %v2632
    %3812 = vmatprep.subr.bf16.mxu0 %v2645
    %3813 = vmatpush1.bf16.xpose.msra.mxu0 %v2644
    %3814 = vmatprep.subr.bf16.mxu0 %v2657
    %3815 = vmatpush1.bf16.xpose.msra.mxu0 %v2656
    %3816 = vmatprep.mubr.bf16.mxu0 %v725
    %3817 = vmatmul.mubr.bf16.gmra.mrb[0].mxu0 %v724
    %v3818 = vpop.f32.mrb[0].mxu0
    %v3819 = vadd.f32 %v3778, %v3818
    %v3820 = vpop.f32.mrb[0].mxu0
    %v3821 = vadd.f32 %v3780, %v3820
    %v3822 = vpop.f32.mrb[0].mxu0
    %v3823 = vpop.f32.mrb[0].mxu0
    %3824 = vdwg.mxu0
    %3825 = vmatprep.subr.bf16.mxu0 %v2479
    %3826 = vmatpush1.bf16.xpose.msra.mxu0 %v2478
    %3827 = vmatprep.subr.bf16.mxu0 %v2491
    %3828 = vmatpush1.bf16.xpose.msra.mxu0 %v2490
    %3829 = vmatprep.subr.bf16.mxu0 %v2503
    %3830 = vmatpush1.bf16.xpose.msra.mxu0 %v2502
    %3831 = vmatprep.subr.bf16.mxu0 %v2515
    %3832 = vmatpush1.bf16.xpose.msra.mxu0 %v2514
    %3833 = vmatprep.subr.bf16.mxu0 %v2527
    %3834 = vmatpush1.bf16.xpose.msra.mxu0 %v2526
    %3835 = vmatprep.subr.bf16.mxu0 %v2539
    %3836 = vmatpush1.bf16.xpose.msra.mxu0 %v2538
    %3837 = vmatprep.subr.bf16.mxu0 %v2551
    %3838 = vmatpush1.bf16.xpose.msra.mxu0 %v2550
    %3839 = vmatprep.subr.bf16.mxu0 %v2563
    %3840 = vmatpush1.bf16.xpose.msra.mxu0 %v2562
    %3841 = vmatprep.subr.bf16.mxu0 %v2575
    %3842 = vmatpush1.bf16.xpose.msra.mxu0 %v2574
    %3843 = vmatprep.subr.bf16.mxu0 %v2587
    %3844 = vmatpush1.bf16.xpose.msra.mxu0 %v2586
    %3845 = vmatprep.subr.bf16.mxu0 %v2599
    %3846 = vmatpush1.bf16.xpose.msra.mxu0 %v2598
    %3847 = vmatprep.subr.bf16.mxu0 %v2611
    %3848 = vmatpush1.bf16.xpose.msra.mxu0 %v2610
    %3849 = vmatprep.subr.bf16.mxu0 %v2623
    %3850 = vmatpush1.bf16.xpose.msra.mxu0 %v2622
    %3851 = vmatprep.subr.bf16.mxu0 %v2635
    %3852 = vmatpush1.bf16.xpose.msra.mxu0 %v2634
    %3853 = vmatprep.subr.bf16.mxu0 %v2647
    %3854 = vmatpush1.bf16.xpose.msra.mxu0 %v2646
    %3855 = vmatprep.subr.bf16.mxu0 %v2659
    %3856 = vmatpush1.bf16.xpose.msra.mxu0 %v2658
    %3857 = vmatprep.mubr.bf16.mxu0 %v727
    %3858 = vmatmul.mubr.bf16.gmra.mrb[0].mxu0 %v726
    %v3859 = vpop.f32.mrb[0].mxu0
    %v3860 = vadd.f32 %v3819, %v3859
    %v3861 = vpop.f32.mrb[0].mxu0
    %v3862 = vadd.f32 %v3821, %v3861
    %v3863 = vpop.f32.mrb[0].mxu0
    %v3864 = vpop.f32.mrb[0].mxu0
    %3865 = vdwg.mxu0
    %3866 = vmatprep.subr.bf16.mxu0 %v2661
    %3867 = vmatpush1.bf16.xpose.msra.mxu0 %v2660
    %3868 = vmatprep.subr.bf16.mxu0 %v2673
    %3869 = vmatpush1.bf16.xpose.msra.mxu0 %v2672
    %3870 = vmatprep.subr.bf16.mxu0 %v2685
    %3871 = vmatpush1.bf16.xpose.msra.mxu0 %v2684
    %3872 = vmatprep.subr.bf16.mxu0 %v2697
    %3873 = vmatpush1.bf16.xpose.msra.mxu0 %v2696
    %3874 = vmatprep.subr.bf16.mxu0 %v2709
    %3875 = vmatpush1.bf16.xpose.msra.mxu0 %v2708
    %3876 = vmatprep.subr.bf16.mxu0 %v2721
    %3877 = vmatpush1.bf16.xpose.msra.mxu0 %v2720
    %3878 = vmatprep.subr.bf16.mxu0 %v2733
    %3879 = vmatpush1.bf16.xpose.msra.mxu0 %v2732
    %3880 = vmatprep.subr.bf16.mxu0 %v2745
    %3881 = vmatpush1.bf16.xpose.msra.mxu0 %v2744
    %3882 = vmatprep.subr.bf16.mxu0 %v2757
    %3883 = vmatpush1.bf16.xpose.msra.mxu0 %v2756
    %3884 = vmatprep.subr.bf16.mxu0 %v2769
    %3885 = vmatpush1.bf16.xpose.msra.mxu0 %v2768
    %3886 = vmatprep.subr.bf16.mxu0 %v2781
    %3887 = vmatpush1.bf16.xpose.msra.mxu0 %v2780
    %3888 = vmatprep.subr.bf16.mxu0 %v2793
    %3889 = vmatpush1.bf16.xpose.msra.mxu0 %v2792
    %3890 = vmatprep.subr.bf16.mxu0 %v2805
    %3891 = vmatpush1.bf16.xpose.msra.mxu0 %v2804
    %3892 = vmatprep.subr.bf16.mxu0 %v2817
    %3893 = vmatpush1.bf16.xpose.msra.mxu0 %v2816
    %3894 = vmatprep.subr.bf16.mxu0 %v2829
    %3895 = vmatpush1.bf16.xpose.msra.mxu0 %v2828
    %3896 = vmatprep.subr.bf16.mxu0 %v2841
    %3897 = vmatpush1.bf16.xpose.msra.mxu0 %v2840
    %3898 = vmatprep.mubr.bf16.mxu0 %v717
    %3899 = vmatmul.mubr.bf16.gmra.mrb[0].mxu0 %v716
    %v3900 = vpop.f32.mrb[0].mxu0
    %v3901 = vadd.f32 %v679, %v3900
    %v3902 = vpop.f32.mrb[0].mxu0
    %v3903 = vadd.f32 %v683, %v3902
    %v3904 = vpop.f32.mrb[0].mxu0
    %v3905 = vpop.f32.mrb[0].mxu0
    %3906 = vdwg.mxu0
    %3907 = vmatprep.subr.bf16.mxu0 %v2663
    %3908 = vmatpush1.bf16.xpose.msra.mxu0 %v2662
    %3909 = vmatprep.subr.bf16.mxu0 %v2675
    %3910 = vmatpush1.bf16.xpose.msra.mxu0 %v2674
    %3911 = vmatprep.subr.bf16.mxu0 %v2687
    %3912 = vmatpush1.bf16.xpose.msra.mxu0 %v2686
    %3913 = vmatprep.subr.bf16.mxu0 %v2699
    %3914 = vmatpush1.bf16.xpose.msra.mxu0 %v2698
    %3915 = vmatprep.subr.bf16.mxu0 %v2711
    %3916 = vmatpush1.bf16.xpose.msra.mxu0 %v2710
    %3917 = vmatprep.subr.bf16.mxu0 %v2723
    %3918 = vmatpush1.bf16.xpose.msra.mxu0 %v2722
    %3919 = vmatprep.subr.bf16.mxu0 %v2735
    %3920 = vmatpush1.bf16.xpose.msra.mxu0 %v2734
    %3921 = vmatprep.subr.bf16.mxu0 %v2747
    %3922 = vmatpush1.bf16.xpose.msra.mxu0 %v2746
    %3923 = vmatprep.subr.bf16.mxu0 %v2759
    %3924 = vmatpush1.bf16.xpose.msra.mxu0 %v2758
    %3925 = vmatprep.subr.bf16.mxu0 %v2771
    %3926 = vmatpush1.bf16.xpose.msra.mxu0 %v2770
    %3927 = vmatprep.subr.bf16.mxu0 %v2783
    %3928 = vmatpush1.bf16.xpose.msra.mxu0 %v2782
    %3929 = vmatprep.subr.bf16.mxu0 %v2795
    %3930 = vmatpush1.bf16.xpose.msra.mxu0 %v2794
    %3931 = vmatprep.subr.bf16.mxu0 %v2807
    %3932 = vmatpush1.bf16.xpose.msra.mxu0 %v2806
    %3933 = vmatprep.subr.bf16.mxu0 %v2819
    %3934 = vmatpush1.bf16.xpose.msra.mxu0 %v2818
    %3935 = vmatprep.subr.bf16.mxu0 %v2831
    %3936 = vmatpush1.bf16.xpose.msra.mxu0 %v2830
    %3937 = vmatprep.subr.bf16.mxu0 %v2843
    %3938 = vmatpush1.bf16.xpose.msra.mxu0 %v2842
    %3939 = vmatprep.mubr.bf16.mxu0 %v719
    %3940 = vmatmul.mubr.bf16.gmra.mrb[0].mxu0 %v718
    %v3941 = vpop.f32.mrb[0].mxu0
    %v3942 = vadd.f32 %v3901, %v3941
    %v3943 = vpop.f32.mrb[0].mxu0
    %v3944 = vadd.f32 %v3903, %v3943
    %v3945 = vpop.f32.mrb[0].mxu0
    %v3946 = vpop.f32.mrb[0].mxu0
    %3947 = vdwg.mxu0
    %3948 = vmatprep.subr.bf16.mxu0 %v2665
    %3949 = vmatpush1.bf16.xpose.msra.mxu0 %v2664
    %3950 = vmatprep.subr.bf16.mxu0 %v2677
    %3951 = vmatpush1.bf16.xpose.msra.mxu0 %v2676
    %3952 = vmatprep.subr.bf16.mxu0 %v2689
    %3953 = vmatpush1.bf16.xpose.msra.mxu0 %v2688
    %3954 = vmatprep.subr.bf16.mxu0 %v2701
    %3955 = vmatpush1.bf16.xpose.msra.mxu0 %v2700
    %3956 = vmatprep.subr.bf16.mxu0 %v2713
    %3957 = vmatpush1.bf16.xpose.msra.mxu0 %v2712
    %3958 = vmatprep.subr.bf16.mxu0 %v2725
    %3959 = vmatpush1.bf16.xpose.msra.mxu0 %v2724
    %3960 = vmatprep.subr.bf16.mxu0 %v2737
    %3961 = vmatpush1.bf16.xpose.msra.mxu0 %v2736
    %3962 = vmatprep.subr.bf16.mxu0 %v2749
    %3963 = vmatpush1.bf16.xpose.msra.mxu0 %v2748
    %3964 = vmatprep.subr.bf16.mxu0 %v2761
    %3965 = vmatpush1.bf16.xpose.msra.mxu0 %v2760
    %3966 = vmatprep.subr.bf16.mxu0 %v2773
    %3967 = vmatpush1.bf16.xpose.msra.mxu0 %v2772
    %3968 = vmatprep.subr.bf16.mxu0 %v2785
    %3969 = vmatpush1.bf16.xpose.msra.mxu0 %v2784
    %3970 = vmatprep.subr.bf16.mxu0 %v2797
    %3971 = vmatpush1.bf16.xpose.msra.mxu0 %v2796
    %3972 = vmatprep.subr.bf16.mxu0 %v2809
    %3973 = vmatpush1.bf16.xpose.msra.mxu0 %v2808
    %3974 = vmatprep.subr.bf16.mxu0 %v2821
    %3975 = vmatpush1.bf16.xpose.msra.mxu0 %v2820
    %3976 = vmatprep.subr.bf16.mxu0 %v2833
    %3977 = vmatpush1.bf16.xpose.msra.mxu0 %v2832
    %3978 = vmatprep.subr.bf16.mxu0 %v2845
    %3979 = vmatpush1.bf16.xpose.msra.mxu0 %v2844
    %3980 = vmatprep.mubr.bf16.mxu0 %v721
    %3981 = vmatmul.mubr.bf16.gmra.mrb[0].mxu0 %v720
    %v3982 = vpop.f32.mrb[0].mxu0
    %v3983 = vadd.f32 %v3942, %v3982
    %v3984 = vpop.f32.mrb[0].mxu0
    %v3985 = vadd.f32 %v3944, %v3984
    %v3986 = vpop.f32.mrb[0].mxu0
    %v3987 = vpop.f32.mrb[0].mxu0
    %3988 = vdwg.mxu0
    %3989 = vmatprep.subr.bf16.mxu0 %v2667
    %3990 = vmatpush1.bf16.xpose.msra.mxu0 %v2666
    %3991 = vmatprep.subr.bf16.mxu0 %v2679
    %3992 = vmatpush1.bf16.xpose.msra.mxu0 %v2678
    %3993 = vmatprep.subr.bf16.mxu0 %v2691
    %3994 = vmatpush1.bf16.xpose.msra.mxu0 %v2690
    %3995 = vmatprep.subr.bf16.mxu0 %v2703
    %3996 = vmatpush1.bf16.xpose.msra.mxu0 %v2702
    %3997 = vmatprep.subr.bf16.mxu0 %v2715
    %3998 = vmatpush1.bf16.xpose.msra.mxu0 %v2714
    %3999 = vmatprep.subr.bf16.mxu0 %v2727
    %4000 = vmatpush1.bf16.xpose.msra.mxu0 %v2726
    %4001 = vmatprep.subr.bf16.mxu0 %v2739
    %4002 = vmatpush1.bf16.xpose.msra.mxu0 %v2738
    %4003 = vmatprep.subr.bf16.mxu0 %v2751
    %4004 = vmatpush1.bf16.xpose.msra.mxu0 %v2750
    %4005 = vmatprep.subr.bf16.mxu0 %v2763
    %4006 = vmatpush1.bf16.xpose.msra.mxu0 %v2762
    %4007 = vmatprep.subr.bf16.mxu0 %v2775
    %4008 = vmatpush1.bf16.xpose.msra.mxu0 %v2774
    %4009 = vmatprep.subr.bf16.mxu0 %v2787
    %4010 = vmatpush1.bf16.xpose.msra.mxu0 %v2786
    %4011 = vmatprep.subr.bf16.mxu0 %v2799
    %4012 = vmatpush1.bf16.xpose.msra.mxu0 %v2798
    %4013 = vmatprep.subr.bf16.mxu0 %v2811
    %4014 = vmatpush1.bf16.xpose.msra.mxu0 %v2810
    %4015 = vmatprep.subr.bf16.mxu0 %v2823
    %4016 = vmatpush1.bf16.xpose.msra.mxu0 %v2822
    %4017 = vmatprep.subr.bf16.mxu0 %v2835
    %4018 = vmatpush1.bf16.xpose.msra.mxu0 %v2834
    %4019 = vmatprep.subr.bf16.mxu0 %v2847
    %4020 = vmatpush1.bf16.xpose.msra.mxu0 %v2846
    %4021 = vmatprep.mubr.bf16.mxu0 %v723
    %4022 = vmatmul.mubr.bf16.gmra.mrb[0].mxu0 %v722
    %v4023 = vpop.f32.mrb[0].mxu0
    %v4024 = vadd.f32 %v3983, %v4023
    %v4025 = vpop.f32.mrb[0].mxu0
    %v4026 = vadd.f32 %v3985, %v4025
    %v4027 = vpop.f32.mrb[0].mxu0
    %v4028 = vpop.f32.mrb[0].mxu0
    %4029 = vdwg.mxu0
    %4030 = vmatprep.subr.bf16.mxu0 %v2669
    %4031 = vmatpush1.bf16.xpose.msra.mxu0 %v2668
    %4032 = vmatprep.subr.bf16.mxu0 %v2681
    %4033 = vmatpush1.bf16.xpose.msra.mxu0 %v2680
    %4034 = vmatprep.subr.bf16.mxu0 %v2693
    %4035 = vmatpush1.bf16.xpose.msra.mxu0 %v2692
    %4036 = vmatprep.subr.bf16.mxu0 %v2705
    %4037 = vmatpush1.bf16.xpose.msra.mxu0 %v2704
    %4038 = vmatprep.subr.bf16.mxu0 %v2717
    %4039 = vmatpush1.bf16.xpose.msra.mxu0 %v2716
    %4040 = vmatprep.subr.bf16.mxu0 %v2729
    %4041 = vmatpush1.bf16.xpose.msra.mxu0 %v2728
    %4042 = vmatprep.subr.bf16.mxu0 %v2741
    %4043 = vmatpush1.bf16.xpose.msra.mxu0 %v2740
    %4044 = vmatprep.subr.bf16.mxu0 %v2753
    %4045 = vmatpush1.bf16.xpose.msra.mxu0 %v2752
    %4046 = vmatprep.subr.bf16.mxu0 %v2765
    %4047 = vmatpush1.bf16.xpose.msra.mxu0 %v2764
    %4048 = vmatprep.subr.bf16.mxu0 %v2777
    %4049 = vmatpush1.bf16.xpose.msra.mxu0 %v2776
    %4050 = vmatprep.subr.bf16.mxu0 %v2789
    %4051 = vmatpush1.bf16.xpose.msra.mxu0 %v2788
    %4052 = vmatprep.subr.bf16.mxu0 %v2801
    %4053 = vmatpush1.bf16.xpose.msra.mxu0 %v2800
    %4054 = vmatprep.subr.bf16.mxu0 %v2813
    %4055 = vmatpush1.bf16.xpose.msra.mxu0 %v2812
    %4056 = vmatprep.subr.bf16.mxu0 %v2825
    %4057 = vmatpush1.bf16.xpose.msra.mxu0 %v2824
    %4058 = vmatprep.subr.bf16.mxu0 %v2837
    %4059 = vmatpush1.bf16.xpose.msra.mxu0 %v2836
    %4060 = vmatprep.subr.bf16.mxu0 %v2849
    %4061 = vmatpush1.bf16.xpose.msra.mxu0 %v2848
    %4062 = vmatprep.mubr.bf16.mxu0 %v725
    %4063 = vmatmul.mubr.bf16.gmra.mrb[0].mxu0 %v724
    %v4064 = vpop.f32.mrb[0].mxu0
    %v4065 = vadd.f32 %v4024, %v4064
    %v4066 = vpop.f32.mrb[0].mxu0
    %v4067 = vadd.f32 %v4026, %v4066
    %v4068 = vpop.f32.mrb[0].mxu0
    %v4069 = vpop.f32.mrb[0].mxu0
    %4070 = vdwg.mxu0
    %4071 = vmatprep.subr.bf16.mxu0 %v2671
    %4072 = vmatpush1.bf16.xpose.msra.mxu0 %v2670
    %4073 = vmatprep.subr.bf16.mxu0 %v2683
    %4074 = vmatpush1.bf16.xpose.msra.mxu0 %v2682
    %4075 = vmatprep.subr.bf16.mxu0 %v2695
    %4076 = vmatpush1.bf16.xpose.msra.mxu0 %v2694
    %4077 = vmatprep.subr.bf16.mxu0 %v2707
    %4078 = vmatpush1.bf16.xpose.msra.mxu0 %v2706
    %4079 = vmatprep.subr.bf16.mxu0 %v2719
    %4080 = vmatpush1.bf16.xpose.msra.mxu0 %v2718
    %4081 = vmatprep.subr.bf16.mxu0 %v2731
    %4082 = vmatpush1.bf16.xpose.msra.mxu0 %v2730
    %4083 = vmatprep.subr.bf16.mxu0 %v2743
    %4084 = vmatpush1.bf16.xpose.msra.mxu0 %v2742
    %4085 = vmatprep.subr.bf16.mxu0 %v2755
    %4086 = vmatpush1.bf16.xpose.msra.mxu0 %v2754
    %4087 = vmatprep.subr.bf16.mxu0 %v2767
    %4088 = vmatpush1.bf16.xpose.msra.mxu0 %v2766
    %4089 = vmatprep.subr.bf16.mxu0 %v2779
    %4090 = vmatpush1.bf16.xpose.msra.mxu0 %v2778
    %4091 = vmatprep.subr.bf16.mxu0 %v2791
    %4092 = vmatpush1.bf16.xpose.msra.mxu0 %v2790
    %4093 = vmatprep.subr.bf16.mxu0 %v2803
    %4094 = vmatpush1.bf16.xpose.msra.mxu0 %v2802
    %4095 = vmatprep.subr.bf16.mxu0 %v2815
    %4096 = vmatpush1.bf16.xpose.msra.mxu0 %v2814
    %4097 = vmatprep.subr.bf16.mxu0 %v2827
    %4098 = vmatpush1.bf16.xpose.msra.mxu0 %v2826
    %4099 = vmatprep.subr.bf16.mxu0 %v2839
    %4100 = vmatpush1.bf16.xpose.msra.mxu0 %v2838
    %4101 = vmatprep.subr.bf16.mxu0 %v2851
    %4102 = vmatpush1.bf16.xpose.msra.mxu0 %v2850
    %4103 = vmatprep.mubr.bf16.mxu0 %v727
    %4104 = vmatmul.mubr.bf16.gmra.mrb[0].mxu0 %v726
    %v4105 = vpop.f32.mrb[0].mxu0
    %v4106 = vadd.f32 %v4065, %v4105
    %v4107 = vpop.f32.mrb[0].mxu0
    %v4108 = vadd.f32 %v4067, %v4107
    %v4109 = vpop.f32.mrb[0].mxu0
    %v4110 = vpop.f32.mrb[0].mxu0
    %4111 = vdwg.mxu0
    %4112 = vmatprep.subr.bf16.mxu0 %v2853
    %4113 = vmatpush1.bf16.xpose.msra.mxu0 %v2852
    %4114 = vmatprep.subr.bf16.mxu0 %v2865
    %4115 = vmatpush1.bf16.xpose.msra.mxu0 %v2864
    %4116 = vmatprep.subr.bf16.mxu0 %v2877
    %4117 = vmatpush1.bf16.xpose.msra.mxu0 %v2876
    %4118 = vmatprep.subr.bf16.mxu0 %v2889
    %4119 = vmatpush1.bf16.xpose.msra.mxu0 %v2888
    %4120 = vmatprep.subr.bf16.mxu0 %v2901
    %4121 = vmatpush1.bf16.xpose.msra.mxu0 %v2900
    %4122 = vmatprep.subr.bf16.mxu0 %v2913
    %4123 = vmatpush1.bf16.xpose.msra.mxu0 %v2912
    %4124 = vmatprep.subr.bf16.mxu0 %v2925
    %4125 = vmatpush1.bf16.xpose.msra.mxu0 %v2924
    %4126 = vmatprep.subr.bf16.mxu0 %v2937
    %4127 = vmatpush1.bf16.xpose.msra.mxu0 %v2936
    %4128 = vmatprep.subr.bf16.mxu0 %v2949
    %4129 = vmatpush1.bf16.xpose.msra.mxu0 %v2948
    %4130 = vmatprep.subr.bf16.mxu0 %v2961
    %4131 = vmatpush1.bf16.xpose.msra.mxu0 %v2960
    %4132 = vmatprep.subr.bf16.mxu0 %v2973
    %4133 = vmatpush1.bf16.xpose.msra.mxu0 %v2972
    %4134 = vmatprep.subr.bf16.mxu0 %v2985
    %4135 = vmatpush1.bf16.xpose.msra.mxu0 %v2984
    %4136 = vmatprep.subr.bf16.mxu0 %v2997
    %4137 = vmatpush1.bf16.xpose.msra.mxu0 %v2996
    %4138 = vmatprep.subr.bf16.mxu0 %v3009
    %4139 = vmatpush1.bf16.xpose.msra.mxu0 %v3008
    %4140 = vmatprep.subr.bf16.mxu0 %v3021
    %4141 = vmatpush1.bf16.xpose.msra.mxu0 %v3020
    %4142 = vmatprep.subr.bf16.mxu0 %v3033
    %4143 = vmatpush1.bf16.xpose.msra.mxu0 %v3032
    %4144 = vmatprep.mubr.bf16.mxu0 %v717
    %4145 = vmatmul.mubr.bf16.gmra.mrb[0].mxu0 %v716
    %v4146 = vpop.f32.mrb[0].mxu0
    %v4147 = vadd.f32 %v687, %v4146
    %v4148 = vpop.f32.mrb[0].mxu0
    %v4149 = vadd.f32 %v691, %v4148
    %v4150 = vpop.f32.mrb[0].mxu0
    %v4151 = vpop.f32.mrb[0].mxu0
    %4152 = vdwg.mxu0
    %4153 = vmatprep.subr.bf16.mxu0 %v2855
    %4154 = vmatpush1.bf16.xpose.msra.mxu0 %v2854
    %4155 = vmatprep.subr.bf16.mxu0 %v2867
    %4156 = vmatpush1.bf16.xpose.msra.mxu0 %v2866
    %4157 = vmatprep.subr.bf16.mxu0 %v2879
    %4158 = vmatpush1.bf16.xpose.msra.mxu0 %v2878
    %4159 = vmatprep.subr.bf16.mxu0 %v2891
    %4160 = vmatpush1.bf16.xpose.msra.mxu0 %v2890
    %4161 = vmatprep.subr.bf16.mxu0 %v2903
    %4162 = vmatpush1.bf16.xpose.msra.mxu0 %v2902
    %4163 = vmatprep.subr.bf16.mxu0 %v2915
    %4164 = vmatpush1.bf16.xpose.msra.mxu0 %v2914
    %4165 = vmatprep.subr.bf16.mxu0 %v2927
    %4166 = vmatpush1.bf16.xpose.msra.mxu0 %v2926
    %4167 = vmatprep.subr.bf16.mxu0 %v2939
    %4168 = vmatpush1.bf16.xpose.msra.mxu0 %v2938
    %4169 = vmatprep.subr.bf16.mxu0 %v2951
    %4170 = vmatpush1.bf16.xpose.msra.mxu0 %v2950
    %4171 = vmatprep.subr.bf16.mxu0 %v2963
    %4172 = vmatpush1.bf16.xpose.msra.mxu0 %v2962
    %4173 = vmatprep.subr.bf16.mxu0 %v2975
    %4174 = vmatpush1.bf16.xpose.msra.mxu0 %v2974
    %4175 = vmatprep.subr.bf16.mxu0 %v2987
    %4176 = vmatpush1.bf16.xpose.msra.mxu0 %v2986
    %4177 = vmatprep.subr.bf16.mxu0 %v2999
    %4178 = vmatpush1.bf16.xpose.msra.mxu0 %v2998
    %4179 = vmatprep.subr.bf16.mxu0 %v3011
    %4180 = vmatpush1.bf16.xpose.msra.mxu0 %v3010
    %4181 = vmatprep.subr.bf16.mxu0 %v3023
    %4182 = vmatpush1.bf16.xpose.msra.mxu0 %v3022
    %4183 = vmatprep.subr.bf16.mxu0 %v3035
    %4184 = vmatpush1.bf16.xpose.msra.mxu0 %v3034
    %4185 = vmatprep.mubr.bf16.mxu0 %v719
    %4186 = vmatmul.mubr.bf16.gmra.mrb[0].mxu0 %v718
    %v4187 = vpop.f32.mrb[0].mxu0
    %v4188 = vadd.f32 %v4147, %v4187
    %v4189 = vpop.f32.mrb[0].mxu0
    %v4190 = vadd.f32 %v4149, %v4189
    %v4191 = vpop.f32.mrb[0].mxu0
    %v4192 = vpop.f32.mrb[0].mxu0
    %4193 = vdwg.mxu0
    %4194 = vmatprep.subr.bf16.mxu0 %v2857
    %4195 = vmatpush1.bf16.xpose.msra.mxu0 %v2856
    %4196 = vmatprep.subr.bf16.mxu0 %v2869
    %4197 = vmatpush1.bf16.xpose.msra.mxu0 %v2868
    %4198 = vmatprep.subr.bf16.mxu0 %v2881
    %4199 = vmatpush1.bf16.xpose.msra.mxu0 %v2880
    %4200 = vmatprep.subr.bf16.mxu0 %v2893
    %4201 = vmatpush1.bf16.xpose.msra.mxu0 %v2892
    %4202 = vmatprep.subr.bf16.mxu0 %v2905
    %4203 = vmatpush1.bf16.xpose.msra.mxu0 %v2904
    %4204 = vmatprep.subr.bf16.mxu0 %v2917
    %4205 = vmatpush1.bf16.xpose.msra.mxu0 %v2916
    %4206 = vmatprep.subr.bf16.mxu0 %v2929
    %4207 = vmatpush1.bf16.xpose.msra.mxu0 %v2928
    %4208 = vmatprep.subr.bf16.mxu0 %v2941
    %4209 = vmatpush1.bf16.xpose.msra.mxu0 %v2940
    %4210 = vmatprep.subr.bf16.mxu0 %v2953
    %4211 = vmatpush1.bf16.xpose.msra.mxu0 %v2952
    %4212 = vmatprep.subr.bf16.mxu0 %v2965
    %4213 = vmatpush1.bf16.xpose.msra.mxu0 %v2964
    %4214 = vmatprep.subr.bf16.mxu0 %v2977
    %4215 = vmatpush1.bf16.xpose.msra.mxu0 %v2976
    %4216 = vmatprep.subr.bf16.mxu0 %v2989
    %4217 = vmatpush1.bf16.xpose.msra.mxu0 %v2988
    %4218 = vmatprep.subr.bf16.mxu0 %v3001
    %4219 = vmatpush1.bf16.xpose.msra.mxu0 %v3000
    %4220 = vmatprep.subr.bf16.mxu0 %v3013
    %4221 = vmatpush1.bf16.xpose.msra.mxu0 %v3012
    %4222 = vmatprep.subr.bf16.mxu0 %v3025
    %4223 = vmatpush1.bf16.xpose.msra.mxu0 %v3024
    %4224 = vmatprep.subr.bf16.mxu0 %v3037
    %4225 = vmatpush1.bf16.xpose.msra.mxu0 %v3036
    %4226 = vmatprep.mubr.bf16.mxu0 %v721
    %4227 = vmatmul.mubr.bf16.gmra.mrb[0].mxu0 %v720
    %v4228 = vpop.f32.mrb[0].mxu0
    %v4229 = vadd.f32 %v4188, %v4228
    %v4230 = vpop.f32.mrb[0].mxu0
    %v4231 = vadd.f32 %v4190, %v4230
    %v4232 = vpop.f32.mrb[0].mxu0
    %v4233 = vpop.f32.mrb[0].mxu0
    %4234 = vdwg.mxu0
    %4235 = vmatprep.subr.bf16.mxu0 %v2859
    %4236 = vmatpush1.bf16.xpose.msra.mxu0 %v2858
    %4237 = vmatprep.subr.bf16.mxu0 %v2871
    %4238 = vmatpush1.bf16.xpose.msra.mxu0 %v2870
    %4239 = vmatprep.subr.bf16.mxu0 %v2883
    %4240 = vmatpush1.bf16.xpose.msra.mxu0 %v2882
    %4241 = vmatprep.subr.bf16.mxu0 %v2895
    %4242 = vmatpush1.bf16.xpose.msra.mxu0 %v2894
    %4243 = vmatprep.subr.bf16.mxu0 %v2907
    %4244 = vmatpush1.bf16.xpose.msra.mxu0 %v2906
    %4245 = vmatprep.subr.bf16.mxu0 %v2919
    %4246 = vmatpush1.bf16.xpose.msra.mxu0 %v2918
    %4247 = vmatprep.subr.bf16.mxu0 %v2931
    %4248 = vmatpush1.bf16.xpose.msra.mxu0 %v2930
    %4249 = vmatprep.subr.bf16.mxu0 %v2943
    %4250 = vmatpush1.bf16.xpose.msra.mxu0 %v2942
    %4251 = vmatprep.subr.bf16.mxu0 %v2955
    %4252 = vmatpush1.bf16.xpose.msra.mxu0 %v2954
    %4253 = vmatprep.subr.bf16.mxu0 %v2967
    %4254 = vmatpush1.bf16.xpose.msra.mxu0 %v2966
    %4255 = vmatprep.subr.bf16.mxu0 %v2979
    %4256 = vmatpush1.bf16.xpose.msra.mxu0 %v2978
    %4257 = vmatprep.subr.bf16.mxu0 %v2991
    %4258 = vmatpush1.bf16.xpose.msra.mxu0 %v2990
    %4259 = vmatprep.subr.bf16.mxu0 %v3003
    %4260 = vmatpush1.bf16.xpose.msra.mxu0 %v3002
    %4261 = vmatprep.subr.bf16.mxu0 %v3015
    %4262 = vmatpush1.bf16.xpose.msra.mxu0 %v3014
    %4263 = vmatprep.subr.bf16.mxu0 %v3027
    %4264 = vmatpush1.bf16.xpose.msra.mxu0 %v3026
    %4265 = vmatprep.subr.bf16.mxu0 %v3039
    %4266 = vmatpush1.bf16.xpose.msra.mxu0 %v3038
    %4267 = vmatprep.mubr.bf16.mxu0 %v723
    %4268 = vmatmul.mubr.bf16.gmra.mrb[0].mxu0 %v722
    %v4269 = vpop.f32.mrb[0].mxu0
    %v4270 = vadd.f32 %v4229, %v4269
    %v4271 = vpop.f32.mrb[0].mxu0
    %v4272 = vadd.f32 %v4231, %v4271
    %v4273 = vpop.f32.mrb[0].mxu0
    %v4274 = vpop.f32.mrb[0].mxu0
    %4275 = vdwg.mxu0
    %4276 = vmatprep.subr.bf16.mxu0 %v2861
    %4277 = vmatpush1.bf16.xpose.msra.mxu0 %v2860
    %4278 = vmatprep.subr.bf16.mxu0 %v2873
    %4279 = vmatpush1.bf16.xpose.msra.mxu0 %v2872
    %4280 = vmatprep.subr.bf16.mxu0 %v2885
    %4281 = vmatpush1.bf16.xpose.msra.mxu0 %v2884
    %4282 = vmatprep.subr.bf16.mxu0 %v2897
    %4283 = vmatpush1.bf16.xpose.msra.mxu0 %v2896
    %4284 = vmatprep.subr.bf16.mxu0 %v2909
    %4285 = vmatpush1.bf16.xpose.msra.mxu0 %v2908
    %4286 = vmatprep.subr.bf16.mxu0 %v2921
    %4287 = vmatpush1.bf16.xpose.msra.mxu0 %v2920
    %4288 = vmatprep.subr.bf16.mxu0 %v2933
    %4289 = vmatpush1.bf16.xpose.msra.mxu0 %v2932
    %4290 = vmatprep.subr.bf16.mxu0 %v2945
    %4291 = vmatpush1.bf16.xpose.msra.mxu0 %v2944
    %4292 = vmatprep.subr.bf16.mxu0 %v2957
    %4293 = vmatpush1.bf16.xpose.msra.mxu0 %v2956
    %4294 = vmatprep.subr.bf16.mxu0 %v2969
    %4295 = vmatpush1.bf16.xpose.msra.mxu0 %v2968
    %4296 = vmatprep.subr.bf16.mxu0 %v2981
    %4297 = vmatpush1.bf16.xpose.msra.mxu0 %v2980
    %4298 = vmatprep.subr.bf16.mxu0 %v2993
    %4299 = vmatpush1.bf16.xpose.msra.mxu0 %v2992
    %4300 = vmatprep.subr.bf16.mxu0 %v3005
    %4301 = vmatpush1.bf16.xpose.msra.mxu0 %v3004
    %4302 = vmatprep.subr.bf16.mxu0 %v3017
    %4303 = vmatpush1.bf16.xpose.msra.mxu0 %v3016
    %4304 = vmatprep.subr.bf16.mxu0 %v3029
    %4305 = vmatpush1.bf16.xpose.msra.mxu0 %v3028
    %4306 = vmatprep.subr.bf16.mxu0 %v3041
    %4307 = vmatpush1.bf16.xpose.msra.mxu0 %v3040
    %4308 = vmatprep.mubr.bf16.mxu0 %v725
    %4309 = vmatmul.mubr.bf16.gmra.mrb[0].mxu0 %v724
    %v4310 = vpop.f32.mrb[0].mxu0
    %v4311 = vadd.f32 %v4270, %v4310
    %v4312 = vpop.f32.mrb[0].mxu0
    %v4313 = vadd.f32 %v4272, %v4312
    %v4314 = vpop.f32.mrb[0].mxu0
    %v4315 = vpop.f32.mrb[0].mxu0
    %4316 = vdwg.mxu0
    %4317 = vmatprep.subr.bf16.mxu0 %v2863
    %4318 = vmatpush1.bf16.xpose.msra.mxu0 %v2862
    %4319 = vmatprep.subr.bf16.mxu0 %v2875
    %4320 = vmatpush1.bf16.xpose.msra.mxu0 %v2874
    %4321 = vmatprep.subr.bf16.mxu0 %v2887
    %4322 = vmatpush1.bf16.xpose.msra.mxu0 %v2886
    %4323 = vmatprep.subr.bf16.mxu0 %v2899
    %4324 = vmatpush1.bf16.xpose.msra.mxu0 %v2898
    %4325 = vmatprep.subr.bf16.mxu0 %v2911
    %4326 = vmatpush1.bf16.xpose.msra.mxu0 %v2910
    %4327 = vmatprep.subr.bf16.mxu0 %v2923
    %4328 = vmatpush1.bf16.xpose.msra.mxu0 %v2922
    %4329 = vmatprep.subr.bf16.mxu0 %v2935
    %4330 = vmatpush1.bf16.xpose.msra.mxu0 %v2934
    %4331 = vmatprep.subr.bf16.mxu0 %v2947
    %4332 = vmatpush1.bf16.xpose.msra.mxu0 %v2946
    %4333 = vmatprep.subr.bf16.mxu0 %v2959
    %4334 = vmatpush1.bf16.xpose.msra.mxu0 %v2958
    %4335 = vmatprep.subr.bf16.mxu0 %v2971
    %4336 = vmatpush1.bf16.xpose.msra.mxu0 %v2970
    %4337 = vmatprep.subr.bf16.mxu0 %v2983
    %4338 = vmatpush1.bf16.xpose.msra.mxu0 %v2982
    %4339 = vmatprep.subr.bf16.mxu0 %v2995
    %4340 = vmatpush1.bf16.xpose.msra.mxu0 %v2994
    %4341 = vmatprep.subr.bf16.mxu0 %v3007
    %4342 = vmatpush1.bf16.xpose.msra.mxu0 %v3006
    %4343 = vmatprep.subr.bf16.mxu0 %v3019
    %4344 = vmatpush1.bf16.xpose.msra.mxu0 %v3018
    %4345 = vmatprep.subr.bf16.mxu0 %v3031
    %4346 = vmatpush1.bf16.xpose.msra.mxu0 %v3030
    %4347 = vmatprep.subr.bf16.mxu0 %v3043
    %4348 = vmatpush1.bf16.xpose.msra.mxu0 %v3042
    %4349 = vmatprep.mubr.bf16.mxu0 %v727
    %4350 = vmatmul.mubr.bf16.gmra.mrb[0].mxu0 %v726
    %v4351 = vpop.f32.mrb[0].mxu0
    %v4352 = vadd.f32 %v4311, %v4351
    %v4353 = vpop.f32.mrb[0].mxu0
    %v4354 = vadd.f32 %v4313, %v4353
    %v4355 = vpop.f32.mrb[0].mxu0
    %v4356 = vpop.f32.mrb[0].mxu0
    %4357 = vdwg.mxu0
    %v4358 = vtanh.pop %v3860
    %v4359 = vtanh.pop %v3862
    %v4360 = vtanh.pop %v4106
    %v4361 = vtanh.pop %v4108
    %v4362 = vtanh.pop %v4352
    %v4363 = vtanh.pop %v4354
    %v4364 = vpack.c.bf16 %v4358, %v4358
    %v4365 = vpack.c.bf16 %v4359, %v4359
    %v4366 = vpack.c.bf16 %v4360, %v4360
    %v4367 = vpack.c.bf16 %v4361, %v4361
    %v4368 = vpack.c.bf16 %v4362, %v4362
    %v4369 = vpack.c.bf16 %v4363, %v4363
    %v4370 = vld [vmem:[#allocation8] sm:$0xff]
    %v4371 = vld [vmem:[#allocation8 + $0x8] sm:$0xff]
    %v4372 = vld [vmem:[#allocation8 + $0x10] sm:$0xff]
    %v4373 = vld [vmem:[#allocation8 + $0x18] sm:$0xff]
    %v4374 = vld [vmem:[#allocation8 + $0x20] sm:$0xff]
    %v4375 = vld [vmem:[#allocation8 + $0x28] sm:$0xff]
    %v4376 = vld [vmem:[#allocation8 + $0x30] sm:$0xff]
    %v4377 = vld [vmem:[#allocation8 + $0x38] sm:$0xff]
    %v4378 = vld [vmem:[#allocation8 + $0x40] sm:$0xff]
    %v4379 = vld [vmem:[#allocation8 + $0x48] sm:$0xff]
    %v4380 = vld [vmem:[#allocation8 + $0x50] sm:$0xff]
    %v4381 = vld [vmem:[#allocation8 + $0x58] sm:$0xff]
    %v4382 = vld [vmem:[#allocation8 + $0x60] sm:$0xff]
    %v4383 = vld [vmem:[#allocation8 + $0x68] sm:$0xff]
    %v4384 = vld [vmem:[#allocation8 + $0x70] sm:$0xff]
    %v4385 = vld [vmem:[#allocation8 + $0x78] sm:$0xff]
    %v4386 = vld [vmem:[#allocation8 + $0x80] sm:$0xff]
    %v4387 = vld [vmem:[#allocation8 + $0x88] sm:$0xff]
    %v4388 = vld [vmem:[#allocation8 + $0x90] sm:$0xff]
    %v4389 = vld [vmem:[#allocation8 + $0x98] sm:$0xff]
    %v4390 = vld [vmem:[#allocation8 + $0xa0] sm:$0xff]
    %v4391 = vld [vmem:[#allocation8 + $0xa8] sm:$0xff]
    %v4392 = vld [vmem:[#allocation8 + $0xb0] sm:$0xff]
    %v4393 = vld [vmem:[#allocation8 + $0xb8] sm:$0xff]
    %v4394 = vld [vmem:[#allocation8 + $0xc0] sm:$0xff]
    %v4395 = vld [vmem:[#allocation8 + $0xc8] sm:$0xff]
    %v4396 = vld [vmem:[#allocation8 + $0xd0] sm:$0xff]
    %v4397 = vld [vmem:[#allocation8 + $0xd8] sm:$0xff]
    %v4398 = vld [vmem:[#allocation8 + $0xe0] sm:$0xff]
    %v4399 = vld [vmem:[#allocation8 + $0xe8] sm:$0xff]
    %v4400 = vld [vmem:[#allocation8 + $0xf0] sm:$0xff]
    %v4401 = vld [vmem:[#allocation8 + $0xf8] sm:$0xff]
    %v4402 = vld [vmem:[#allocation8 + $0x100] sm:$0xff]
    %v4403 = vld [vmem:[#allocation8 + $0x108] sm:$0xff]
    %v4404 = vld [vmem:[#allocation8 + $0x110] sm:$0xff]
    %v4405 = vld [vmem:[#allocation8 + $0x118] sm:$0xff]
    %v4406 = vld [vmem:[#allocation8 + $0x120] sm:$0xff]
    %v4407 = vld [vmem:[#allocation8 + $0x128] sm:$0xff]
    %v4408 = vld [vmem:[#allocation8 + $0x130] sm:$0xff]
    %v4409 = vld [vmem:[#allocation8 + $0x138] sm:$0xff]
    %v4410 = vld [vmem:[#allocation8 + $0x140] sm:$0xff]
    %v4411 = vld [vmem:[#allocation8 + $0x148] sm:$0xff]
    %v4412 = vld [vmem:[#allocation8 + $0x150] sm:$0xff]
    %v4413 = vld [vmem:[#allocation8 + $0x158] sm:$0xff]
    %v4414 = vld [vmem:[#allocation8 + $0x160] sm:$0xff]
    %v4415 = vld [vmem:[#allocation8 + $0x168] sm:$0xff]
    %v4416 = vld [vmem:[#allocation8 + $0x170] sm:$0xff]
    %v4417 = vld [vmem:[#allocation8 + $0x178] sm:$0xff]
    %v4418 = vld [vmem:[#allocation10] sm:$0x1]
    %v4420 = vlaneseq
    %v4421 = vshrl.u32 %v4420, 7
    %v4422 = vsub.s32 0, %v4421
    %v4423 = vrot.slane %v4418, %v4422
    %v4473 = vunpack.c.l.b16 %v4370
    %v4474 = vunpack.c.h.b16 %v4370
    %v4475 = vunpack.c.l.b16 %v4371
    %v4476 = vunpack.c.h.b16 %v4371
    %v4477 = vunpack.c.l.b16 %v4372
    %v4478 = vunpack.c.h.b16 %v4372
    %v4479 = vunpack.c.l.b16 %v4373
    %v4480 = vunpack.c.h.b16 %v4373
    %v4481 = vunpack.c.l.b16 %v4374
    %v4482 = vunpack.c.h.b16 %v4374
    %v4483 = vunpack.c.l.b16 %v4375
    %v4484 = vunpack.c.h.b16 %v4375
    %v4485 = vunpack.c.l.b16 %v4376
    %v4486 = vunpack.c.h.b16 %v4376
    %v4487 = vunpack.c.l.b16 %v4377
    %v4488 = vunpack.c.h.b16 %v4377
    %v4489 = vunpack.c.l.b16 %v4378
    %v4490 = vunpack.c.h.b16 %v4378
    %v4491 = vunpack.c.l.b16 %v4379
    %v4492 = vunpack.c.h.b16 %v4379
    %v4493 = vunpack.c.l.b16 %v4380
    %v4494 = vunpack.c.h.b16 %v4380
    %v4495 = vunpack.c.l.b16 %v4381
    %v4496 = vunpack.c.h.b16 %v4381
    %v4497 = vunpack.c.l.b16 %v4382
    %v4498 = vunpack.c.h.b16 %v4382
    %v4499 = vunpack.c.l.b16 %v4383
    %v4500 = vunpack.c.h.b16 %v4383
    %v4501 = vunpack.c.l.b16 %v4384
    %v4502 = vunpack.c.h.b16 %v4384
    %v4503 = vunpack.c.l.b16 %v4385
    %v4504 = vunpack.c.h.b16 %v4385
    %v4505 = vunpack.c.l.b16 %v4386
    %v4506 = vunpack.c.h.b16 %v4386
    %v4507 = vunpack.c.l.b16 %v4387
    %v4508 = vunpack.c.h.b16 %v4387
    %v4509 = vunpack.c.l.b16 %v4388
    %v4510 = vunpack.c.h.b16 %v4388
    %v4511 = vunpack.c.l.b16 %v4389
    %v4512 = vunpack.c.h.b16 %v4389
    %v4513 = vunpack.c.l.b16 %v4390
    %v4514 = vunpack.c.h.b16 %v4390
    %v4515 = vunpack.c.l.b16 %v4391
    %v4516 = vunpack.c.h.b16 %v4391
    %v4517 = vunpack.c.l.b16 %v4392
    %v4518 = vunpack.c.h.b16 %v4392
    %v4519 = vunpack.c.l.b16 %v4393
    %v4520 = vunpack.c.h.b16 %v4393
    %v4521 = vunpack.c.l.b16 %v4394
    %v4522 = vunpack.c.h.b16 %v4394
    %v4523 = vunpack.c.l.b16 %v4395
    %v4524 = vunpack.c.h.b16 %v4395
    %v4525 = vunpack.c.l.b16 %v4396
    %v4526 = vunpack.c.h.b16 %v4396
    %v4527 = vunpack.c.l.b16 %v4397
    %v4528 = vunpack.c.h.b16 %v4397
    %v4529 = vunpack.c.l.b16 %v4398
    %v4530 = vunpack.c.h.b16 %v4398
    %v4531 = vunpack.c.l.b16 %v4399
    %v4532 = vunpack.c.h.b16 %v4399
    %v4533 = vunpack.c.l.b16 %v4400
    %v4534 = vunpack.c.h.b16 %v4400
    %v4535 = vunpack.c.l.b16 %v4401
    %v4536 = vunpack.c.h.b16 %v4401
    %v4537 = vunpack.c.l.b16 %v4402
    %v4538 = vunpack.c.h.b16 %v4402
    %v4539 = vunpack.c.l.b16 %v4403
    %v4540 = vunpack.c.h.b16 %v4403
    %v4541 = vunpack.c.l.b16 %v4404
    %v4542 = vunpack.c.h.b16 %v4404
    %v4543 = vunpack.c.l.b16 %v4405
    %v4544 = vunpack.c.h.b16 %v4405
    %v4545 = vunpack.c.l.b16 %v4406
    %v4546 = vunpack.c.h.b16 %v4406
    %v4547 = vunpack.c.l.b16 %v4407
    %v4548 = vunpack.c.h.b16 %v4407
    %v4549 = vunpack.c.l.b16 %v4408
    %v4550 = vunpack.c.h.b16 %v4408
    %v4551 = vunpack.c.l.b16 %v4409
    %v4552 = vunpack.c.h.b16 %v4409
    %v4553 = vunpack.c.l.b16 %v4410
    %v4554 = vunpack.c.h.b16 %v4410
    %v4555 = vunpack.c.l.b16 %v4411
    %v4556 = vunpack.c.h.b16 %v4411
    %v4557 = vunpack.c.l.b16 %v4412
    %v4558 = vunpack.c.h.b16 %v4412
    %v4559 = vunpack.c.l.b16 %v4413
    %v4560 = vunpack.c.h.b16 %v4413
    %v4561 = vunpack.c.l.b16 %v4414
    %v4562 = vunpack.c.h.b16 %v4414
    %v4563 = vunpack.c.l.b16 %v4415
    %v4564 = vunpack.c.h.b16 %v4415
    %v4565 = vunpack.c.l.b16 %v4416
    %v4566 = vunpack.c.h.b16 %v4416
    %v4567 = vunpack.c.l.b16 %v4417
    %v4568 = vunpack.c.h.b16 %v4417
    %v4569 = vpack.c.b16 %v4479, %v4473
    %v4570 = vpack.c.b16 %v4480, %v4474
    %v4571 = vpack.c.b16 %v4481, %v4475
    %v4572 = vpack.c.b16 %v4482, %v4476
    %v4573 = vpack.c.b16 %v4483, %v4477
    %v4574 = vpack.c.b16 %v4484, %v4478
    %v4575 = vpack.c.b16 %v4491, %v4485
    %v4576 = vpack.c.b16 %v4492, %v4486
    %v4577 = vpack.c.b16 %v4493, %v4487
    %v4578 = vpack.c.b16 %v4494, %v4488
    %v4579 = vpack.c.b16 %v4495, %v4489
    %v4580 = vpack.c.b16 %v4496, %v4490
    %v4581 = vpack.c.b16 %v4503, %v4497
    %v4582 = vpack.c.b16 %v4504, %v4498
    %v4583 = vpack.c.b16 %v4505, %v4499
    %v4584 = vpack.c.b16 %v4506, %v4500
    %v4585 = vpack.c.b16 %v4507, %v4501
    %v4586 = vpack.c.b16 %v4508, %v4502
    %v4587 = vpack.c.b16 %v4515, %v4509
    %v4588 = vpack.c.b16 %v4516, %v4510
    %v4589 = vpack.c.b16 %v4517, %v4511
    %v4590 = vpack.c.b16 %v4518, %v4512
    %v4591 = vpack.c.b16 %v4519, %v4513
    %v4592 = vpack.c.b16 %v4520, %v4514
    %v4593 = vpack.c.b16 %v4527, %v4521
    %v4594 = vpack.c.b16 %v4528, %v4522
    %v4595 = vpack.c.b16 %v4529, %v4523
    %v4596 = vpack.c.b16 %v4530, %v4524
    %v4597 = vpack.c.b16 %v4531, %v4525
    %v4598 = vpack.c.b16 %v4532, %v4526
    %v4599 = vpack.c.b16 %v4539, %v4533
    %v4600 = vpack.c.b16 %v4540, %v4534
    %v4601 = vpack.c.b16 %v4541, %v4535
    %v4602 = vpack.c.b16 %v4542, %v4536
    %v4603 = vpack.c.b16 %v4543, %v4537
    %v4604 = vpack.c.b16 %v4544, %v4538
    %v4605 = vpack.c.b16 %v4551, %v4545
    %v4606 = vpack.c.b16 %v4552, %v4546
    %v4607 = vpack.c.b16 %v4553, %v4547
    %v4608 = vpack.c.b16 %v4554, %v4548
    %v4609 = vpack.c.b16 %v4555, %v4549
    %v4610 = vpack.c.b16 %v4556, %v4550
    %v4611 = vpack.c.b16 %v4563, %v4557
    %v4612 = vpack.c.b16 %v4564, %v4558
    %v4613 = vpack.c.b16 %v4565, %v4559
    %v4614 = vpack.c.b16 %v4566, %v4560
    %v4615 = vpack.c.b16 %v4567, %v4561
    %v4616 = vpack.c.b16 %v4568, %v4562
    %4665 = vmatprep.subr.bf16.mxu0 %v4570
    %4666 = vmatpush1.bf16.xpose.msra.mxu0 %v4569
    %4667 = vmatprep.subr.bf16.mxu0 %v4576
    %4668 = vmatpush1.bf16.xpose.msra.mxu0 %v4575
    %4669 = vmatprep.subr.bf16.mxu0 %v4582
    %4670 = vmatpush1.bf16.xpose.msra.mxu0 %v4581
    %4671 = vmatprep.subr.bf16.mxu0 %v4588
    %4672 = vmatpush1.bf16.xpose.msra.mxu0 %v4587
    %4673 = vmatprep.subr.bf16.mxu0 %v4594
    %4674 = vmatpush1.bf16.xpose.msra.mxu0 %v4593
    %4675 = vmatprep.subr.bf16.mxu0 %v4600
    %4676 = vmatpush1.bf16.xpose.msra.mxu0 %v4599
    %4677 = vmatprep.subr.bf16.mxu0 %v4606
    %4678 = vmatpush1.bf16.xpose.msra.mxu0 %v4605
    %4679 = vmatprep.subr.bf16.mxu0 %v4612
    %4680 = vmatpush1.bf16.xpose.msra.mxu0 %v4611
    %4681 = vmatprep.subr.bf16.mxu0 0
    %4682 = vmatpush1.bf16.xpose.msra.mxu0 0
    %4683 = vmatprep.subr.bf16.mxu0 0
    %4684 = vmatpush1.bf16.xpose.msra.mxu0 0
    %4685 = vmatprep.subr.bf16.mxu0 0
    %4686 = vmatpush1.bf16.xpose.msra.mxu0 0
    %4687 = vmatprep.subr.bf16.mxu0 0
    %4688 = vmatpush1.bf16.xpose.msra.mxu0 0
    %4689 = vmatprep.subr.bf16.mxu0 0
    %4690 = vmatpush1.bf16.xpose.msra.mxu0 0
    %4691 = vmatprep.subr.bf16.mxu0 0
    %4692 = vmatpush1.bf16.xpose.msra.mxu0 0
    %4693 = vmatprep.subr.bf16.mxu0 0
    %4694 = vmatpush1.bf16.xpose.msra.mxu0 0
    %4695 = vmatprep.subr.bf16.mxu0 0
    %4696 = vmatpush1.bf16.xpose.msra.mxu0 0
    %4697 = vmatprep.mubr.bf16.mxu0 %v4365
    %4698 = vmatmul.mubr.bf16.gmra.mrb[0].mxu0 %v4364
    %v4699 = vpop.f32.mrb[0].mxu0
    %v4700 = vadd.f32 %v4423, %v4699
    %v4701 = vpop.f32.mrb[0].mxu0
    %v4702 = vpop.f32.mrb[0].mxu0
    %v4703 = vpop.f32.mrb[0].mxu0
    %4704 = vdwg.mxu0
    %4705 = vmatprep.subr.bf16.mxu0 %v4572
    %4706 = vmatpush1.bf16.xpose.msra.mxu0 %v4571
    %4707 = vmatprep.subr.bf16.mxu0 %v4578
    %4708 = vmatpush1.bf16.xpose.msra.mxu0 %v4577
    %4709 = vmatprep.subr.bf16.mxu0 %v4584
    %4710 = vmatpush1.bf16.xpose.msra.mxu0 %v4583
    %4711 = vmatprep.subr.bf16.mxu0 %v4590
    %4712 = vmatpush1.bf16.xpose.msra.mxu0 %v4589
    %4713 = vmatprep.subr.bf16.mxu0 %v4596
    %4714 = vmatpush1.bf16.xpose.msra.mxu0 %v4595
    %4715 = vmatprep.subr.bf16.mxu0 %v4602
    %4716 = vmatpush1.bf16.xpose.msra.mxu0 %v4601
    %4717 = vmatprep.subr.bf16.mxu0 %v4608
    %4718 = vmatpush1.bf16.xpose.msra.mxu0 %v4607
    %4719 = vmatprep.subr.bf16.mxu0 %v4614
    %4720 = vmatpush1.bf16.xpose.msra.mxu0 %v4613
    %4721 = vmatprep.subr.bf16.mxu0 0
    %4722 = vmatpush1.bf16.xpose.msra.mxu0 0
    %4723 = vmatprep.subr.bf16.mxu0 0
    %4724 = vmatpush1.bf16.xpose.msra.mxu0 0
    %4725 = vmatprep.subr.bf16.mxu0 0
    %4726 = vmatpush1.bf16.xpose.msra.mxu0 0
    %4727 = vmatprep.subr.bf16.mxu0 0
    %4728 = vmatpush1.bf16.xpose.msra.mxu0 0
    %4729 = vmatprep.subr.bf16.mxu0 0
    %4730 = vmatpush1.bf16.xpose.msra.mxu0 0
    %4731 = vmatprep.subr.bf16.mxu0 0
    %4732 = vmatpush1.bf16.xpose.msra.mxu0 0
    %4733 = vmatprep.subr.bf16.mxu0 0
    %4734 = vmatpush1.bf16.xpose.msra.mxu0 0
    %4735 = vmatprep.subr.bf16.mxu0 0
    %4736 = vmatpush1.bf16.xpose.msra.mxu0 0
    %4737 = vmatprep.mubr.bf16.mxu0 %v4367
    %4738 = vmatmul.mubr.bf16.gmra.mrb[0].mxu0 %v4366
    %v4739 = vpop.f32.mrb[0].mxu0
    %v4740 = vadd.f32 %v4700, %v4739
    %v4741 = vpop.f32.mrb[0].mxu0
    %v4742 = vpop.f32.mrb[0].mxu0
    %v4743 = vpop.f32.mrb[0].mxu0
    %4744 = vdwg.mxu0
    %4745 = vmatprep.subr.bf16.mxu0 %v4574
    %4746 = vmatpush1.bf16.xpose.msra.mxu0 %v4573
    %4747 = vmatprep.subr.bf16.mxu0 %v4580
    %4748 = vmatpush1.bf16.xpose.msra.mxu0 %v4579
    %4749 = vmatprep.subr.bf16.mxu0 %v4586
    %4750 = vmatpush1.bf16.xpose.msra.mxu0 %v4585
    %4751 = vmatprep.subr.bf16.mxu0 %v4592
    %4752 = vmatpush1.bf16.xpose.msra.mxu0 %v4591
    %4753 = vmatprep.subr.bf16.mxu0 %v4598
    %4754 = vmatpush1.bf16.xpose.msra.mxu0 %v4597
    %4755 = vmatprep.subr.bf16.mxu0 %v4604
    %4756 = vmatpush1.bf16.xpose.msra.mxu0 %v4603
    %4757 = vmatprep.subr.bf16.mxu0 %v4610
    %4758 = vmatpush1.bf16.xpose.msra.mxu0 %v4609
    %4759 = vmatprep.subr.bf16.mxu0 %v4616
    %4760 = vmatpush1.bf16.xpose.msra.mxu0 %v4615
    %4761 = vmatprep.subr.bf16.mxu0 0
    %4762 = vmatpush1.bf16.xpose.msra.mxu0 0
    %4763 = vmatprep.subr.bf16.mxu0 0
    %4764 = vmatpush1.bf16.xpose.msra.mxu0 0
    %4765 = vmatprep.subr.bf16.mxu0 0
    %4766 = vmatpush1.bf16.xpose.msra.mxu0 0
    %4767 = vmatprep.subr.bf16.mxu0 0
    %4768 = vmatpush1.bf16.xpose.msra.mxu0 0
    %4769 = vmatprep.subr.bf16.mxu0 0
    %4770 = vmatpush1.bf16.xpose.msra.mxu0 0
    %4771 = vmatprep.subr.bf16.mxu0 0
    %4772 = vmatpush1.bf16.xpose.msra.mxu0 0
    %4773 = vmatprep.subr.bf16.mxu0 0
    %4774 = vmatpush1.bf16.xpose.msra.mxu0 0
    %4775 = vmatprep.subr.bf16.mxu0 0
    %4776 = vmatpush1.bf16.xpose.msra.mxu0 0
    %4777 = vmatprep.mubr.bf16.mxu0 %v4369
    %4778 = vmatmul.mubr.bf16.gmra.mrb[0].mxu0 %v4368
    %v4779 = vpop.f32.mrb[0].mxu0
    %v4780 = vadd.f32 %v4740, %v4779
    %v4781 = vpop.f32.mrb[0].mxu0
    %v4782 = vpop.f32.mrb[0].mxu0
    %v4783 = vpop.f32.mrb[0].mxu0
    %4784 = vdwg.mxu0
    %4785 = vst [vmem:[#allocation11] sm:$0xff] %v4780
    // Predicated region
    $region42: #{tpu_custom_call.1} parent=1 // pred_check
      _
    $region43: #{tpu_custom_call.1} parent=1 // pred_check_branch
      %4787 = sbr.rel (0) target = $region45
    $region44: #{tpu_custom_call.1} parent=1 // pred_region
      %s4789 = ssub.s32 128, 128
      %4790 = vsyncadd [#allocation4], %s4789
      %s4792 = sshll.u32 [#allocation11], 4
      %s4793 = int_to_ptr.vmem [resolvable:$true] %s4792
      %4795 = dma.vmem_to_hbm [thread:$0]  %s4793, 128, %s5, [#allocation4]
    $region45: #{tpu_custom_call.1} parent=1 // pred_fallthru
      _
    // Predicated region
    $region46: #{tpu_custom_call.1} parent=1 // pred_check
      _
    $region47: #{tpu_custom_call.1} parent=1 // pred_check_branch
      %4797 = sbr.rel (0) target = $region49
    $region48: #{tpu_custom_call.1} parent=1 // pred_region
      %4798 = dma.done [#allocation4], 128
    $region49: #{tpu_custom_call.1} parent=1 // pred_fallthru
      _
    %4799 = vsyncpa [#allocation3], 1
    %4800 = vsyncpa [#allocation6], 1
    %4801 = vsyncpa [#allocation9], 1
    %4802 = vsyncpa [#allocation4], 1

</llo_original>
